<compile_context>
chip_gen: v7x
topology: tpu7x:2x2x1
jax: 0.10.0
libtpu: 0.0.40
codegen_flags: <defaults>
</compile_context>

<pallas_src>
import math

import jax
import jax.numpy as jnp
from jax import lax
from jax.experimental import pallas as pl
from jax.experimental.pallas import tpu as pltpu

TB = 32          # images per grid step
RB = TB * 8      # packed-input rows per grid step (8 sublane rows per image)


# ---------------------------------------------------------------------------
# Fused Pallas kernel
# ---------------------------------------------------------------------------
def lenet_kernel(x_ref, w1_ref, b1_ref, w2_ref, b2_ref,
                 wf1_ref, bf1_ref, wf2_ref, bf2_ref, wf3_ref, bf3_ref,
                 out_ref):
    f32 = jnp.float32
    x = x_ref[...]                                                    # (RB, 256)

    # ---- conv1 (1->6, 5x5) + 2x2 max-pool + bias + relu ------------------------------
    # Single matmul: K=256 packs (quad-row offset, row%4, image col); N=1024 packs
    # (hpool half e | vpool half dl | pooled-row parity pi | 14 pooled cols x 6 ch).
    y1 = jnp.dot(x, w1_ref[...], preferred_element_type=f32)          # (RB, 1024)
    h1 = jnp.maximum(y1[:, 0:512], y1[:, 512:1024])                   # horizontal pool
    v1 = jnp.maximum(h1[:, 0:256], h1[:, 256:512])                    # vertical pool
    q0 = jnp.maximum(v1 + b1_ref[...], 0.0)                           # (RB, 256)
    # q0[n*8+t, pi*128 + j*6 + c] = pooled1[n, c, 2t+pi, j]   (t<=6, j<=13 valid)

    # Sublane-shifted copies (row r -> r+1 / r+2).  Wrapped rows only ever feed garbage
    # output rows (s2 >= 5), which are never read downstream.
    q1 = jnp.concatenate([q0[1:, :], q0[:1, :]], axis=0)
    q2 = jnp.concatenate([q0[2:, :], q0[:2, :]], axis=0)

    # ---- conv2 (6->16, 5x5) + 2x2 max-pool + bias + relu -----------------------------
    # Three accumulated matmuls, one per pooled-row sublane offset (kh folded into bands).
    y2 = jnp.dot(q0, w2_ref[0], preferred_element_type=f32)
    y2 = y2 + jnp.dot(q1, w2_ref[1], preferred_element_type=f32)
    y2 = y2 + jnp.dot(q2, w2_ref[2], preferred_element_type=f32)      # (RB, 512)
    h2 = jnp.maximum(y2[:, 0:256], y2[:, 256:512])                    # horizontal pool
    v2 = jnp.maximum(h2[:, 0:128], h2[:, 128:256])                    # vertical pool
    p2 = jnp.maximum(v2 + b2_ref[...], 0.0)                           # (RB, 128)
    # p2[n*8+s2, j2*16 + c2] = pooled2[n, c2, s2, j2]   (s2<=4, j2<=4 valid)

    # ---- fc1 as accumulation over the 5 valid pooled rows, then fc2 / fc3 ------------
    p2b = p2.reshape(TB, 8, 128)
    acc = jnp.zeros((TB, 128), f32)
    for s2 in range(5):                                               # static 5-iter loop
        acc = acc + jnp.dot(p2b[:, s2, :], wf1_ref[s2],
                            preferred_element_type=f32)
    h = jnp.maximum(acc + bf1_ref[...], 0.0)                          # (TB,128) 120 valid
    h = jnp.maximum(jnp.dot(h, wf2_ref[...], preferred_element_type=f32)
                    + bf2_ref[...], 0.0)                              # (TB,128) 84 valid
    out_ref[...] = (jnp.dot(h, wf3_ref[...], preferred_element_type=f32)
                    + bf3_ref[...])                                   # (TB,128) 10 valid


# ---------------------------------------------------------------------------
# pallas_call wrapper
# ---------------------------------------------------------------------------
def _const_spec(shape):
    nd = len(shape)
    return pl.BlockSpec(shape, lambda i, _nd=nd: (0,) * _nd)   # VMEM-resident weights


def lenet_pallas(xp, w1, b1, w2, b2, wf1b, bf1, wf2, bf2, wf3, bf3, n_pad):
    in_specs = [
        pl.BlockSpec((RB, 256), lambda i: (i, 0)),
        _const_spec(w1.shape), _const_spec(b1.shape),
        _const_spec(w2.shape), _const_spec(b2.shape),
        _const_spec(wf1b.shape), _const_spec(bf1.shape),
        _const_spec(wf2.shape), _const_spec(bf2.shape),
        _const_spec(wf3.shape), _const_spec(bf3.shape),
    ]
    return pl.pallas_call(
        lenet_kernel,
        out_shape=jax.ShapeDtypeStruct((n_pad, 128), jnp.float32),
        grid=(n_pad // TB,),
        in_specs=in_specs,
        out_specs=pl.BlockSpec((TB, 128), lambda i: (i, 0)),
        compiler_params=pltpu.CompilerParams(
            dimension_semantics=("parallel",),      # megacore split on v7x
            vmem_limit_bytes=32 * 1024 * 1024),      # ~11 MiB used at TB=32; re-derive if TB grows
    )(xp, w1, b1, w2, b2, wf1b, bf1, wf2, bf2, wf3, bf3)


# ---------------------------------------------------------------------------
# Host-side (tiny, one-time) repacking: banded conv weights, packed input, padded fc.
# All zero-padding contributes exactly 0 to the matmuls.
# ---------------------------------------------------------------------------
def _build_conv1_band(w1c):
    """(6,1,5,5) conv1 weight -> (256, 1024) band.
    row  = quad_off*128 + (image_row % 4)*32 + image_col
    col  = e*512 + dl*256 + pi*128 + (j*6 + ch)          (pool-aligned output lanes)
    """
    pi, dl, e, kh, kw, j, co = jnp.meshgrid(
        jnp.arange(2), jnp.arange(2), jnp.arange(2), jnp.arange(5),
        jnp.arange(5), jnp.arange(14), jnp.arange(6), indexing="ij")
    m = 2 * pi + dl + kh                    # image row offset from 4*t
    c = 2 * j + e + kw                      # image column
    rows = (m // 4) * 128 + (m % 4) * 32 + c
    cols = e * 512 + dl * 256 + pi * 128 + j * 6 + co
    vals = w1c[co, 0, kh, kw]
    return jnp.zeros((256, 1024), jnp.float32).at[
        rows.ravel(), cols.ravel()].set(vals.ravel())


def _build_conv2_bands(w2c):
    """(16,6,5,5) conv2 weight -> (3, 256, 512) bands, one per sublane offset."""
    dl, e, kh, kw, j, ci, co = jnp.meshgrid(
        jnp.arange(2), jnp.arange(2), jnp.arange(5), jnp.arange(5),
        jnp.arange(5), jnp.arange(6), jnp.arange(16), indexing="ij")
    m = dl + kh
    off = m // 2                              # sublane offset into pooled1 rows
    parity = m % 2                            # pooled1 row parity (128-lane half of q)
    jj = 2 * j + e + kw                       # pooled1 column
    rows = parity * 128 + jj * 6 + ci
    cols = e * 256 + dl * 128 + j * 16 + co
    vals = w2c[co, ci, kh, kw]
    return jnp.zeros((3, 256, 512), jnp.float32).at[
        off.ravel(), rows.ravel(), cols.ravel()].set(vals.ravel())


def _pack_input(x3, n_pad):
    """(n_pad,32,32) -> (n_pad*8, 256): lane = quad_off*128 + (row%4)*32 + col,
    sublane row i of image n holds image rows 4*i + 4*quad_off + (row%4)."""
    p0 = x3.reshape(n_pad, 8, 4, 32).reshape(n_pad, 8, 128)
    p1 = jnp.concatenate(
        [p0[:, 1:, :], jnp.zeros((n_pad, 1, 128), jnp.float32)], axis=1)
    return jnp.concatenate([p0, p1], axis=2).reshape(n_pad * 8, 256)


@jax.jit
def net_forward(x, params):
    """Forward pass of Net. x: (N, 1, 32, 32) float32 NCHW. Returns (N, 10)."""
    (w1c, b1c, w2c, b2c, wf1, bf1, wf2, bf2, wf3, bf3) = params
    n = x.shape[0]
    n_pad = ((n + TB - 1) // TB) * TB

    x3 = x.reshape(n, 32, 32)
    if n_pad != n:
        x3 = jnp.pad(x3, ((0, n_pad - n), (0, 0), (0, 0)))
    xp = _pack_input(x3, n_pad)

    w1 = _build_conv1_band(w1c)                                     # (256, 1024)
    w2 = _build_conv2_bands(w2c)                                    # (3, 256, 512)
    b1row = jnp.tile(b1c, 14)                                       # index = j*6 + ch
    b1pad = (jnp.zeros((1, 256), jnp.float32)
             .at[0, 0:84].set(b1row).at[0, 128:212].set(b1row))
    b2pad = jnp.pad(jnp.tile(b2c, 5), (0, 48)).reshape(1, 128)      # index = j2*16 + ch

    # fc1: PyTorch flatten order f = c2*25 + s2*5 + j2; kernel rows per s2 are j2*16+c2.
    wf1b = jnp.pad(
        wf1.reshape(16, 5, 5, 120).transpose(1, 2, 0, 3).reshape(5, 80, 120),
        ((0, 0), (0, 48), (0, 8)))                                  # (5, 128, 128)
    bf1pad = jnp.pad(bf1, (0, 8)).reshape(1, 128)
    wf2pad = jnp.pad(wf2, ((0, 8), (0, 44)))                        # (128, 128)
    bf2pad = jnp.pad(bf2, (0, 44)).reshape(1, 128)
    wf3pad = jnp.pad(wf3, ((0, 44), (0, 118)))                      # (128, 128)
    bf3pad = jnp.pad(bf3, (0, 118)).reshape(1, 128)

    out = lenet_pallas(xp, w1, b1pad, w2, b2pad, wf1b, bf1pad,
                       wf2pad, bf2pad, wf3pad, bf3pad, n_pad)
    return out[:n, :10]


# ---------------------------------------------------------------------------
# Pure-JAX reference (numerical check) and parameter init
# ---------------------------------------------------------------------------
def net_forward_reference(x, params):
    (w1c, b1c, w2c, b2c, wf1, bf1, wf2, bf2, wf3, bf3) = params
    hp = lax.Precision.HIGHEST

    def conv(a, w, b):
        y = lax.conv_general_dilated(a, w, (1, 1), 'VALID',
                                     dimension_numbers=('NCHW', 'OIHW', 'NCHW'),
                                     precision=hp)
        return y + b.reshape(1, -1, 1, 1)

    def maxpool2(a):
        return lax.reduce_window(a, -jnp.inf, lax.max,
                                 (1, 1, 2, 2), (1, 1, 2, 2), 'VALID')

    y = maxpool2(jax.nn.relu(conv(x, w1c, b1c)))
    y = maxpool2(jax.nn.relu(conv(y, w2c, b2c)))
    y = y.reshape(y.shape[0], -1)
    y = jax.nn.relu(jnp.dot(y, wf1, precision=hp) + bf1)
    y = jax.nn.relu(jnp.dot(y, wf2, precision=hp) + bf2)
    return jnp.dot(y, wf3, precision=hp) + bf3


def init_params(key):
    ks = jax.random.split(key, 10)

    def nrm(k, shape, fan_in):
        return (jax.random.normal(k, shape, jnp.float32) / math.sqrt(fan_in)).astype(jnp.float32)

    w1c = nrm(ks[0], (6, 1, 5, 5), 25)       # conv1.weight (Cout, Cin, K, K)
    b1c = nrm(ks[1], (6,), 25)
    w2c = nrm(ks[2], (16, 6, 5, 5), 150)     # conv2.weight
    b2c = nrm(ks[3], (16,), 150)
    wf1 = nrm(ks[4], (400, 120), 400)        # fc1 as (in, out), PyTorch flatten order
    bf1 = nrm(ks[5], (120,), 400)
    wf2 = nrm(ks[6], (120, 84), 120)
    bf2 = nrm(ks[7], (84,), 120)
    wf3 = nrm(ks[8], (84, 10), 84)
    bf3 = nrm(ks[9], (10,), 84)
    return (w1c, b1c, w2c, b2c, wf1, bf1, wf2, bf2, wf3, bf3)


if __name__ == "__main__":
    key = jax.random.PRNGKey(0)
    kx, kp = jax.random.split(key)
    N = 48                                                    # pads to 64 -> grid of 2 steps
    x = jax.random.normal(kx, (N, 1, 32, 32), jnp.float32)    # NCHW; LeNet expects 32x32
    params = init_params(kp)

    out = jax.block_until_ready(net_forward(x, params))
    ref = jax.block_until_ready(net_forward_reference(x, params))

    assert out.shape == (N, 10) and out.dtype == jnp.float32
    assert bool(jnp.all(jnp.isfinite(out)))
    err = float(jnp.max(jnp.abs(out - ref)))
    assert bool(jnp.allclose(out, ref, rtol=2e-2, atol=2e-2)), f"max abs diff {err}"
    print("KERNEL_OK")
</pallas_src>

<mosaic_0001>
module attributes {stable_mosaic.version = 11 : i64} {
  func.func @lenet_kernel(%arg0: i32, %arg1: memref<256x256xf32, #tpu.memory_space<vmem>>, %arg2: memref<256x1024xf32, #tpu.memory_space<vmem>>, %arg3: memref<1x256xf32, #tpu.memory_space<vmem>>, %arg4: memref<3x256x512xf32, #tpu.memory_space<vmem>>, %arg5: memref<1x128xf32, #tpu.memory_space<vmem>>, %arg6: memref<5x128x128xf32, #tpu.memory_space<vmem>>, %arg7: memref<1x128xf32, #tpu.memory_space<vmem>>, %arg8: memref<128x128xf32, #tpu.memory_space<vmem>>, %arg9: memref<1x128xf32, #tpu.memory_space<vmem>>, %arg10: memref<128x128xf32, #tpu.memory_space<vmem>>, %arg11: memref<1x128xf32, #tpu.memory_space<vmem>>, %arg12: memref<32x128xf32, #tpu.memory_space<vmem>>) attributes {dimension_semantics = [#tpu.dimension_semantics<parallel>], iteration_bounds = array<i64: 2>, scalar_prefetch = 0 : i64, scratch_operands = 0 : i64, tpu.core_type = #tpu.core_type<tc>, window_params = [{transform_indices = @transform_0, window_bounds = array<i64: 256, 256>}, {pipeline_mode = #tpu.pipeline_mode<synchronous>, transform_indices = @transform_1, window_bounds = array<i64: 256, 1024>}, {pipeline_mode = #tpu.pipeline_mode<synchronous>, transform_indices = @transform_2, window_bounds = array<i64: 1, 256>}, {pipeline_mode = #tpu.pipeline_mode<synchronous>, transform_indices = @transform_3, window_bounds = array<i64: 3, 256, 512>}, {pipeline_mode = #tpu.pipeline_mode<synchronous>, transform_indices = @transform_4, window_bounds = array<i64: 1, 128>}, {pipeline_mode = #tpu.pipeline_mode<synchronous>, transform_indices = @transform_5, window_bounds = array<i64: 5, 128, 128>}, {pipeline_mode = #tpu.pipeline_mode<synchronous>, transform_indices = @transform_6, window_bounds = array<i64: 1, 128>}, {pipeline_mode = #tpu.pipeline_mode<synchronous>, transform_indices = @transform_7, window_bounds = array<i64: 128, 128>}, {pipeline_mode = #tpu.pipeline_mode<synchronous>, transform_indices = @transform_8, window_bounds = array<i64: 1, 128>}, {pipeline_mode = #tpu.pipeline_mode<synchronous>, transform_indices = @transform_9, window_bounds = array<i64: 128, 128>}, {pipeline_mode = #tpu.pipeline_mode<synchronous>, transform_indices = @transform_10, window_bounds = array<i64: 1, 128>}, {transform_indices = @transform_11, window_bounds = array<i64: 32, 128>}]} {
    %c0 = arith.constant 0 : index
    %c0_0 = arith.constant 0 : index
    %0 = vector.load %arg1[%c0, %c0_0] : memref<256x256xf32, #tpu.memory_space<vmem>>, vector<256x256xf32>
    %c0_1 = arith.constant 0 : index
    %c0_2 = arith.constant 0 : index
    %1 = vector.load %arg2[%c0_1, %c0_2] : memref<256x1024xf32, #tpu.memory_space<vmem>>, vector<256x1024xf32>
    %cst = arith.constant dense<0.000000e+00> : vector<256x1024xf32>
    %2 = tpu.matmul %0, %1, %cst {dimension_numbers = #tpu.dot_dimension_numbers<[1], [0], [0], [1], [0, 0, 1, 1], [], []>} : vector<256x256xf32>, vector<256x1024xf32>, vector<256x1024xf32> -> vector<256x1024xf32>
    %3 = vector.extract_strided_slice %2 {offsets = [0, 0], sizes = [256, 512], strides = [1, 1]} : vector<256x1024xf32> to vector<256x512xf32>
    %4 = vector.extract_strided_slice %2 {offsets = [0, 512], sizes = [256, 512], strides = [1, 1]} : vector<256x1024xf32> to vector<256x512xf32>
    %5 = arith.maximumf %3, %4 : vector<256x512xf32>
    %6 = vector.extract_strided_slice %5 {offsets = [0, 0], sizes = [256, 256], strides = [1, 1]} : vector<256x512xf32> to vector<256x256xf32>
    %7 = vector.extract_strided_slice %5 {offsets = [0, 256], sizes = [256, 256], strides = [1, 1]} : vector<256x512xf32> to vector<256x256xf32>
    %8 = arith.maximumf %6, %7 : vector<256x256xf32>
    %c0_3 = arith.constant 0 : index
    %c0_4 = arith.constant 0 : index
    %9 = vector.load %arg3[%c0_3, %c0_4] : memref<1x256xf32, #tpu.memory_space<vmem>>, vector<1x256xf32>
    %10 = vector.broadcast %9 : vector<1x256xf32> to vector<256x256xf32>
    %11 = arith.addf %8, %10 : vector<256x256xf32>
    %cst_5 = arith.constant 0.000000e+00 : f32
    %12 = vector.broadcast %cst_5 : f32 to vector<256x256xf32>
    %13 = arith.maximumf %11, %12 : vector<256x256xf32>
    %14 = vector.extract_strided_slice %13 {offsets = [1, 0], sizes = [255, 256], strides = [1, 1]} : vector<256x256xf32> to vector<255x256xf32>
    %15 = vector.extract_strided_slice %13 {offsets = [0, 0], sizes = [1, 256], strides = [1, 1]} : vector<256x256xf32> to vector<1x256xf32>
    %16 = tpu.concatenate %14, %15 in 0 : vector<255x256xf32>, vector<1x256xf32> -> vector<256x256xf32>
    %17 = vector.extract_strided_slice %13 {offsets = [2, 0], sizes = [254, 256], strides = [1, 1]} : vector<256x256xf32> to vector<254x256xf32>
    %18 = vector.extract_strided_slice %13 {offsets = [0, 0], sizes = [2, 256], strides = [1, 1]} : vector<256x256xf32> to vector<2x256xf32>
    %19 = tpu.concatenate %17, %18 in 0 : vector<254x256xf32>, vector<2x256xf32> -> vector<256x256xf32>
    %c0_6 = arith.constant 0 : index
    %c0_7 = arith.constant 0 : index
    %c0_8 = arith.constant 0 : index
    %20 = vector.load %arg4[%c0_6, %c0_7, %c0_8] : memref<3x256x512xf32, #tpu.memory_space<vmem>>, vector<1x256x512xf32>
    %21 = vector.shape_cast %20 : vector<1x256x512xf32> to vector<256x512xf32>
    %cst_9 = arith.constant dense<0.000000e+00> : vector<256x512xf32>
    %22 = tpu.matmul %13, %21, %cst_9 {dimension_numbers = #tpu.dot_dimension_numbers<[1], [0], [0], [1], [0, 0, 1, 1], [], []>} : vector<256x256xf32>, vector<256x512xf32>, vector<256x512xf32> -> vector<256x512xf32>
    %c1 = arith.constant 1 : index
    %c0_10 = arith.constant 0 : index
    %c0_11 = arith.constant 0 : index
    %23 = vector.load %arg4[%c1, %c0_10, %c0_11] : memref<3x256x512xf32, #tpu.memory_space<vmem>>, vector<1x256x512xf32>
    %24 = vector.shape_cast %23 : vector<1x256x512xf32> to vector<256x512xf32>
    %cst_12 = arith.constant dense<0.000000e+00> : vector<256x512xf32>
    %25 = tpu.matmul %16, %24, %cst_12 {dimension_numbers = #tpu.dot_dimension_numbers<[1], [0], [0], [1], [0, 0, 1, 1], [], []>} : vector<256x256xf32>, vector<256x512xf32>, vector<256x512xf32> -> vector<256x512xf32>
    %26 = arith.addf %22, %25 : vector<256x512xf32>
    %c2 = arith.constant 2 : index
    %c0_13 = arith.constant 0 : index
    %c0_14 = arith.constant 0 : index
    %27 = vector.load %arg4[%c2, %c0_13, %c0_14] : memref<3x256x512xf32, #tpu.memory_space<vmem>>, vector<1x256x512xf32>
    %28 = vector.shape_cast %27 : vector<1x256x512xf32> to vector<256x512xf32>
    %cst_15 = arith.constant dense<0.000000e+00> : vector<256x512xf32>
    %29 = tpu.matmul %19, %28, %cst_15 {dimension_numbers = #tpu.dot_dimension_numbers<[1], [0], [0], [1], [0, 0, 1, 1], [], []>} : vector<256x256xf32>, vector<256x512xf32>, vector<256x512xf32> -> vector<256x512xf32>
    %30 = arith.addf %26, %29 : vector<256x512xf32>
    %31 = vector.extract_strided_slice %30 {offsets = [0, 0], sizes = [256, 256], strides = [1, 1]} : vector<256x512xf32> to vector<256x256xf32>
    %32 = vector.extract_strided_slice %30 {offsets = [0, 256], sizes = [256, 256], strides = [1, 1]} : vector<256x512xf32> to vector<256x256xf32>
    %33 = arith.maximumf %31, %32 : vector<256x256xf32>
    %34 = vector.extract_strided_slice %33 {offsets = [0, 0], sizes = [256, 128], strides = [1, 1]} : vector<256x256xf32> to vector<256x128xf32>
    %35 = vector.extract_strided_slice %33 {offsets = [0, 128], sizes = [256, 128], strides = [1, 1]} : vector<256x256xf32> to vector<256x128xf32>
    %36 = arith.maximumf %34, %35 : vector<256x128xf32>
    %c0_16 = arith.constant 0 : index
    %c0_17 = arith.constant 0 : index
    %37 = vector.load %arg5[%c0_16, %c0_17] : memref<1x128xf32, #tpu.memory_space<vmem>>, vector<1x128xf32>
    %38 = vector.broadcast %37 : vector<1x128xf32> to vector<256x128xf32>
    %39 = arith.addf %36, %38 : vector<256x128xf32>
    %cst_18 = arith.constant 0.000000e+00 : f32
    %40 = vector.broadcast %cst_18 : f32 to vector<256x128xf32>
    %41 = arith.maximumf %39, %40 : vector<256x128xf32>
    %42 = vector.shape_cast %41 : vector<256x128xf32> to vector<32x8x128xf32>
    %cst_19 = arith.constant 0.000000e+00 : f32
    %43 = vector.broadcast %cst_19 : f32 to vector<32x128xf32>
    %44 = vector.extract_strided_slice %42 {offsets = [0, 0, 0], sizes = [32, 1, 128], strides = [1, 1, 1]} : vector<32x8x128xf32> to vector<32x1x128xf32>
    %45 = vector.shape_cast %44 : vector<32x1x128xf32> to vector<32x128xf32>
    %c0_20 = arith.constant 0 : index
    %c0_21 = arith.constant 0 : index
    %c0_22 = arith.constant 0 : index
    %46 = vector.load %arg6[%c0_20, %c0_21, %c0_22] : memref<5x128x128xf32, #tpu.memory_space<vmem>>, vector<1x128x128xf32>
    %47 = vector.shape_cast %46 : vector<1x128x128xf32> to vector<128x128xf32>
    %cst_23 = arith.constant dense<0.000000e+00> : vector<32x128xf32>
    %48 = tpu.matmul %45, %47, %cst_23 {dimension_numbers = #tpu.dot_dimension_numbers<[1], [0], [0], [1], [0, 0, 1, 1], [], []>} : vector<32x128xf32>, vector<128x128xf32>, vector<32x128xf32> -> vector<32x128xf32>
    %49 = arith.addf %43, %48 : vector<32x128xf32>
    %50 = vector.extract_strided_slice %42 {offsets = [0, 1, 0], sizes = [32, 1, 128], strides = [1, 1, 1]} : vector<32x8x128xf32> to vector<32x1x128xf32>
    %51 = vector.shape_cast %50 : vector<32x1x128xf32> to vector<32x128xf32>
    %c1_24 = arith.constant 1 : index
    %c0_25 = arith.constant 0 : index
    %c0_26 = arith.constant 0 : index
    %52 = vector.load %arg6[%c1_24, %c0_25, %c0_26] : memref<5x128x128xf32, #tpu.memory_space<vmem>>, vector<1x128x128xf32>
    %53 = vector.shape_cast %52 : vector<1x128x128xf32> to vector<128x128xf32>
    %cst_27 = arith.constant dense<0.000000e+00> : vector<32x128xf32>
    %54 = tpu.matmul %51, %53, %cst_27 {dimension_numbers = #tpu.dot_dimension_numbers<[1], [0], [0], [1], [0, 0, 1, 1], [], []>} : vector<32x128xf32>, vector<128x128xf32>, vector<32x128xf32> -> vector<32x128xf32>
    %55 = arith.addf %49, %54 : vector<32x128xf32>
    %56 = vector.extract_strided_slice %42 {offsets = [0, 2, 0], sizes = [32, 1, 128], strides = [1, 1, 1]} : vector<32x8x128xf32> to vector<32x1x128xf32>
    %57 = vector.shape_cast %56 : vector<32x1x128xf32> to vector<32x128xf32>
    %c2_28 = arith.constant 2 : index
    %c0_29 = arith.constant 0 : index
    %c0_30 = arith.constant 0 : index
    %58 = vector.load %arg6[%c2_28, %c0_29, %c0_30] : memref<5x128x128xf32, #tpu.memory_space<vmem>>, vector<1x128x128xf32>
    %59 = vector.shape_cast %58 : vector<1x128x128xf32> to vector<128x128xf32>
    %cst_31 = arith.constant dense<0.000000e+00> : vector<32x128xf32>
    %60 = tpu.matmul %57, %59, %cst_31 {dimension_numbers = #tpu.dot_dimension_numbers<[1], [0], [0], [1], [0, 0, 1, 1], [], []>} : vector<32x128xf32>, vector<128x128xf32>, vector<32x128xf32> -> vector<32x128xf32>
    %61 = arith.addf %55, %60 : vector<32x128xf32>
    %62 = vector.extract_strided_slice %42 {offsets = [0, 3, 0], sizes = [32, 1, 128], strides = [1, 1, 1]} : vector<32x8x128xf32> to vector<32x1x128xf32>
    %63 = vector.shape_cast %62 : vector<32x1x128xf32> to vector<32x128xf32>
    %c3 = arith.constant 3 : index
    %c0_32 = arith.constant 0 : index
    %c0_33 = arith.constant 0 : index
    %64 = vector.load %arg6[%c3, %c0_32, %c0_33] : memref<5x128x128xf32, #tpu.memory_space<vmem>>, vector<1x128x128xf32>
    %65 = vector.shape_cast %64 : vector<1x128x128xf32> to vector<128x128xf32>
    %cst_34 = arith.constant dense<0.000000e+00> : vector<32x128xf32>
    %66 = tpu.matmul %63, %65, %cst_34 {dimension_numbers = #tpu.dot_dimension_numbers<[1], [0], [0], [1], [0, 0, 1, 1], [], []>} : vector<32x128xf32>, vector<128x128xf32>, vector<32x128xf32> -> vector<32x128xf32>
    %67 = arith.addf %61, %66 : vector<32x128xf32>
    %68 = vector.extract_strided_slice %42 {offsets = [0, 4, 0], sizes = [32, 1, 128], strides = [1, 1, 1]} : vector<32x8x128xf32> to vector<32x1x128xf32>
    %69 = vector.shape_cast %68 : vector<32x1x128xf32> to vector<32x128xf32>
    %c4 = arith.constant 4 : index
    %c0_35 = arith.constant 0 : index
    %c0_36 = arith.constant 0 : index
    %70 = vector.load %arg6[%c4, %c0_35, %c0_36] : memref<5x128x128xf32, #tpu.memory_space<vmem>>, vector<1x128x128xf32>
    %71 = vector.shape_cast %70 : vector<1x128x128xf32> to vector<128x128xf32>
    %cst_37 = arith.constant dense<0.000000e+00> : vector<32x128xf32>
    %72 = tpu.matmul %69, %71, %cst_37 {dimension_numbers = #tpu.dot_dimension_numbers<[1], [0], [0], [1], [0, 0, 1, 1], [], []>} : vector<32x128xf32>, vector<128x128xf32>, vector<32x128xf32> -> vector<32x128xf32>
    %73 = arith.addf %67, %72 : vector<32x128xf32>
    %c0_38 = arith.constant 0 : index
    %c0_39 = arith.constant 0 : index
    %74 = vector.load %arg7[%c0_38, %c0_39] : memref<1x128xf32, #tpu.memory_space<vmem>>, vector<1x128xf32>
    %75 = vector.broadcast %74 : vector<1x128xf32> to vector<32x128xf32>
    %76 = arith.addf %73, %75 : vector<32x128xf32>
    %cst_40 = arith.constant 0.000000e+00 : f32
    %77 = vector.broadcast %cst_40 : f32 to vector<32x128xf32>
    %78 = arith.maximumf %76, %77 : vector<32x128xf32>
    %c0_41 = arith.constant 0 : index
    %c0_42 = arith.constant 0 : index
    %79 = vector.load %arg8[%c0_41, %c0_42] : memref<128x128xf32, #tpu.memory_space<vmem>>, vector<128x128xf32>
    %cst_43 = arith.constant dense<0.000000e+00> : vector<32x128xf32>
    %80 = tpu.matmul %78, %79, %cst_43 {dimension_numbers = #tpu.dot_dimension_numbers<[1], [0], [0], [1], [0, 0, 1, 1], [], []>} : vector<32x128xf32>, vector<128x128xf32>, vector<32x128xf32> -> vector<32x128xf32>
    %c0_44 = arith.constant 0 : index
    %c0_45 = arith.constant 0 : index
    %81 = vector.load %arg9[%c0_44, %c0_45] : memref<1x128xf32, #tpu.memory_space<vmem>>, vector<1x128xf32>
    %82 = vector.broadcast %81 : vector<1x128xf32> to vector<32x128xf32>
    %83 = arith.addf %80, %82 : vector<32x128xf32>
    %cst_46 = arith.constant 0.000000e+00 : f32
    %84 = vector.broadcast %cst_46 : f32 to vector<32x128xf32>
    %85 = arith.maximumf %83, %84 : vector<32x128xf32>
    %c0_47 = arith.constant 0 : index
    %c0_48 = arith.constant 0 : index
    %86 = vector.load %arg10[%c0_47, %c0_48] : memref<128x128xf32, #tpu.memory_space<vmem>>, vector<128x128xf32>
    %cst_49 = arith.constant dense<0.000000e+00> : vector<32x128xf32>
    %87 = tpu.matmul %85, %86, %cst_49 {dimension_numbers = #tpu.dot_dimension_numbers<[1], [0], [0], [1], [0, 0, 1, 1], [], []>} : vector<32x128xf32>, vector<128x128xf32>, vector<32x128xf32> -> vector<32x128xf32>
    %c0_50 = arith.constant 0 : index
    %c0_51 = arith.constant 0 : index
    %88 = vector.load %arg11[%c0_50, %c0_51] : memref<1x128xf32, #tpu.memory_space<vmem>>, vector<1x128xf32>
    %89 = vector.broadcast %88 : vector<1x128xf32> to vector<32x128xf32>
    %90 = arith.addf %87, %89 : vector<32x128xf32>
    %c0_52 = arith.constant 0 : index
    %c0_53 = arith.constant 0 : index
    %91 = vector.load %arg12[%c0_52, %c0_53] : memref<32x128xf32, #tpu.memory_space<vmem>>, vector<32x128xf32>
    tpu.vector_store %arg12[%c0_52, %c0_53], %90 {strides = array<i32>} : memref<32x128xf32, #tpu.memory_space<vmem>>, vector<32x128xf32>,
    return
  }
  func.func @transform_0(%arg0: i32) -> (i32, i32) {
    %c0_i32 = arith.constant 0 : i32
    %c0_i32_0 = arith.constant 0 : i32
    return %arg0, %c0_i32 : i32, i32
  }
  func.func @transform_1(%arg0: i32) -> (i32, i32) {
    %c0_i32 = arith.constant 0 : i32
    %c0_i32_0 = arith.constant 0 : i32
    %c0_i32_1 = arith.constant 0 : i32
    return %c0_i32, %c0_i32_0 : i32, i32
  }
  func.func @transform_2(%arg0: i32) -> (i32, i32) {
    %c0_i32 = arith.constant 0 : i32
    %c0_i32_0 = arith.constant 0 : i32
    %c0_i32_1 = arith.constant 0 : i32
    return %c0_i32, %c0_i32_0 : i32, i32
  }
  func.func @transform_3(%arg0: i32) -> (i32, i32, i32) {
    %c0_i32 = arith.constant 0 : i32
    %c0_i32_0 = arith.constant 0 : i32
    %c0_i32_1 = arith.constant 0 : i32
    %c0_i32_2 = arith.constant 0 : i32
    return %c0_i32, %c0_i32_0, %c0_i32_1 : i32, i32, i32
  }
  func.func @transform_4(%arg0: i32) -> (i32, i32) {
    %c0_i32 = arith.constant 0 : i32
    %c0_i32_0 = arith.constant 0 : i32
    %c0_i32_1 = arith.constant 0 : i32
    return %c0_i32, %c0_i32_0 : i32, i32
  }
  func.func @transform_5(%arg0: i32) -> (i32, i32, i32) {
    %c0_i32 = arith.constant 0 : i32
    %c0_i32_0 = arith.constant 0 : i32
    %c0_i32_1 = arith.constant 0 : i32
    %c0_i32_2 = arith.constant 0 : i32
    return %c0_i32, %c0_i32_0, %c0_i32_1 : i32, i32, i32
  }
  func.func @transform_6(%arg0: i32) -> (i32, i32) {
    %c0_i32 = arith.constant 0 : i32
    %c0_i32_0 = arith.constant 0 : i32
    %c0_i32_1 = arith.constant 0 : i32
    return %c0_i32, %c0_i32_0 : i32, i32
  }
  func.func @transform_7(%arg0: i32) -> (i32, i32) {
    %c0_i32 = arith.constant 0 : i32
    %c0_i32_0 = arith.constant 0 : i32
    %c0_i32_1 = arith.constant 0 : i32
    return %c0_i32, %c0_i32_0 : i32, i32
  }
  func.func @transform_8(%arg0: i32) -> (i32, i32) {
    %c0_i32 = arith.constant 0 : i32
    %c0_i32_0 = arith.constant 0 : i32
    %c0_i32_1 = arith.constant 0 : i32
    return %c0_i32, %c0_i32_0 : i32, i32
  }
  func.func @transform_9(%arg0: i32) -> (i32, i32) {
    %c0_i32 = arith.constant 0 : i32
    %c0_i32_0 = arith.constant 0 : i32
    %c0_i32_1 = arith.constant 0 : i32
    return %c0_i32, %c0_i32_0 : i32, i32
  }
  func.func @transform_10(%arg0: i32) -> (i32, i32) {
    %c0_i32 = arith.constant 0 : i32
    %c0_i32_0 = arith.constant 0 : i32
    %c0_i32_1 = arith.constant 0 : i32
    return %c0_i32, %c0_i32_0 : i32, i32
  }
  func.func @transform_11(%arg0: i32) -> (i32, i32) {
    %c0_i32 = arith.constant 0 : i32
    %c0_i32_0 = arith.constant 0 : i32
    return %arg0, %c0_i32 : i32, i32
  }
}

</mosaic_0001>

<llo_original>
// kernel: tile.13
$region0: #{tile.13}
  #allocation0 [shape = 's32[1]{0}', space=sflag, size = 0x4, scoped, tag = 'scoped memory for tile.13']
  %s0 = inlined_call_operand.vmem [shape: f32[6], index: 0, kind: input, shape index: {}]
  %s1 = inlined_call_operand.vmem [shape: f32[14,6], index: 1, kind: output, shape index: {}]
  // Predicated region
  $region2: #{tile.13} parent=0 // pred_check
    _
  $region3: #{tile.13} parent=0 // pred_check_branch
    %3 = sbr.rel (0) target = $region5
  $region4: #{tile.13} parent=0 // pred_region
    _
  $region5: #{tile.13} parent=0 // pred_fallthru
    _
  %v4 = vld [vmem:[%s0] ss:$0 sm:$0xff]
  %5 = vst [vmem:[%s1] sm:$0xff] %v4
  %s6 = scalar_lea.vmem %s1, 8
  %7 = vst [vmem:[%s6] sm:$0xff] %v4

// kernel: tile.18
$region0: #{tile.18}
  #allocation0 [shape = 's32[1]{0}', space=sflag, size = 0x4, scoped, tag = 'scoped memory for tile.18']
  %s0 = inlined_call_operand.vmem [shape: f32[16], index: 0, kind: input, shape index: {}]
  %s1 = inlined_call_operand.vmem [shape: f32[5,16], index: 1, kind: output, shape index: {}]
  // Predicated region
  $region2: #{tile.18} parent=0 // pred_check
    _
  $region3: #{tile.18} parent=0 // pred_check_branch
    %3 = sbr.rel (0) target = $region5
  $region4: #{tile.18} parent=0 // pred_region
    _
  $region5: #{tile.18} parent=0 // pred_fallthru
    _
  %v4 = vld [vmem:[%s0] ss:$0 sm:$0xff]
  %5 = vst [vmem:[%s1] sm:$0xff] %v4

// kernel: tile.19
$region0: #{tile.19}
  %s0 = inlined_call_operand.vmem [shape: f32[5,16], index: 0, kind: input, shape index: {}]
  %s1 = inlined_call_operand.vmem [shape: f32[80], index: 1, kind: output, shape index: {}]
  $region1: #{tile.19} parent=0
    #allocation0 [shape = 'u8[4096]{0}', space=vmem, size = 0x1000, scoped, tag = 'scoped mem for output reshape']
    %v2 = vld [vmem:[%s0] sm:$0x1]
    %vm3 = vcmask 130048
    %4 = vst.msk [vmem:[#allocation0] sm:$0x1] %vm3, %v2
    %s5 = scalar_lea.vmem %s0, 4
    %v6 = vld [vmem:[%s5] sm:$0x1]
    %7 = vrot.lane.b32.xlu0 %v6, 64
    %v8 = vpop.permute.xlu0 %7
    %vm9 = vcmask 654848
    %10 = vst.msk [vmem:[#allocation0] sm:$0x1] %vm9, %v8
    %s11 = scalar_lea.vmem %s0, 3
    %v12 = vld [vmem:[%s11] sm:$0x1]
    %13 = vrot.lane.b32.xlu0 %v12, 48
    %v14 = vpop.permute.xlu0 %13
    %vm15 = vcmask 523648
    %16 = vst.msk [vmem:[#allocation0] sm:$0x1] %vm15, %v14
    %s17 = scalar_lea.vmem %s0, 2
    %v18 = vld [vmem:[%s17] sm:$0x1]
    %19 = vrot.lane.b32.xlu0 %v18, 32
    %v20 = vpop.permute.xlu0 %19
    %vm21 = vcmask 392448
    %22 = vst.msk [vmem:[#allocation0] sm:$0x1] %vm21, %v20
    %s23 = scalar_lea.vmem %s0, 1
    %v24 = vld [vmem:[%s23] sm:$0x1]
    %25 = vrot.lane.b32.xlu0 %v24, 16
    %v26 = vpop.permute.xlu0 %25
    %vm27 = vcmask 261248
    %28 = vst.msk [vmem:[#allocation0] sm:$0x1] %vm27, %v26
    %s30 = sshllo.u32 0, 1
    %v32 = vld [vmem:[#allocation0] sm:%s30]
    %s33 = sshllo.u32 0, 1
    %34 = vst [vmem:[%s1] sm:%s33] %v32

// kernel: net_forward.1
$region0: #{net_forward.1}
  #allocation0 [shape = 'u32[]', space=smem, size = 0x4, offset = 0x4, fixed_abs, tag = 'smem constant byte address 0x4 - core index']
  #allocation1 [shape = 'u32[144,128]{1,0:T(1,128)}', space=vmem, size = 0x12000, scoped, tag = 'internal scratch']
  %s0 = inlined_call_operand.vmem [shape: f32[512,256], index: 0, kind: input, shape index: {}]
  %s1 = inlined_call_operand.vmem [shape: f32[256,1024], index: 1, kind: input, shape index: {}]
  %s2 = inlined_call_operand.vmem [shape: f32[1,256], index: 2, kind: input, shape index: {}]
  %s3 = inlined_call_operand.vmem [shape: f32[3,256,512], index: 3, kind: input, shape index: {}]
  %s4 = inlined_call_operand.vmem [shape: f32[1,128], index: 4, kind: input, shape index: {}]
  %s5 = inlined_call_operand.vmem [shape: f32[5,128,128], index: 5, kind: input, shape index: {}]
  %s6 = inlined_call_operand.vmem [shape: f32[1,128], index: 6, kind: input, shape index: {}]
  %s7 = inlined_call_operand.vmem [shape: f32[128,128], index: 7, kind: input, shape index: {}]
  %s8 = inlined_call_operand.vmem [shape: f32[1,128], index: 8, kind: input, shape index: {}]
  %s9 = inlined_call_operand.vmem [shape: f32[128,128], index: 9, kind: input, shape index: {}]
  %s10 = inlined_call_operand.vmem [shape: f32[1,128], index: 10, kind: input, shape index: {}]
  %s11 = inlined_call_operand.vmem [shape: f32[64,128], index: 11, kind: output, shape index: {}]
  %s12 = sld [smem:[#allocation0]]
  $region77: #{net_forward.1} parent=0
    _
  %s14 = ssub.s32 1, %s12
  %s15 = scalar_select 0, %s14, %s12
  loop: start=0, step=1, limit=4
  $region2: #{net_forward.1} parent=0 // loop_pre_header
    _
  $region3: #{net_forward.1} parent=0 // loop_header
    %s17 = sphi 0, %s21
    %p18 = scmp.ge.s32.totalorder %s17, 4
    %s27 = sphi 0, %s29
    %s30 = sphi 0, %s27
    %s31 = sphi 0, %s30
    %s47 = sphi 0, %s31
    %s51 = sphi 0, %s51
    %s53 = sphi 0, %s51
    %s54 = sphi 0, %s53
    %s68 = sphi 0, %s54
    %s72 = sphi 0, %s72
    %s74 = sphi 0, %s72
    %s75 = sphi 0, %s74
    %s89 = sphi 0, %s75
    %s93 = sphi 0, %s93
    %s95 = sphi 0, %s93
    %s96 = sphi 0, %s95
    %s110 = sphi 0, %s96
    %s114 = sphi 0, %s114
    %s116 = sphi 0, %s114
    %s117 = sphi 0, %s116
    %s131 = sphi 0, %s117
    %s135 = sphi 0, %s135
    %s137 = sphi 0, %s135
    %s138 = sphi 0, %s137
    %s152 = sphi 0, %s138
    %s156 = sphi 0, %s156
    %s158 = sphi 0, %s156
    %s159 = sphi 0, %s158
    %s173 = sphi 0, %s159
    %s177 = sphi 0, %s177
    %s179 = sphi 0, %s177
    %s180 = sphi 0, %s179
    %s194 = sphi 0, %s180
    %s198 = sphi 0, %s198
    %s200 = sphi 0, %s198
    %s201 = sphi 0, %s200
    %s215 = sphi 0, %s201
    %s219 = sphi 0, %s219
    %s221 = sphi 0, %s219
    %s222 = sphi 0, %s221
    %s236 = sphi 0, %s222
    %s240 = sphi 0, %s240
    %s242 = sphi 0, %s240
    %s243 = sphi 0, %s242
    %s257 = sphi 0, %s243
    %s263 = sphi 0, %s265
    %s266 = sphi 0, %s263
    %s267 = sphi 0, %s266
    %s283 = sphi 0, %s267
  $region4: #{net_forward.1} parent=0 // loop_header_branch
    %20 = sbr.rel (%p18) target = $region8
  $region5: #{net_forward.1} parent=0 // loop_body
    %s22 = ssub.s32 %s17, 1
    %s23 = ssub.s32 %s17, 2
    %s24 = sadd.s32 %s17, 1
    %s25 = ssub.s32 %s17, %s24
    %p26 = scmp.eq.s32.totalorder %s25, 0
    %s28 = sadd.s32 %s27, 1
    %s29 = scalar_select %p26, %s27, %s28
    %p32 = pneg %p26
    %p33 = scmp.eq.s32.totalorder %s17, 1
    %p34 = por %p32, %p33
    %p35 = scmp.ne.s32.totalorder %s27, %s30
    %p36 = scmp.eq.s32.totalorder %s17, 0
    %p37 = por %p35, %p36
    %p38 = scmp.ne.s32.totalorder %s27, %s30
    %p39 = scmp.eq.s32.totalorder %s22, 1
    %p40 = por %p38, %p39
    %p41 = scmp.ne.s32.totalorder %s30, %s31
    %p42 = scmp.eq.s32.totalorder %s22, 0
    %p43 = por %p41, %p42
    %p44 = scmp.ne.s32.totalorder %s30, %s31
    %p45 = scmp.eq.s32.totalorder %s23, 1
    %p46 = por %p44, %p45
    %p48 = scmp.ne.s32.totalorder %s31, %s47
    %p49 = scmp.eq.s32.totalorder %s23, 0
    %p50 = por %p48, %p49
    %s52 = sadd.s32 %s51, 1
    %p55 = scmp.eq.s32.totalorder %s17, 1
    %p56 = scmp.ne.s32.totalorder %s51, %s53
    %p57 = scmp.eq.s32.totalorder %s17, 0
    %p58 = por %p56, %p57
    %p59 = scmp.ne.s32.totalorder %s51, %s53
    %p60 = scmp.eq.s32.totalorder %s22, 1
    %p61 = por %p59, %p60
    %p62 = scmp.ne.s32.totalorder %s53, %s54
    %p63 = scmp.eq.s32.totalorder %s22, 0
    %p64 = por %p62, %p63
    %p65 = scmp.ne.s32.totalorder %s53, %s54
    %p66 = scmp.eq.s32.totalorder %s23, 1
    %p67 = por %p65, %p66
    %p69 = scmp.ne.s32.totalorder %s54, %s68
    %p70 = scmp.eq.s32.totalorder %s23, 0
    %p71 = por %p69, %p70
    %s73 = sadd.s32 %s72, 1
    %p76 = scmp.eq.s32.totalorder %s17, 1
    %p77 = scmp.ne.s32.totalorder %s72, %s74
    %p78 = scmp.eq.s32.totalorder %s17, 0
    %p79 = por %p77, %p78
    %p80 = scmp.ne.s32.totalorder %s72, %s74
    %p81 = scmp.eq.s32.totalorder %s22, 1
    %p82 = por %p80, %p81
    %p83 = scmp.ne.s32.totalorder %s74, %s75
    %p84 = scmp.eq.s32.totalorder %s22, 0
    %p85 = por %p83, %p84
    %p86 = scmp.ne.s32.totalorder %s74, %s75
    %p87 = scmp.eq.s32.totalorder %s23, 1
    %p88 = por %p86, %p87
    %p90 = scmp.ne.s32.totalorder %s75, %s89
    %p91 = scmp.eq.s32.totalorder %s23, 0
    %p92 = por %p90, %p91
    %s94 = sadd.s32 %s93, 1
    %p97 = scmp.eq.s32.totalorder %s17, 1
    %p98 = scmp.ne.s32.totalorder %s93, %s95
    %p99 = scmp.eq.s32.totalorder %s17, 0
    %p100 = por %p98, %p99
    %p101 = scmp.ne.s32.totalorder %s93, %s95
    %p102 = scmp.eq.s32.totalorder %s22, 1
    %p103 = por %p101, %p102
    %p104 = scmp.ne.s32.totalorder %s95, %s96
    %p105 = scmp.eq.s32.totalorder %s22, 0
    %p106 = por %p104, %p105
    %p107 = scmp.ne.s32.totalorder %s95, %s96
    %p108 = scmp.eq.s32.totalorder %s23, 1
    %p109 = por %p107, %p108
    %p111 = scmp.ne.s32.totalorder %s96, %s110
    %p112 = scmp.eq.s32.totalorder %s23, 0
    %p113 = por %p111, %p112
    %s115 = sadd.s32 %s114, 1
    %p118 = scmp.eq.s32.totalorder %s17, 1
    %p119 = scmp.ne.s32.totalorder %s114, %s116
    %p120 = scmp.eq.s32.totalorder %s17, 0
    %p121 = por %p119, %p120
    %p122 = scmp.ne.s32.totalorder %s114, %s116
    %p123 = scmp.eq.s32.totalorder %s22, 1
    %p124 = por %p122, %p123
    %p125 = scmp.ne.s32.totalorder %s116, %s117
    %p126 = scmp.eq.s32.totalorder %s22, 0
    %p127 = por %p125, %p126
    %p128 = scmp.ne.s32.totalorder %s116, %s117
    %p129 = scmp.eq.s32.totalorder %s23, 1
    %p130 = por %p128, %p129
    %p132 = scmp.ne.s32.totalorder %s117, %s131
    %p133 = scmp.eq.s32.totalorder %s23, 0
    %p134 = por %p132, %p133
    %s136 = sadd.s32 %s135, 1
    %p139 = scmp.eq.s32.totalorder %s17, 1
    %p140 = scmp.ne.s32.totalorder %s135, %s137
    %p141 = scmp.eq.s32.totalorder %s17, 0
    %p142 = por %p140, %p141
    %p143 = scmp.ne.s32.totalorder %s135, %s137
    %p144 = scmp.eq.s32.totalorder %s22, 1
    %p145 = por %p143, %p144
    %p146 = scmp.ne.s32.totalorder %s137, %s138
    %p147 = scmp.eq.s32.totalorder %s22, 0
    %p148 = por %p146, %p147
    %p149 = scmp.ne.s32.totalorder %s137, %s138
    %p150 = scmp.eq.s32.totalorder %s23, 1
    %p151 = por %p149, %p150
    %p153 = scmp.ne.s32.totalorder %s138, %s152
    %p154 = scmp.eq.s32.totalorder %s23, 0
    %p155 = por %p153, %p154
    %s157 = sadd.s32 %s156, 1
    %p160 = scmp.eq.s32.totalorder %s17, 1
    %p161 = scmp.ne.s32.totalorder %s156, %s158
    %p162 = scmp.eq.s32.totalorder %s17, 0
    %p163 = por %p161, %p162
    %p164 = scmp.ne.s32.totalorder %s156, %s158
    %p165 = scmp.eq.s32.totalorder %s22, 1
    %p166 = por %p164, %p165
    %p167 = scmp.ne.s32.totalorder %s158, %s159
    %p168 = scmp.eq.s32.totalorder %s22, 0
    %p169 = por %p167, %p168
    %p170 = scmp.ne.s32.totalorder %s158, %s159
    %p171 = scmp.eq.s32.totalorder %s23, 1
    %p172 = por %p170, %p171
    %p174 = scmp.ne.s32.totalorder %s159, %s173
    %p175 = scmp.eq.s32.totalorder %s23, 0
    %p176 = por %p174, %p175
    %s178 = sadd.s32 %s177, 1
    %p181 = scmp.eq.s32.totalorder %s17, 1
    %p182 = scmp.ne.s32.totalorder %s177, %s179
    %p183 = scmp.eq.s32.totalorder %s17, 0
    %p184 = por %p182, %p183
    %p185 = scmp.ne.s32.totalorder %s177, %s179
    %p186 = scmp.eq.s32.totalorder %s22, 1
    %p187 = por %p185, %p186
    %p188 = scmp.ne.s32.totalorder %s179, %s180
    %p189 = scmp.eq.s32.totalorder %s22, 0
    %p190 = por %p188, %p189
    %p191 = scmp.ne.s32.totalorder %s179, %s180
    %p192 = scmp.eq.s32.totalorder %s23, 1
    %p193 = por %p191, %p192
    %p195 = scmp.ne.s32.totalorder %s180, %s194
    %p196 = scmp.eq.s32.totalorder %s23, 0
    %p197 = por %p195, %p196
    %s199 = sadd.s32 %s198, 1
    %p202 = scmp.eq.s32.totalorder %s17, 1
    %p203 = scmp.ne.s32.totalorder %s198, %s200
    %p204 = scmp.eq.s32.totalorder %s17, 0
    %p205 = por %p203, %p204
    %p206 = scmp.ne.s32.totalorder %s198, %s200
    %p207 = scmp.eq.s32.totalorder %s22, 1
    %p208 = por %p206, %p207
    %p209 = scmp.ne.s32.totalorder %s200, %s201
    %p210 = scmp.eq.s32.totalorder %s22, 0
    %p211 = por %p209, %p210
    %p212 = scmp.ne.s32.totalorder %s200, %s201
    %p213 = scmp.eq.s32.totalorder %s23, 1
    %p214 = por %p212, %p213
    %p216 = scmp.ne.s32.totalorder %s201, %s215
    %p217 = scmp.eq.s32.totalorder %s23, 0
    %p218 = por %p216, %p217
    %s220 = sadd.s32 %s219, 1
    %p223 = scmp.eq.s32.totalorder %s17, 1
    %p224 = scmp.ne.s32.totalorder %s219, %s221
    %p225 = scmp.eq.s32.totalorder %s17, 0
    %p226 = por %p224, %p225
    %p227 = scmp.ne.s32.totalorder %s219, %s221
    %p228 = scmp.eq.s32.totalorder %s22, 1
    %p229 = por %p227, %p228
    %p230 = scmp.ne.s32.totalorder %s221, %s222
    %p231 = scmp.eq.s32.totalorder %s22, 0
    %p232 = por %p230, %p231
    %p233 = scmp.ne.s32.totalorder %s221, %s222
    %p234 = scmp.eq.s32.totalorder %s23, 1
    %p235 = por %p233, %p234
    %p237 = scmp.ne.s32.totalorder %s222, %s236
    %p238 = scmp.eq.s32.totalorder %s23, 0
    %p239 = por %p237, %p238
    %s241 = sadd.s32 %s240, 1
    %p244 = scmp.eq.s32.totalorder %s17, 1
    %p245 = scmp.ne.s32.totalorder %s240, %s242
    %p246 = scmp.eq.s32.totalorder %s17, 0
    %p247 = por %p245, %p246
    %p248 = scmp.ne.s32.totalorder %s240, %s242
    %p249 = scmp.eq.s32.totalorder %s22, 1
    %p250 = por %p248, %p249
    %p251 = scmp.ne.s32.totalorder %s242, %s243
    %p252 = scmp.eq.s32.totalorder %s22, 0
    %p253 = por %p251, %p252
    %p254 = scmp.ne.s32.totalorder %s242, %s243
    %p255 = scmp.eq.s32.totalorder %s23, 1
    %p256 = por %p254, %p255
    %p258 = scmp.ne.s32.totalorder %s243, %s257
    %p259 = scmp.eq.s32.totalorder %s23, 0
    %p260 = por %p258, %p259
    %s261 = ssub.s32 %s17, %s24
    %p262 = scmp.eq.s32.totalorder %s261, 0
    %s264 = sadd.s32 %s263, 1
    %s265 = scalar_select %p262, %s263, %s264
    %p268 = pneg %p262
    %p269 = scmp.eq.s32.totalorder %s17, 1
    %p270 = por %p268, %p269
    %p271 = scmp.ne.s32.totalorder %s263, %s266
    %p272 = scmp.eq.s32.totalorder %s17, 0
    %p273 = por %p271, %p272
    %p274 = scmp.ne.s32.totalorder %s263, %s266
    %p275 = scmp.eq.s32.totalorder %s22, 1
    %p276 = por %p274, %p275
    %p277 = scmp.ne.s32.totalorder %s266, %s267
    %p278 = scmp.eq.s32.totalorder %s22, 0
    %p279 = por %p277, %p278
    %p280 = scmp.ne.s32.totalorder %s266, %s267
    %p281 = scmp.eq.s32.totalorder %s23, 1
    %p282 = por %p280, %p281
    %p284 = scmp.ne.s32.totalorder %s267, %s283
    %p285 = scmp.eq.s32.totalorder %s23, 0
    %p286 = por %p284, %p285
    %p287 = scmp.le.s32.totalorder 1, %s17
    %p288 = scmp.lt.s32.totalorder %s17, 3
    %p289 = pnand %p287, %p288
    %p290 = pneg %p289
    // Predicated region
    $region9: #{net_forward.1} parent=5 // pred_check
      _
    $region10: #{net_forward.1} parent=5 // pred_check_branch
      %292 = sbr.rel (%p289) target = $region12
    $region11: #{net_forward.1} parent=5 // pred_region
      %s293 = ssub.s32 %s17, 1
      // Predicated region
      $region13: #{net_forward.1} parent=11 // pred_check
        %p294 = pneg %p64
      $region14: #{net_forward.1} parent=11 // pred_check_branch
        %296 = sbr.rel (%p294) target = $region16
      $region15: #{net_forward.1} parent=11 // pred_region
        _
      $region16: #{net_forward.1} parent=11 // pred_fallthru
        _
      // Predicated region
      $region17: #{net_forward.1} parent=11 // pred_check
        %p297 = pneg %p85
      $region18: #{net_forward.1} parent=11 // pred_check_branch
        %299 = sbr.rel (%p297) target = $region20
      $region19: #{net_forward.1} parent=11 // pred_region
        _
      $region20: #{net_forward.1} parent=11 // pred_fallthru
        _
      // Predicated region
      $region21: #{net_forward.1} parent=11 // pred_check
        %p300 = pneg %p106
      $region22: #{net_forward.1} parent=11 // pred_check_branch
        %302 = sbr.rel (%p300) target = $region24
      $region23: #{net_forward.1} parent=11 // pred_region
        _
      $region24: #{net_forward.1} parent=11 // pred_fallthru
        _
      // Predicated region
      $region25: #{net_forward.1} parent=11 // pred_check
        %p303 = pneg %p127
      $region26: #{net_forward.1} parent=11 // pred_check_branch
        %305 = sbr.rel (%p303) target = $region28
      $region27: #{net_forward.1} parent=11 // pred_region
        _
      $region28: #{net_forward.1} parent=11 // pred_fallthru
        _
      // Predicated region
      $region29: #{net_forward.1} parent=11 // pred_check
        %p306 = pneg %p148
      $region30: #{net_forward.1} parent=11 // pred_check_branch
        %308 = sbr.rel (%p306) target = $region32
      $region31: #{net_forward.1} parent=11 // pred_region
        _
      $region32: #{net_forward.1} parent=11 // pred_fallthru
        _
      // Predicated region
      $region33: #{net_forward.1} parent=11 // pred_check
        %p309 = pneg %p169
      $region34: #{net_forward.1} parent=11 // pred_check_branch
        %311 = sbr.rel (%p309) target = $region36
      $region35: #{net_forward.1} parent=11 // pred_region
        _
      $region36: #{net_forward.1} parent=11 // pred_fallthru
        _
      // Predicated region
      $region37: #{net_forward.1} parent=11 // pred_check
        %p312 = pneg %p190
      $region38: #{net_forward.1} parent=11 // pred_check_branch
        %314 = sbr.rel (%p312) target = $region40
      $region39: #{net_forward.1} parent=11 // pred_region
        _
      $region40: #{net_forward.1} parent=11 // pred_fallthru
        _
      // Predicated region
      $region41: #{net_forward.1} parent=11 // pred_check
        %p315 = pneg %p211
      $region42: #{net_forward.1} parent=11 // pred_check_branch
        %317 = sbr.rel (%p315) target = $region44
      $region43: #{net_forward.1} parent=11 // pred_region
        _
      $region44: #{net_forward.1} parent=11 // pred_fallthru
        _
      // Predicated region
      $region45: #{net_forward.1} parent=11 // pred_check
        %p318 = pneg %p232
      $region46: #{net_forward.1} parent=11 // pred_check_branch
        %320 = sbr.rel (%p318) target = $region48
      $region47: #{net_forward.1} parent=11 // pred_region
        _
      $region48: #{net_forward.1} parent=11 // pred_fallthru
        _
      // Predicated region
      $region49: #{net_forward.1} parent=11 // pred_check
        %p321 = pneg %p253
      $region50: #{net_forward.1} parent=11 // pred_check_branch
        %323 = sbr.rel (%p321) target = $region52
      $region51: #{net_forward.1} parent=11 // pred_region
        _
      $region52: #{net_forward.1} parent=11 // pred_fallthru
        _
    $region12: #{net_forward.1} parent=5 // pred_fallthru
      _
    %p324 = scmp.lt.s32.totalorder %s17, 2
    // Predicated region
    $region53: #{net_forward.1} parent=5 // pred_check
      %p325 = pneg %p324
    $region54: #{net_forward.1} parent=5 // pred_check_branch
      %327 = sbr.rel (%p325) target = $region56
    $region55: #{net_forward.1} parent=5 // pred_region
      // Predicated region
      $region57: #{net_forward.1} parent=55 // pred_check
        %p328 = pneg %p37
      $region58: #{net_forward.1} parent=55 // pred_check_branch
        %330 = sbr.rel (%p328) target = $region60
      $region59: #{net_forward.1} parent=55 // pred_region
        %s331 = smul.u32 32, %s17
        %p332 = scmp.lt.s32.totalorder %s331, 63
        %s333 = scalar_select %p332, %s331, 63
        %s334 = smul.addr %s333, 2
        %s335 = smul.addr %s334, 8
        %s336 = scalar_lea.vmem %s0, %s335
        %s337 = smul.u32 32, %s17
      $region60: #{net_forward.1} parent=55 // pred_fallthru
        _
    $region56: #{net_forward.1} parent=5 // pred_fallthru
      _
    %p338 = scmp.le.s32.totalorder 1, %s17
    %p339 = scmp.lt.s32.totalorder %s17, 3
    %p340 = pnand %p338, %p339
    %p341 = pneg %p340
    // Predicated region
    $region61: #{net_forward.1} parent=5 // pred_check
      _
    $region62: #{net_forward.1} parent=5 // pred_check_branch
      %343 = sbr.rel (%p340) target = $region64
    $region63: #{net_forward.1} parent=5 // pred_region
      %s344 = ssub.s32 %s17, 1
      %s345 = smul.u32 32, %s22
      %p346 = scmp.lt.s32.totalorder %s345, 63
      %s347 = scalar_select %p346, %s345, 63
      %s348 = smul.addr %s347, 2
      %s349 = smul.addr %s348, 8
      %s350 = scalar_lea.vmem %s0, %s349
      %p351 = pneg %p43
      %p352 = pneg %p40
      %p353 = pneg %p64
      %p354 = pneg %p61
      %p355 = pneg %p85
      %p356 = pneg %p82
      %p357 = pneg %p106
      %p358 = pneg %p103
      %p359 = pneg %p127
      %p360 = pneg %p124
      %p361 = pneg %p148
      %p362 = pneg %p145
      %p363 = pneg %p169
      %p364 = pneg %p166
      %p365 = pneg %p190
      %p366 = pneg %p187
      %p367 = pneg %p211
      %p368 = pneg %p208
      %p369 = pneg %p232
      %p370 = pneg %p229
      %p371 = pneg %p253
      %p372 = pneg %p250
      %p373 = pneg %p279
      %p374 = pneg %p276
      %s375 = smul.u32 4, %s22
      %p376 = scmp.lt.s32.totalorder %s375, 7
      %s377 = scalar_select %p376, %s375, 7
      %s378 = smul.addr %s377, 8
      %s379 = scalar_lea.vmem %s11, %s378
      %s380 = smul.u32 32, %s22
      %p381 = scmp.lt.s32.totalorder %s380, 63
      %s382 = scalar_select %p381, %s380, 63
      %s383 = smul.addr %s382, 2
      %s384 = smul.addr %s383, 8
      %s385 = scalar_lea.vmem %s0, %s384
      %s386 = smul.u32 32, %s22
      %s387 = smul.u32 4, %s22
      %p388 = scmp.lt.s32.totalorder %s387, 7
      %s389 = scalar_select %p388, %s387, 7
      %s390 = smul.addr %s389, 8
      %s391 = scalar_lea.vmem %s11, %s390
      %s392 = smul.u32 4, %s22
      %v393 = vld [vmem:[%s385] sm:$0xff]
      %v394 = vld [vmem:[%s385 + $0x8] sm:$0xff]
      %v395 = vld [vmem:[%s385 + $0x10] sm:$0xff]
      %v396 = vld [vmem:[%s385 + $0x18] sm:$0xff]
      %v397 = vld [vmem:[%s385 + $0x20] sm:$0xff]
      %v398 = vld [vmem:[%s385 + $0x28] sm:$0xff]
      %v399 = vld [vmem:[%s385 + $0x30] sm:$0xff]
      %v400 = vld [vmem:[%s385 + $0x38] sm:$0xff]
      %v401 = vld [vmem:[%s385 + $0x40] sm:$0xff]
      %v402 = vld [vmem:[%s385 + $0x48] sm:$0xff]
      %v403 = vld [vmem:[%s385 + $0x50] sm:$0xff]
      %v404 = vld [vmem:[%s385 + $0x58] sm:$0xff]
      %v405 = vld [vmem:[%s385 + $0x60] sm:$0xff]
      %v406 = vld [vmem:[%s385 + $0x68] sm:$0xff]
      %v407 = vld [vmem:[%s385 + $0x70] sm:$0xff]
      %v408 = vld [vmem:[%s385 + $0x78] sm:$0xff]
      %v409 = vld [vmem:[%s385 + $0x80] sm:$0xff]
      %v410 = vld [vmem:[%s385 + $0x88] sm:$0xff]
      %v411 = vld [vmem:[%s385 + $0x90] sm:$0xff]
      %v412 = vld [vmem:[%s385 + $0x98] sm:$0xff]
      %v413 = vld [vmem:[%s385 + $0xa0] sm:$0xff]
      %v414 = vld [vmem:[%s385 + $0xa8] sm:$0xff]
      %v415 = vld [vmem:[%s385 + $0xb0] sm:$0xff]
      %v416 = vld [vmem:[%s385 + $0xb8] sm:$0xff]
      %v417 = vld [vmem:[%s385 + $0xc0] sm:$0xff]
      %v418 = vld [vmem:[%s385 + $0xc8] sm:$0xff]
      %v419 = vld [vmem:[%s385 + $0xd0] sm:$0xff]
      %v420 = vld [vmem:[%s385 + $0xd8] sm:$0xff]
      %v421 = vld [vmem:[%s385 + $0xe0] sm:$0xff]
      %v422 = vld [vmem:[%s385 + $0xe8] sm:$0xff]
      %v423 = vld [vmem:[%s385 + $0xf0] sm:$0xff]
      %v424 = vld [vmem:[%s385 + $0xf8] sm:$0xff]
      %v425 = vld [vmem:[%s385 + $0x100] sm:$0xff]
      %v426 = vld [vmem:[%s385 + $0x108] sm:$0xff]
      %v427 = vld [vmem:[%s385 + $0x110] sm:$0xff]
      %v428 = vld [vmem:[%s385 + $0x118] sm:$0xff]
      %v429 = vld [vmem:[%s385 + $0x120] sm:$0xff]
      %v430 = vld [vmem:[%s385 + $0x128] sm:$0xff]
      %v431 = vld [vmem:[%s385 + $0x130] sm:$0xff]
      %v432 = vld [vmem:[%s385 + $0x138] sm:$0xff]
      %v433 = vld [vmem:[%s385 + $0x140] sm:$0xff]
      %v434 = vld [vmem:[%s385 + $0x148] sm:$0xff]
      %v435 = vld [vmem:[%s385 + $0x150] sm:$0xff]
      %v436 = vld [vmem:[%s385 + $0x158] sm:$0xff]
      %v437 = vld [vmem:[%s385 + $0x160] sm:$0xff]
      %v438 = vld [vmem:[%s385 + $0x168] sm:$0xff]
      %v439 = vld [vmem:[%s385 + $0x170] sm:$0xff]
      %v440 = vld [vmem:[%s385 + $0x178] sm:$0xff]
      %v441 = vld [vmem:[%s385 + $0x180] sm:$0xff]
      %v442 = vld [vmem:[%s385 + $0x188] sm:$0xff]
      %v443 = vld [vmem:[%s385 + $0x190] sm:$0xff]
      %v444 = vld [vmem:[%s385 + $0x198] sm:$0xff]
      %v445 = vld [vmem:[%s385 + $0x1a0] sm:$0xff]
      %v446 = vld [vmem:[%s385 + $0x1a8] sm:$0xff]
      %v447 = vld [vmem:[%s385 + $0x1b0] sm:$0xff]
      %v448 = vld [vmem:[%s385 + $0x1b8] sm:$0xff]
      %v449 = vld [vmem:[%s385 + $0x1c0] sm:$0xff]
      %v450 = vld [vmem:[%s385 + $0x1c8] sm:$0xff]
      %v451 = vld [vmem:[%s385 + $0x1d0] sm:$0xff]
      %v452 = vld [vmem:[%s385 + $0x1d8] sm:$0xff]
      %v453 = vld [vmem:[%s385 + $0x1e0] sm:$0xff]
      %v454 = vld [vmem:[%s385 + $0x1e8] sm:$0xff]
      %v455 = vld [vmem:[%s385 + $0x1f0] sm:$0xff]
      %v456 = vld [vmem:[%s385 + $0x1f8] sm:$0xff]
      %v457 = vld [vmem:[%s1] sm:$0xff]
      %v458 = vld [vmem:[%s1 + $0x8] sm:$0xff]
      %v459 = vld [vmem:[%s1 + $0x10] sm:$0xff]
      %v460 = vld [vmem:[%s1 + $0x18] sm:$0xff]
      %v461 = vld [vmem:[%s1 + $0x20] sm:$0xff]
      %v462 = vld [vmem:[%s1 + $0x28] sm:$0xff]
      %v463 = vld [vmem:[%s1 + $0x30] sm:$0xff]
      %v464 = vld [vmem:[%s1 + $0x38] sm:$0xff]
      %v465 = vld [vmem:[%s1 + $0x40] sm:$0xff]
      %v466 = vld [vmem:[%s1 + $0x48] sm:$0xff]
      %v467 = vld [vmem:[%s1 + $0x50] sm:$0xff]
      %v468 = vld [vmem:[%s1 + $0x58] sm:$0xff]
      %v469 = vld [vmem:[%s1 + $0x60] sm:$0xff]
      %v470 = vld [vmem:[%s1 + $0x68] sm:$0xff]
      %v471 = vld [vmem:[%s1 + $0x70] sm:$0xff]
      %v472 = vld [vmem:[%s1 + $0x78] sm:$0xff]
      %v473 = vld [vmem:[%s1 + $0x80] sm:$0xff]
      %v474 = vld [vmem:[%s1 + $0x88] sm:$0xff]
      %v475 = vld [vmem:[%s1 + $0x90] sm:$0xff]
      %v476 = vld [vmem:[%s1 + $0x98] sm:$0xff]
      %v477 = vld [vmem:[%s1 + $0xa0] sm:$0xff]
      %v478 = vld [vmem:[%s1 + $0xa8] sm:$0xff]
      %v479 = vld [vmem:[%s1 + $0xb0] sm:$0xff]
      %v480 = vld [vmem:[%s1 + $0xb8] sm:$0xff]
      %v481 = vld [vmem:[%s1 + $0xc0] sm:$0xff]
      %v482 = vld [vmem:[%s1 + $0xc8] sm:$0xff]
      %v483 = vld [vmem:[%s1 + $0xd0] sm:$0xff]
      %v484 = vld [vmem:[%s1 + $0xd8] sm:$0xff]
      %v485 = vld [vmem:[%s1 + $0xe0] sm:$0xff]
      %v486 = vld [vmem:[%s1 + $0xe8] sm:$0xff]
      %v487 = vld [vmem:[%s1 + $0xf0] sm:$0xff]
      %v488 = vld [vmem:[%s1 + $0xf8] sm:$0xff]
      %v489 = vld [vmem:[%s1 + $0x100] sm:$0xff]
      %v490 = vld [vmem:[%s1 + $0x108] sm:$0xff]
      %v491 = vld [vmem:[%s1 + $0x110] sm:$0xff]
      %v492 = vld [vmem:[%s1 + $0x118] sm:$0xff]
      %v493 = vld [vmem:[%s1 + $0x120] sm:$0xff]
      %v494 = vld [vmem:[%s1 + $0x128] sm:$0xff]
      %v495 = vld [vmem:[%s1 + $0x130] sm:$0xff]
      %v496 = vld [vmem:[%s1 + $0x138] sm:$0xff]
      %v497 = vld [vmem:[%s1 + $0x140] sm:$0xff]
      %v498 = vld [vmem:[%s1 + $0x148] sm:$0xff]
      %v499 = vld [vmem:[%s1 + $0x150] sm:$0xff]
      %v500 = vld [vmem:[%s1 + $0x158] sm:$0xff]
      %v501 = vld [vmem:[%s1 + $0x160] sm:$0xff]
      %v502 = vld [vmem:[%s1 + $0x168] sm:$0xff]
      %v503 = vld [vmem:[%s1 + $0x170] sm:$0xff]
      %v504 = vld [vmem:[%s1 + $0x178] sm:$0xff]
      %v505 = vld [vmem:[%s1 + $0x180] sm:$0xff]
      %v506 = vld [vmem:[%s1 + $0x188] sm:$0xff]
      %v507 = vld [vmem:[%s1 + $0x190] sm:$0xff]
      %v508 = vld [vmem:[%s1 + $0x198] sm:$0xff]
      %v509 = vld [vmem:[%s1 + $0x1a0] sm:$0xff]
      %v510 = vld [vmem:[%s1 + $0x1a8] sm:$0xff]
      %v511 = vld [vmem:[%s1 + $0x1b0] sm:$0xff]
      %v512 = vld [vmem:[%s1 + $0x1b8] sm:$0xff]
      %v513 = vld [vmem:[%s1 + $0x1c0] sm:$0xff]
      %v514 = vld [vmem:[%s1 + $0x1c8] sm:$0xff]
      %v515 = vld [vmem:[%s1 + $0x1d0] sm:$0xff]
      %v516 = vld [vmem:[%s1 + $0x1d8] sm:$0xff]
      %v517 = vld [vmem:[%s1 + $0x1e0] sm:$0xff]
      %v518 = vld [vmem:[%s1 + $0x1e8] sm:$0xff]
      %v519 = vld [vmem:[%s1 + $0x1f0] sm:$0xff]
      %v520 = vld [vmem:[%s1 + $0x1f8] sm:$0xff]
      %v521 = vld [vmem:[%s1 + $0x200] sm:$0xff]
      %v522 = vld [vmem:[%s1 + $0x208] sm:$0xff]
      %v523 = vld [vmem:[%s1 + $0x210] sm:$0xff]
      %v524 = vld [vmem:[%s1 + $0x218] sm:$0xff]
      %v525 = vld [vmem:[%s1 + $0x220] sm:$0xff]
      %v526 = vld [vmem:[%s1 + $0x228] sm:$0xff]
      %v527 = vld [vmem:[%s1 + $0x230] sm:$0xff]
      %v528 = vld [vmem:[%s1 + $0x238] sm:$0xff]
      %v529 = vld [vmem:[%s1 + $0x240] sm:$0xff]
      %v530 = vld [vmem:[%s1 + $0x248] sm:$0xff]
      %v531 = vld [vmem:[%s1 + $0x250] sm:$0xff]
      %v532 = vld [vmem:[%s1 + $0x258] sm:$0xff]
      %v533 = vld [vmem:[%s1 + $0x260] sm:$0xff]
      %v534 = vld [vmem:[%s1 + $0x268] sm:$0xff]
      %v535 = vld [vmem:[%s1 + $0x270] sm:$0xff]
      %v536 = vld [vmem:[%s1 + $0x278] sm:$0xff]
      %v537 = vld [vmem:[%s1 + $0x280] sm:$0xff]
      %v538 = vld [vmem:[%s1 + $0x288] sm:$0xff]
      %v539 = vld [vmem:[%s1 + $0x290] sm:$0xff]
      %v540 = vld [vmem:[%s1 + $0x298] sm:$0xff]
      %v541 = vld [vmem:[%s1 + $0x2a0] sm:$0xff]
      %v542 = vld [vmem:[%s1 + $0x2a8] sm:$0xff]
      %v543 = vld [vmem:[%s1 + $0x2b0] sm:$0xff]
      %v544 = vld [vmem:[%s1 + $0x2b8] sm:$0xff]
      %v545 = vld [vmem:[%s1 + $0x2c0] sm:$0xff]
      %v546 = vld [vmem:[%s1 + $0x2c8] sm:$0xff]
      %v547 = vld [vmem:[%s1 + $0x2d0] sm:$0xff]
      %v548 = vld [vmem:[%s1 + $0x2d8] sm:$0xff]
      %v549 = vld [vmem:[%s1 + $0x2e0] sm:$0xff]
      %v550 = vld [vmem:[%s1 + $0x2e8] sm:$0xff]
      %v551 = vld [vmem:[%s1 + $0x2f0] sm:$0xff]
      %v552 = vld [vmem:[%s1 + $0x2f8] sm:$0xff]
      %v553 = vld [vmem:[%s1 + $0x300] sm:$0xff]
      %v554 = vld [vmem:[%s1 + $0x308] sm:$0xff]
      %v555 = vld [vmem:[%s1 + $0x310] sm:$0xff]
      %v556 = vld [vmem:[%s1 + $0x318] sm:$0xff]
      %v557 = vld [vmem:[%s1 + $0x320] sm:$0xff]
      %v558 = vld [vmem:[%s1 + $0x328] sm:$0xff]
      %v559 = vld [vmem:[%s1 + $0x330] sm:$0xff]
      %v560 = vld [vmem:[%s1 + $0x338] sm:$0xff]
      %v561 = vld [vmem:[%s1 + $0x340] sm:$0xff]
      %v562 = vld [vmem:[%s1 + $0x348] sm:$0xff]
      %v563 = vld [vmem:[%s1 + $0x350] sm:$0xff]
      %v564 = vld [vmem:[%s1 + $0x358] sm:$0xff]
      %v565 = vld [vmem:[%s1 + $0x360] sm:$0xff]
      %v566 = vld [vmem:[%s1 + $0x368] sm:$0xff]
      %v567 = vld [vmem:[%s1 + $0x370] sm:$0xff]
      %v568 = vld [vmem:[%s1 + $0x378] sm:$0xff]
      %v569 = vld [vmem:[%s1 + $0x380] sm:$0xff]
      %v570 = vld [vmem:[%s1 + $0x388] sm:$0xff]
      %v571 = vld [vmem:[%s1 + $0x390] sm:$0xff]
      %v572 = vld [vmem:[%s1 + $0x398] sm:$0xff]
      %v573 = vld [vmem:[%s1 + $0x3a0] sm:$0xff]
      %v574 = vld [vmem:[%s1 + $0x3a8] sm:$0xff]
      %v575 = vld [vmem:[%s1 + $0x3b0] sm:$0xff]
      %v576 = vld [vmem:[%s1 + $0x3b8] sm:$0xff]
      %v577 = vld [vmem:[%s1 + $0x3c0] sm:$0xff]
      %v578 = vld [vmem:[%s1 + $0x3c8] sm:$0xff]
      %v579 = vld [vmem:[%s1 + $0x3d0] sm:$0xff]
      %v580 = vld [vmem:[%s1 + $0x3d8] sm:$0xff]
      %v581 = vld [vmem:[%s1 + $0x3e0] sm:$0xff]
      %v582 = vld [vmem:[%s1 + $0x3e8] sm:$0xff]
      %v583 = vld [vmem:[%s1 + $0x3f0] sm:$0xff]
      %v584 = vld [vmem:[%s1 + $0x3f8] sm:$0xff]
      %v585 = vld [vmem:[%s1 + $0x400] sm:$0xff]
      %v586 = vld [vmem:[%s1 + $0x408] sm:$0xff]
      %v587 = vld [vmem:[%s1 + $0x410] sm:$0xff]
      %v588 = vld [vmem:[%s1 + $0x418] sm:$0xff]
      %v589 = vld [vmem:[%s1 + $0x420] sm:$0xff]
      %v590 = vld [vmem:[%s1 + $0x428] sm:$0xff]
      %v591 = vld [vmem:[%s1 + $0x430] sm:$0xff]
      %v592 = vld [vmem:[%s1 + $0x438] sm:$0xff]
      %v593 = vld [vmem:[%s1 + $0x440] sm:$0xff]
      %v594 = vld [vmem:[%s1 + $0x448] sm:$0xff]
      %v595 = vld [vmem:[%s1 + $0x450] sm:$0xff]
      %v596 = vld [vmem:[%s1 + $0x458] sm:$0xff]
      %v597 = vld [vmem:[%s1 + $0x460] sm:$0xff]
      %v598 = vld [vmem:[%s1 + $0x468] sm:$0xff]
      %v599 = vld [vmem:[%s1 + $0x470] sm:$0xff]
      %v600 = vld [vmem:[%s1 + $0x478] sm:$0xff]
      %v601 = vld [vmem:[%s1 + $0x480] sm:$0xff]
      %v602 = vld [vmem:[%s1 + $0x488] sm:$0xff]
      %v603 = vld [vmem:[%s1 + $0x490] sm:$0xff]
      %v604 = vld [vmem:[%s1 + $0x498] sm:$0xff]
      %v605 = vld [vmem:[%s1 + $0x4a0] sm:$0xff]
      %v606 = vld [vmem:[%s1 + $0x4a8] sm:$0xff]
      %v607 = vld [vmem:[%s1 + $0x4b0] sm:$0xff]
      %v608 = vld [vmem:[%s1 + $0x4b8] sm:$0xff]
      %v609 = vld [vmem:[%s1 + $0x4c0] sm:$0xff]
      %v610 = vld [vmem:[%s1 + $0x4c8] sm:$0xff]
      %v611 = vld [vmem:[%s1 + $0x4d0] sm:$0xff]
      %v612 = vld [vmem:[%s1 + $0x4d8] sm:$0xff]
      %v613 = vld [vmem:[%s1 + $0x4e0] sm:$0xff]
      %v614 = vld [vmem:[%s1 + $0x4e8] sm:$0xff]
      %v615 = vld [vmem:[%s1 + $0x4f0] sm:$0xff]
      %v616 = vld [vmem:[%s1 + $0x4f8] sm:$0xff]
      %v617 = vld [vmem:[%s1 + $0x500] sm:$0xff]
      %v618 = vld [vmem:[%s1 + $0x508] sm:$0xff]
      %v619 = vld [vmem:[%s1 + $0x510] sm:$0xff]
      %v620 = vld [vmem:[%s1 + $0x518] sm:$0xff]
      %v621 = vld [vmem:[%s1 + $0x520] sm:$0xff]
      %v622 = vld [vmem:[%s1 + $0x528] sm:$0xff]
      %v623 = vld [vmem:[%s1 + $0x530] sm:$0xff]
      %v624 = vld [vmem:[%s1 + $0x538] sm:$0xff]
      %v625 = vld [vmem:[%s1 + $0x540] sm:$0xff]
      %v626 = vld [vmem:[%s1 + $0x548] sm:$0xff]
      %v627 = vld [vmem:[%s1 + $0x550] sm:$0xff]
      %v628 = vld [vmem:[%s1 + $0x558] sm:$0xff]
      %v629 = vld [vmem:[%s1 + $0x560] sm:$0xff]
      %v630 = vld [vmem:[%s1 + $0x568] sm:$0xff]
      %v631 = vld [vmem:[%s1 + $0x570] sm:$0xff]
      %v632 = vld [vmem:[%s1 + $0x578] sm:$0xff]
      %v633 = vld [vmem:[%s1 + $0x580] sm:$0xff]
      %v634 = vld [vmem:[%s1 + $0x588] sm:$0xff]
      %v635 = vld [vmem:[%s1 + $0x590] sm:$0xff]
      %v636 = vld [vmem:[%s1 + $0x598] sm:$0xff]
      %v637 = vld [vmem:[%s1 + $0x5a0] sm:$0xff]
      %v638 = vld [vmem:[%s1 + $0x5a8] sm:$0xff]
      %v639 = vld [vmem:[%s1 + $0x5b0] sm:$0xff]
      %v640 = vld [vmem:[%s1 + $0x5b8] sm:$0xff]
      %v641 = vld [vmem:[%s1 + $0x5c0] sm:$0xff]
      %v642 = vld [vmem:[%s1 + $0x5c8] sm:$0xff]
      %v643 = vld [vmem:[%s1 + $0x5d0] sm:$0xff]
      %v644 = vld [vmem:[%s1 + $0x5d8] sm:$0xff]
      %v645 = vld [vmem:[%s1 + $0x5e0] sm:$0xff]
      %v646 = vld [vmem:[%s1 + $0x5e8] sm:$0xff]
      %v647 = vld [vmem:[%s1 + $0x5f0] sm:$0xff]
      %v648 = vld [vmem:[%s1 + $0x5f8] sm:$0xff]
      %v649 = vld [vmem:[%s1 + $0x600] sm:$0xff]
      %v650 = vld [vmem:[%s1 + $0x608] sm:$0xff]
      %v651 = vld [vmem:[%s1 + $0x610] sm:$0xff]
      %v652 = vld [vmem:[%s1 + $0x618] sm:$0xff]
      %v653 = vld [vmem:[%s1 + $0x620] sm:$0xff]
      %v654 = vld [vmem:[%s1 + $0x628] sm:$0xff]
      %v655 = vld [vmem:[%s1 + $0x630] sm:$0xff]
      %v656 = vld [vmem:[%s1 + $0x638] sm:$0xff]
      %v657 = vld [vmem:[%s1 + $0x640] sm:$0xff]
      %v658 = vld [vmem:[%s1 + $0x648] sm:$0xff]
      %v659 = vld [vmem:[%s1 + $0x650] sm:$0xff]
      %v660 = vld [vmem:[%s1 + $0x658] sm:$0xff]
      %v661 = vld [vmem:[%s1 + $0x660] sm:$0xff]
      %v662 = vld [vmem:[%s1 + $0x668] sm:$0xff]
      %v663 = vld [vmem:[%s1 + $0x670] sm:$0xff]
      %v664 = vld [vmem:[%s1 + $0x678] sm:$0xff]
      %v665 = vld [vmem:[%s1 + $0x680] sm:$0xff]
      %v666 = vld [vmem:[%s1 + $0x688] sm:$0xff]
      %v667 = vld [vmem:[%s1 + $0x690] sm:$0xff]
      %v668 = vld [vmem:[%s1 + $0x698] sm:$0xff]
      %v669 = vld [vmem:[%s1 + $0x6a0] sm:$0xff]
      %v670 = vld [vmem:[%s1 + $0x6a8] sm:$0xff]
      %v671 = vld [vmem:[%s1 + $0x6b0] sm:$0xff]
      %v672 = vld [vmem:[%s1 + $0x6b8] sm:$0xff]
      %v673 = vld [vmem:[%s1 + $0x6c0] sm:$0xff]
      %v674 = vld [vmem:[%s1 + $0x6c8] sm:$0xff]
      %v675 = vld [vmem:[%s1 + $0x6d0] sm:$0xff]
      %v676 = vld [vmem:[%s1 + $0x6d8] sm:$0xff]
      %v677 = vld [vmem:[%s1 + $0x6e0] sm:$0xff]
      %v678 = vld [vmem:[%s1 + $0x6e8] sm:$0xff]
      %v679 = vld [vmem:[%s1 + $0x6f0] sm:$0xff]
      %v680 = vld [vmem:[%s1 + $0x6f8] sm:$0xff]
      %v681 = vld [vmem:[%s1 + $0x700] sm:$0xff]
      %v682 = vld [vmem:[%s1 + $0x708] sm:$0xff]
      %v683 = vld [vmem:[%s1 + $0x710] sm:$0xff]
      %v684 = vld [vmem:[%s1 + $0x718] sm:$0xff]
      %v685 = vld [vmem:[%s1 + $0x720] sm:$0xff]
      %v686 = vld [vmem:[%s1 + $0x728] sm:$0xff]
      %v687 = vld [vmem:[%s1 + $0x730] sm:$0xff]
      %v688 = vld [vmem:[%s1 + $0x738] sm:$0xff]
      %v689 = vld [vmem:[%s1 + $0x740] sm:$0xff]
      %v690 = vld [vmem:[%s1 + $0x748] sm:$0xff]
      %v691 = vld [vmem:[%s1 + $0x750] sm:$0xff]
      %v692 = vld [vmem:[%s1 + $0x758] sm:$0xff]
      %v693 = vld [vmem:[%s1 + $0x760] sm:$0xff]
      %v694 = vld [vmem:[%s1 + $0x768] sm:$0xff]
      %v695 = vld [vmem:[%s1 + $0x770] sm:$0xff]
      %v696 = vld [vmem:[%s1 + $0x778] sm:$0xff]
      %v697 = vld [vmem:[%s1 + $0x780] sm:$0xff]
      %v698 = vld [vmem:[%s1 + $0x788] sm:$0xff]
      %v699 = vld [vmem:[%s1 + $0x790] sm:$0xff]
      %v700 = vld [vmem:[%s1 + $0x798] sm:$0xff]
      %v701 = vld [vmem:[%s1 + $0x7a0] sm:$0xff]
      %v702 = vld [vmem:[%s1 + $0x7a8] sm:$0xff]
      %v703 = vld [vmem:[%s1 + $0x7b0] sm:$0xff]
      %v704 = vld [vmem:[%s1 + $0x7b8] sm:$0xff]
      %v705 = vld [vmem:[%s1 + $0x7c0] sm:$0xff]
      %v706 = vld [vmem:[%s1 + $0x7c8] sm:$0xff]
      %v707 = vld [vmem:[%s1 + $0x7d0] sm:$0xff]
      %v708 = vld [vmem:[%s1 + $0x7d8] sm:$0xff]
      %v709 = vld [vmem:[%s1 + $0x7e0] sm:$0xff]
      %v710 = vld [vmem:[%s1 + $0x7e8] sm:$0xff]
      %v711 = vld [vmem:[%s1 + $0x7f0] sm:$0xff]
      %v712 = vld [vmem:[%s1 + $0x7f8] sm:$0xff]
      %713 = vmatprep.subr.mxu0 %v458
      %714 = vmatpush1.msra.mxu0 %v457
      %715 = vmatprep.subr.mxu0 %v466
      %716 = vmatpush1.msra.mxu0 %v465
      %717 = vmatprep.subr.mxu0 %v474
      %718 = vmatpush1.msra.mxu0 %v473
      %719 = vmatprep.subr.mxu0 %v482
      %720 = vmatpush1.msra.mxu0 %v481
      %721 = vmatprep.subr.mxu0 %v490
      %722 = vmatpush1.msra.mxu0 %v489
      %723 = vmatprep.subr.mxu0 %v498
      %724 = vmatpush1.msra.mxu0 %v497
      %725 = vmatprep.subr.mxu0 %v506
      %726 = vmatpush1.msra.mxu0 %v505
      %727 = vmatprep.subr.mxu0 %v514
      %728 = vmatpush1.msra.mxu0 %v513
      %729 = vmatprep.subr.mxu0 %v522
      %730 = vmatpush1.msra.mxu0 %v521
      %731 = vmatprep.subr.mxu0 %v530
      %732 = vmatpush1.msra.mxu0 %v529
      %733 = vmatprep.subr.mxu0 %v538
      %734 = vmatpush1.msra.mxu0 %v537
      %735 = vmatprep.subr.mxu0 %v546
      %736 = vmatpush1.msra.mxu0 %v545
      %737 = vmatprep.subr.mxu0 %v554
      %738 = vmatpush1.msra.mxu0 %v553
      %739 = vmatprep.subr.mxu0 %v562
      %740 = vmatpush1.msra.mxu0 %v561
      %741 = vmatprep.subr.mxu0 %v570
      %742 = vmatpush1.msra.mxu0 %v569
      %743 = vmatprep.subr.mxu0 %v578
      %744 = vmatpush1.msra.mxu0 %v577
      %745 = vmatprep.subr.mxu0 %v586
      %746 = vmatpush1.msra.mxu0 %v585
      %747 = vmatprep.subr.mxu0 %v594
      %748 = vmatpush1.msra.mxu0 %v593
      %749 = vmatprep.subr.mxu0 %v602
      %750 = vmatpush1.msra.mxu0 %v601
      %751 = vmatprep.subr.mxu0 %v610
      %752 = vmatpush1.msra.mxu0 %v609
      %753 = vmatprep.subr.mxu0 %v618
      %754 = vmatpush1.msra.mxu0 %v617
      %755 = vmatprep.subr.mxu0 %v626
      %756 = vmatpush1.msra.mxu0 %v625
      %757 = vmatprep.subr.mxu0 %v634
      %758 = vmatpush1.msra.mxu0 %v633
      %759 = vmatprep.subr.mxu0 %v642
      %760 = vmatpush1.msra.mxu0 %v641
      %761 = vmatprep.subr.mxu0 %v650
      %762 = vmatpush1.msra.mxu0 %v649
      %763 = vmatprep.subr.mxu0 %v658
      %764 = vmatpush1.msra.mxu0 %v657
      %765 = vmatprep.subr.mxu0 %v666
      %766 = vmatpush1.msra.mxu0 %v665
      %767 = vmatprep.subr.mxu0 %v674
      %768 = vmatpush1.msra.mxu0 %v673
      %769 = vmatprep.subr.mxu0 %v682
      %770 = vmatpush1.msra.mxu0 %v681
      %771 = vmatprep.subr.mxu0 %v690
      %772 = vmatpush1.msra.mxu0 %v689
      %773 = vmatprep.subr.mxu0 %v698
      %774 = vmatpush1.msra.mxu0 %v697
      %775 = vmatprep.subr.mxu0 %v706
      %776 = vmatpush1.msra.mxu0 %v705
      %777 = vmatprep.mubr.f32.mxu0 %v394
      %778 = vmatmul.mubr.f32.gmra.mrb[0].mxu0 %v393
      %v779 = vpop.f32.mrb[0].mxu0
      %v780 = vadd.f32 0.0, %v779
      %v781 = vpop.f32.mrb[0].mxu0
      %v782 = vadd.f32 0.0, %v781
      %783 = vmatprep.mubr.f32.mxu0 %v396
      %784 = vmatmul.mubr.f32.gmra.mrb[0].mxu0 %v395
      %v785 = vpop.f32.mrb[0].mxu0
      %v786 = vadd.f32 0.0, %v785
      %v787 = vpop.f32.mrb[0].mxu0
      %v788 = vadd.f32 0.0, %v787
      %789 = vmatprep.mubr.f32.mxu0 %v398
      %790 = vmatmul.mubr.f32.gmra.mrb[0].mxu0 %v397
      %v791 = vpop.f32.mrb[0].mxu0
      %v792 = vadd.f32 0.0, %v791
      %v793 = vpop.f32.mrb[0].mxu0
      %v794 = vadd.f32 0.0, %v793
      %795 = vmatprep.mubr.f32.mxu0 %v400
      %796 = vmatmul.mubr.f32.gmra.mrb[0].mxu0 %v399
      %v797 = vpop.f32.mrb[0].mxu0
      %v798 = vadd.f32 0.0, %v797
      %v799 = vpop.f32.mrb[0].mxu0
      %v800 = vadd.f32 0.0, %v799
      %801 = vmatprep.mubr.f32.mxu0 %v402
      %802 = vmatmul.mubr.f32.gmra.mrb[0].mxu0 %v401
      %v803 = vpop.f32.mrb[0].mxu0
      %v804 = vadd.f32 0.0, %v803
      %v805 = vpop.f32.mrb[0].mxu0
      %v806 = vadd.f32 0.0, %v805
      %807 = vmatprep.mubr.f32.mxu0 %v404
      %808 = vmatmul.mubr.f32.gmra.mrb[0].mxu0 %v403
      %v809 = vpop.f32.mrb[0].mxu0
      %v810 = vadd.f32 0.0, %v809
      %v811 = vpop.f32.mrb[0].mxu0
      %v812 = vadd.f32 0.0, %v811
      %813 = vmatprep.mubr.f32.mxu0 %v406
      %814 = vmatmul.mubr.f32.gmra.mrb[0].mxu0 %v405
      %v815 = vpop.f32.mrb[0].mxu0
      %v816 = vadd.f32 0.0, %v815
      %v817 = vpop.f32.mrb[0].mxu0
      %v818 = vadd.f32 0.0, %v817
      %819 = vmatprep.mubr.f32.mxu0 %v408
      %820 = vmatmul.mubr.f32.gmra.mrb[0].mxu0 %v407
      %v821 = vpop.f32.mrb[0].mxu0
      %v822 = vadd.f32 0.0, %v821
      %v823 = vpop.f32.mrb[0].mxu0
      %v824 = vadd.f32 0.0, %v823
      %825 = vmatprep.mubr.f32.mxu0 %v410
      %826 = vmatmul.mubr.f32.gmra.mrb[0].mxu0 %v409
      %v827 = vpop.f32.mrb[0].mxu0
      %v828 = vadd.f32 0.0, %v827
      %v829 = vpop.f32.mrb[0].mxu0
      %v830 = vadd.f32 0.0, %v829
      %831 = vmatprep.mubr.f32.mxu0 %v412
      %832 = vmatmul.mubr.f32.gmra.mrb[0].mxu0 %v411
      %v833 = vpop.f32.mrb[0].mxu0
      %v834 = vadd.f32 0.0, %v833
      %v835 = vpop.f32.mrb[0].mxu0
      %v836 = vadd.f32 0.0, %v835
      %837 = vmatprep.mubr.f32.mxu0 %v414
      %838 = vmatmul.mubr.f32.gmra.mrb[0].mxu0 %v413
      %v839 = vpop.f32.mrb[0].mxu0
      %v840 = vadd.f32 0.0, %v839
      %v841 = vpop.f32.mrb[0].mxu0
      %v842 = vadd.f32 0.0, %v841
      %843 = vmatprep.mubr.f32.mxu0 %v416
      %844 = vmatmul.mubr.f32.gmra.mrb[0].mxu0 %v415
      %v845 = vpop.f32.mrb[0].mxu0
      %v846 = vadd.f32 0.0, %v845
      %v847 = vpop.f32.mrb[0].mxu0
      %v848 = vadd.f32 0.0, %v847
      %849 = vmatprep.mubr.f32.mxu0 %v418
      %850 = vmatmul.mubr.f32.gmra.mrb[0].mxu0 %v417
      %v851 = vpop.f32.mrb[0].mxu0
      %v852 = vadd.f32 0.0, %v851
      %v853 = vpop.f32.mrb[0].mxu0
      %v854 = vadd.f32 0.0, %v853
      %855 = vmatprep.mubr.f32.mxu0 %v420
      %856 = vmatmul.mubr.f32.gmra.mrb[0].mxu0 %v419
      %v857 = vpop.f32.mrb[0].mxu0
      %v858 = vadd.f32 0.0, %v857
      %v859 = vpop.f32.mrb[0].mxu0
      %v860 = vadd.f32 0.0, %v859
      %861 = vmatprep.mubr.f32.mxu0 %v422
      %862 = vmatmul.mubr.f32.gmra.mrb[0].mxu0 %v421
      %v863 = vpop.f32.mrb[0].mxu0
      %v864 = vadd.f32 0.0, %v863
      %v865 = vpop.f32.mrb[0].mxu0
      %v866 = vadd.f32 0.0, %v865
      %867 = vmatprep.mubr.f32.mxu0 %v424
      %868 = vmatmul.mubr.f32.gmra.mrb[0].mxu0 %v423
      %v869 = vpop.f32.mrb[0].mxu0
      %v870 = vadd.f32 0.0, %v869
      %v871 = vpop.f32.mrb[0].mxu0
      %v872 = vadd.f32 0.0, %v871
      %873 = vmatprep.mubr.f32.mxu0 %v426
      %874 = vmatmul.mubr.f32.gmra.mrb[0].mxu0 %v425
      %v875 = vpop.f32.mrb[0].mxu0
      %v876 = vadd.f32 0.0, %v875
      %v877 = vpop.f32.mrb[0].mxu0
      %v878 = vadd.f32 0.0, %v877
      %879 = vmatprep.mubr.f32.mxu0 %v428
      %880 = vmatmul.mubr.f32.gmra.mrb[0].mxu0 %v427
      %v881 = vpop.f32.mrb[0].mxu0
      %v882 = vadd.f32 0.0, %v881
      %v883 = vpop.f32.mrb[0].mxu0
      %v884 = vadd.f32 0.0, %v883
      %885 = vmatprep.mubr.f32.mxu0 %v430
      %886 = vmatmul.mubr.f32.gmra.mrb[0].mxu0 %v429
      %v887 = vpop.f32.mrb[0].mxu0
      %v888 = vadd.f32 0.0, %v887
      %v889 = vpop.f32.mrb[0].mxu0
      %v890 = vadd.f32 0.0, %v889
      %891 = vmatprep.mubr.f32.mxu0 %v432
      %892 = vmatmul.mubr.f32.gmra.mrb[0].mxu0 %v431
      %v893 = vpop.f32.mrb[0].mxu0
      %v894 = vadd.f32 0.0, %v893
      %v895 = vpop.f32.mrb[0].mxu0
      %v896 = vadd.f32 0.0, %v895
      %897 = vmatprep.mubr.f32.mxu0 %v434
      %898 = vmatmul.mubr.f32.gmra.mrb[0].mxu0 %v433
      %v899 = vpop.f32.mrb[0].mxu0
      %v900 = vadd.f32 0.0, %v899
      %v901 = vpop.f32.mrb[0].mxu0
      %v902 = vadd.f32 0.0, %v901
      %903 = vmatprep.mubr.f32.mxu0 %v436
      %904 = vmatmul.mubr.f32.gmra.mrb[0].mxu0 %v435
      %v905 = vpop.f32.mrb[0].mxu0
      %v906 = vadd.f32 0.0, %v905
      %v907 = vpop.f32.mrb[0].mxu0
      %v908 = vadd.f32 0.0, %v907
      %909 = vmatprep.mubr.f32.mxu0 %v438
      %910 = vmatmul.mubr.f32.gmra.mrb[0].mxu0 %v437
      %v911 = vpop.f32.mrb[0].mxu0
      %v912 = vadd.f32 0.0, %v911
      %v913 = vpop.f32.mrb[0].mxu0
      %v914 = vadd.f32 0.0, %v913
      %915 = vmatprep.mubr.f32.mxu0 %v440
      %916 = vmatmul.mubr.f32.gmra.mrb[0].mxu0 %v439
      %v917 = vpop.f32.mrb[0].mxu0
      %v918 = vadd.f32 0.0, %v917
      %v919 = vpop.f32.mrb[0].mxu0
      %v920 = vadd.f32 0.0, %v919
      %921 = vmatprep.mubr.f32.mxu0 %v442
      %922 = vmatmul.mubr.f32.gmra.mrb[0].mxu0 %v441
      %v923 = vpop.f32.mrb[0].mxu0
      %v924 = vadd.f32 0.0, %v923
      %v925 = vpop.f32.mrb[0].mxu0
      %v926 = vadd.f32 0.0, %v925
      %927 = vmatprep.mubr.f32.mxu0 %v444
      %928 = vmatmul.mubr.f32.gmra.mrb[0].mxu0 %v443
      %v929 = vpop.f32.mrb[0].mxu0
      %v930 = vadd.f32 0.0, %v929
      %v931 = vpop.f32.mrb[0].mxu0
      %v932 = vadd.f32 0.0, %v931
      %933 = vmatprep.mubr.f32.mxu0 %v446
      %934 = vmatmul.mubr.f32.gmra.mrb[0].mxu0 %v445
      %v935 = vpop.f32.mrb[0].mxu0
      %v936 = vadd.f32 0.0, %v935
      %v937 = vpop.f32.mrb[0].mxu0
      %v938 = vadd.f32 0.0, %v937
      %939 = vmatprep.mubr.f32.mxu0 %v448
      %940 = vmatmul.mubr.f32.gmra.mrb[0].mxu0 %v447
      %v941 = vpop.f32.mrb[0].mxu0
      %v942 = vadd.f32 0.0, %v941
      %v943 = vpop.f32.mrb[0].mxu0
      %v944 = vadd.f32 0.0, %v943
      %945 = vmatprep.mubr.f32.mxu0 %v450
      %946 = vmatmul.mubr.f32.gmra.mrb[0].mxu0 %v449
      %v947 = vpop.f32.mrb[0].mxu0
      %v948 = vadd.f32 0.0, %v947
      %v949 = vpop.f32.mrb[0].mxu0
      %v950 = vadd.f32 0.0, %v949
      %951 = vmatprep.mubr.f32.mxu0 %v452
      %952 = vmatmul.mubr.f32.gmra.mrb[0].mxu0 %v451
      %v953 = vpop.f32.mrb[0].mxu0
      %v954 = vadd.f32 0.0, %v953
      %v955 = vpop.f32.mrb[0].mxu0
      %v956 = vadd.f32 0.0, %v955
      %957 = vmatprep.mubr.f32.mxu0 %v454
      %958 = vmatmul.mubr.f32.gmra.mrb[0].mxu0 %v453
      %v959 = vpop.f32.mrb[0].mxu0
      %v960 = vadd.f32 0.0, %v959
      %v961 = vpop.f32.mrb[0].mxu0
      %v962 = vadd.f32 0.0, %v961
      %963 = vmatprep.mubr.f32.mxu0 %v456
      %964 = vmatmul.mubr.f32.gmra.mrb[0].mxu0 %v455
      %v965 = vpop.f32.mrb[0].mxu0
      %v966 = vadd.f32 0.0, %v965
      %v967 = vpop.f32.mrb[0].mxu0
      %v968 = vadd.f32 0.0, %v967
      %969 = vdwg.mxu0
      %970 = vmatprep.subr.mxu0 %v460
      %971 = vmatpush1.msra.mxu0 %v459
      %972 = vmatprep.subr.mxu0 %v468
      %973 = vmatpush1.msra.mxu0 %v467
      %974 = vmatprep.subr.mxu0 %v476
      %975 = vmatpush1.msra.mxu0 %v475
      %976 = vmatprep.subr.mxu0 %v484
      %977 = vmatpush1.msra.mxu0 %v483
      %978 = vmatprep.subr.mxu0 %v492
      %979 = vmatpush1.msra.mxu0 %v491
      %980 = vmatprep.subr.mxu0 %v500
      %981 = vmatpush1.msra.mxu0 %v499
      %982 = vmatprep.subr.mxu0 %v508
      %983 = vmatpush1.msra.mxu0 %v507
      %984 = vmatprep.subr.mxu0 %v516
      %985 = vmatpush1.msra.mxu0 %v515
      %986 = vmatprep.subr.mxu0 %v524
      %987 = vmatpush1.msra.mxu0 %v523
      %988 = vmatprep.subr.mxu0 %v532
      %989 = vmatpush1.msra.mxu0 %v531
      %990 = vmatprep.subr.mxu0 %v540
      %991 = vmatpush1.msra.mxu0 %v539
      %992 = vmatprep.subr.mxu0 %v548
      %993 = vmatpush1.msra.mxu0 %v547
      %994 = vmatprep.subr.mxu0 %v556
      %995 = vmatpush1.msra.mxu0 %v555
      %996 = vmatprep.subr.mxu0 %v564
      %997 = vmatpush1.msra.mxu0 %v563
      %998 = vmatprep.subr.mxu0 %v572
      %999 = vmatpush1.msra.mxu0 %v571
      %1000 = vmatprep.subr.mxu0 %v580
      %1001 = vmatpush1.msra.mxu0 %v579
      %1002 = vmatprep.subr.mxu0 %v588
      %1003 = vmatpush1.msra.mxu0 %v587
      %1004 = vmatprep.subr.mxu0 %v596
      %1005 = vmatpush1.msra.mxu0 %v595
      %1006 = vmatprep.subr.mxu0 %v604
      %1007 = vmatpush1.msra.mxu0 %v603
      %1008 = vmatprep.subr.mxu0 %v612
      %1009 = vmatpush1.msra.mxu0 %v611
      %1010 = vmatprep.subr.mxu0 %v620
      %1011 = vmatpush1.msra.mxu0 %v619
      %1012 = vmatprep.subr.mxu0 %v628
      %1013 = vmatpush1.msra.mxu0 %v627
      %1014 = vmatprep.subr.mxu0 %v636
      %1015 = vmatpush1.msra.mxu0 %v635
      %1016 = vmatprep.subr.mxu0 %v644
      %1017 = vmatpush1.msra.mxu0 %v643
      %1018 = vmatprep.subr.mxu0 %v652
      %1019 = vmatpush1.msra.mxu0 %v651
      %1020 = vmatprep.subr.mxu0 %v660
      %1021 = vmatpush1.msra.mxu0 %v659
      %1022 = vmatprep.subr.mxu0 %v668
      %1023 = vmatpush1.msra.mxu0 %v667
      %1024 = vmatprep.subr.mxu0 %v676
      %1025 = vmatpush1.msra.mxu0 %v675
      %1026 = vmatprep.subr.mxu0 %v684
      %1027 = vmatpush1.msra.mxu0 %v683
      %1028 = vmatprep.subr.mxu0 %v692
      %1029 = vmatpush1.msra.mxu0 %v691
      %1030 = vmatprep.subr.mxu0 %v700
      %1031 = vmatpush1.msra.mxu0 %v699
      %1032 = vmatprep.subr.mxu0 %v708
      %1033 = vmatpush1.msra.mxu0 %v707
      %1034 = vmatprep.mubr.f32.mxu0 %v394
      %1035 = vmatmul.mubr.f32.gmra.mrb[0].mxu0 %v393
      %v1036 = vpop.f32.mrb[0].mxu0
      %v1037 = vadd.f32 0.0, %v1036
      %v1038 = vpop.f32.mrb[0].mxu0
      %v1039 = vadd.f32 0.0, %v1038
      %1040 = vmatprep.mubr.f32.mxu0 %v396
      %1041 = vmatmul.mubr.f32.gmra.mrb[0].mxu0 %v395
      %v1042 = vpop.f32.mrb[0].mxu0
      %v1043 = vadd.f32 0.0, %v1042
      %v1044 = vpop.f32.mrb[0].mxu0
      %v1045 = vadd.f32 0.0, %v1044
      %1046 = vmatprep.mubr.f32.mxu0 %v398
      %1047 = vmatmul.mubr.f32.gmra.mrb[0].mxu0 %v397
      %v1048 = vpop.f32.mrb[0].mxu0
      %v1049 = vadd.f32 0.0, %v1048
      %v1050 = vpop.f32.mrb[0].mxu0
      %v1051 = vadd.f32 0.0, %v1050
      %1052 = vmatprep.mubr.f32.mxu0 %v400
      %1053 = vmatmul.mubr.f32.gmra.mrb[0].mxu0 %v399
      %v1054 = vpop.f32.mrb[0].mxu0
      %v1055 = vadd.f32 0.0, %v1054
      %v1056 = vpop.f32.mrb[0].mxu0
      %v1057 = vadd.f32 0.0, %v1056
      %1058 = vmatprep.mubr.f32.mxu0 %v402
      %1059 = vmatmul.mubr.f32.gmra.mrb[0].mxu0 %v401
      %v1060 = vpop.f32.mrb[0].mxu0
      %v1061 = vadd.f32 0.0, %v1060
      %v1062 = vpop.f32.mrb[0].mxu0
      %v1063 = vadd.f32 0.0, %v1062
      %1064 = vmatprep.mubr.f32.mxu0 %v404
      %1065 = vmatmul.mubr.f32.gmra.mrb[0].mxu0 %v403
      %v1066 = vpop.f32.mrb[0].mxu0
      %v1067 = vadd.f32 0.0, %v1066
      %v1068 = vpop.f32.mrb[0].mxu0
      %v1069 = vadd.f32 0.0, %v1068
      %1070 = vmatprep.mubr.f32.mxu0 %v406
      %1071 = vmatmul.mubr.f32.gmra.mrb[0].mxu0 %v405
      %v1072 = vpop.f32.mrb[0].mxu0
      %v1073 = vadd.f32 0.0, %v1072
      %v1074 = vpop.f32.mrb[0].mxu0
      %v1075 = vadd.f32 0.0, %v1074
      %1076 = vmatprep.mubr.f32.mxu0 %v408
      %1077 = vmatmul.mubr.f32.gmra.mrb[0].mxu0 %v407
      %v1078 = vpop.f32.mrb[0].mxu0
      %v1079 = vadd.f32 0.0, %v1078
      %v1080 = vpop.f32.mrb[0].mxu0
      %v1081 = vadd.f32 0.0, %v1080
      %1082 = vmatprep.mubr.f32.mxu0 %v410
      %1083 = vmatmul.mubr.f32.gmra.mrb[0].mxu0 %v409
      %v1084 = vpop.f32.mrb[0].mxu0
      %v1085 = vadd.f32 0.0, %v1084
      %v1086 = vpop.f32.mrb[0].mxu0
      %v1087 = vadd.f32 0.0, %v1086
      %1088 = vmatprep.mubr.f32.mxu0 %v412
      %1089 = vmatmul.mubr.f32.gmra.mrb[0].mxu0 %v411
      %v1090 = vpop.f32.mrb[0].mxu0
      %v1091 = vadd.f32 0.0, %v1090
      %v1092 = vpop.f32.mrb[0].mxu0
      %v1093 = vadd.f32 0.0, %v1092
      %1094 = vmatprep.mubr.f32.mxu0 %v414
      %1095 = vmatmul.mubr.f32.gmra.mrb[0].mxu0 %v413
      %v1096 = vpop.f32.mrb[0].mxu0
      %v1097 = vadd.f32 0.0, %v1096
      %v1098 = vpop.f32.mrb[0].mxu0
      %v1099 = vadd.f32 0.0, %v1098
      %1100 = vmatprep.mubr.f32.mxu0 %v416
      %1101 = vmatmul.mubr.f32.gmra.mrb[0].mxu0 %v415
      %v1102 = vpop.f32.mrb[0].mxu0
      %v1103 = vadd.f32 0.0, %v1102
      %v1104 = vpop.f32.mrb[0].mxu0
      %v1105 = vadd.f32 0.0, %v1104
      %1106 = vmatprep.mubr.f32.mxu0 %v418
      %1107 = vmatmul.mubr.f32.gmra.mrb[0].mxu0 %v417
      %v1108 = vpop.f32.mrb[0].mxu0
      %v1109 = vadd.f32 0.0, %v1108
      %v1110 = vpop.f32.mrb[0].mxu0
      %v1111 = vadd.f32 0.0, %v1110
      %1112 = vmatprep.mubr.f32.mxu0 %v420
      %1113 = vmatmul.mubr.f32.gmra.mrb[0].mxu0 %v419
      %v1114 = vpop.f32.mrb[0].mxu0
      %v1115 = vadd.f32 0.0, %v1114
      %v1116 = vpop.f32.mrb[0].mxu0
      %v1117 = vadd.f32 0.0, %v1116
      %1118 = vmatprep.mubr.f32.mxu0 %v422
      %1119 = vmatmul.mubr.f32.gmra.mrb[0].mxu0 %v421
      %v1120 = vpop.f32.mrb[0].mxu0
      %v1121 = vadd.f32 0.0, %v1120
      %v1122 = vpop.f32.mrb[0].mxu0
      %v1123 = vadd.f32 0.0, %v1122
      %1124 = vmatprep.mubr.f32.mxu0 %v424
      %1125 = vmatmul.mubr.f32.gmra.mrb[0].mxu0 %v423
      %v1126 = vpop.f32.mrb[0].mxu0
      %v1127 = vadd.f32 0.0, %v1126
      %v1128 = vpop.f32.mrb[0].mxu0
      %v1129 = vadd.f32 0.0, %v1128
      %1130 = vmatprep.mubr.f32.mxu0 %v426
      %1131 = vmatmul.mubr.f32.gmra.mrb[0].mxu0 %v425
      %v1132 = vpop.f32.mrb[0].mxu0
      %v1133 = vadd.f32 0.0, %v1132
      %v1134 = vpop.f32.mrb[0].mxu0
      %v1135 = vadd.f32 0.0, %v1134
      %1136 = vmatprep.mubr.f32.mxu0 %v428
      %1137 = vmatmul.mubr.f32.gmra.mrb[0].mxu0 %v427
      %v1138 = vpop.f32.mrb[0].mxu0
      %v1139 = vadd.f32 0.0, %v1138
      %v1140 = vpop.f32.mrb[0].mxu0
      %v1141 = vadd.f32 0.0, %v1140
      %1142 = vmatprep.mubr.f32.mxu0 %v430
      %1143 = vmatmul.mubr.f32.gmra.mrb[0].mxu0 %v429
      %v1144 = vpop.f32.mrb[0].mxu0
      %v1145 = vadd.f32 0.0, %v1144
      %v1146 = vpop.f32.mrb[0].mxu0
      %v1147 = vadd.f32 0.0, %v1146
      %1148 = vmatprep.mubr.f32.mxu0 %v432
      %1149 = vmatmul.mubr.f32.gmra.mrb[0].mxu0 %v431
      %v1150 = vpop.f32.mrb[0].mxu0
      %v1151 = vadd.f32 0.0, %v1150
      %v1152 = vpop.f32.mrb[0].mxu0
      %v1153 = vadd.f32 0.0, %v1152
      %1154 = vmatprep.mubr.f32.mxu0 %v434
      %1155 = vmatmul.mubr.f32.gmra.mrb[0].mxu0 %v433
      %v1156 = vpop.f32.mrb[0].mxu0
      %v1157 = vadd.f32 0.0, %v1156
      %v1158 = vpop.f32.mrb[0].mxu0
      %v1159 = vadd.f32 0.0, %v1158
      %1160 = vmatprep.mubr.f32.mxu0 %v436
      %1161 = vmatmul.mubr.f32.gmra.mrb[0].mxu0 %v435
      %v1162 = vpop.f32.mrb[0].mxu0
      %v1163 = vadd.f32 0.0, %v1162
      %v1164 = vpop.f32.mrb[0].mxu0
      %v1165 = vadd.f32 0.0, %v1164
      %1166 = vmatprep.mubr.f32.mxu0 %v438
      %1167 = vmatmul.mubr.f32.gmra.mrb[0].mxu0 %v437
      %v1168 = vpop.f32.mrb[0].mxu0
      %v1169 = vadd.f32 0.0, %v1168
      %v1170 = vpop.f32.mrb[0].mxu0
      %v1171 = vadd.f32 0.0, %v1170
      %1172 = vmatprep.mubr.f32.mxu0 %v440
      %1173 = vmatmul.mubr.f32.gmra.mrb[0].mxu0 %v439
      %v1174 = vpop.f32.mrb[0].mxu0
      %v1175 = vadd.f32 0.0, %v1174
      %v1176 = vpop.f32.mrb[0].mxu0
      %v1177 = vadd.f32 0.0, %v1176
      %1178 = vmatprep.mubr.f32.mxu0 %v442
      %1179 = vmatmul.mubr.f32.gmra.mrb[0].mxu0 %v441
      %v1180 = vpop.f32.mrb[0].mxu0
      %v1181 = vadd.f32 0.0, %v1180
      %v1182 = vpop.f32.mrb[0].mxu0
      %v1183 = vadd.f32 0.0, %v1182
      %1184 = vmatprep.mubr.f32.mxu0 %v444
      %1185 = vmatmul.mubr.f32.gmra.mrb[0].mxu0 %v443
      %v1186 = vpop.f32.mrb[0].mxu0
      %v1187 = vadd.f32 0.0, %v1186
      %v1188 = vpop.f32.mrb[0].mxu0
      %v1189 = vadd.f32 0.0, %v1188
      %1190 = vmatprep.mubr.f32.mxu0 %v446
      %1191 = vmatmul.mubr.f32.gmra.mrb[0].mxu0 %v445
      %v1192 = vpop.f32.mrb[0].mxu0
      %v1193 = vadd.f32 0.0, %v1192
      %v1194 = vpop.f32.mrb[0].mxu0
      %v1195 = vadd.f32 0.0, %v1194
      %1196 = vmatprep.mubr.f32.mxu0 %v448
      %1197 = vmatmul.mubr.f32.gmra.mrb[0].mxu0 %v447
      %v1198 = vpop.f32.mrb[0].mxu0
      %v1199 = vadd.f32 0.0, %v1198
      %v1200 = vpop.f32.mrb[0].mxu0
      %v1201 = vadd.f32 0.0, %v1200
      %1202 = vmatprep.mubr.f32.mxu0 %v450
      %1203 = vmatmul.mubr.f32.gmra.mrb[0].mxu0 %v449
      %v1204 = vpop.f32.mrb[0].mxu0
      %v1205 = vadd.f32 0.0, %v1204
      %v1206 = vpop.f32.mrb[0].mxu0
      %v1207 = vadd.f32 0.0, %v1206
      %1208 = vmatprep.mubr.f32.mxu0 %v452
      %1209 = vmatmul.mubr.f32.gmra.mrb[0].mxu0 %v451
      %v1210 = vpop.f32.mrb[0].mxu0
      %v1211 = vadd.f32 0.0, %v1210
      %v1212 = vpop.f32.mrb[0].mxu0
      %v1213 = vadd.f32 0.0, %v1212
      %1214 = vmatprep.mubr.f32.mxu0 %v454
      %1215 = vmatmul.mubr.f32.gmra.mrb[0].mxu0 %v453
      %v1216 = vpop.f32.mrb[0].mxu0
      %v1217 = vadd.f32 0.0, %v1216
      %v1218 = vpop.f32.mrb[0].mxu0
      %v1219 = vadd.f32 0.0, %v1218
      %1220 = vmatprep.mubr.f32.mxu0 %v456
      %1221 = vmatmul.mubr.f32.gmra.mrb[0].mxu0 %v455
      %v1222 = vpop.f32.mrb[0].mxu0
      %v1223 = vadd.f32 0.0, %v1222
      %v1224 = vpop.f32.mrb[0].mxu0
      %v1225 = vadd.f32 0.0, %v1224
      %1226 = vdwg.mxu0
      %1227 = vmatprep.subr.mxu0 %v462
      %1228 = vmatpush1.msra.mxu0 %v461
      %1229 = vmatprep.subr.mxu0 %v470
      %1230 = vmatpush1.msra.mxu0 %v469
      %1231 = vmatprep.subr.mxu0 %v478
      %1232 = vmatpush1.msra.mxu0 %v477
      %1233 = vmatprep.subr.mxu0 %v486
      %1234 = vmatpush1.msra.mxu0 %v485
      %1235 = vmatprep.subr.mxu0 %v494
      %1236 = vmatpush1.msra.mxu0 %v493
      %1237 = vmatprep.subr.mxu0 %v502
      %1238 = vmatpush1.msra.mxu0 %v501
      %1239 = vmatprep.subr.mxu0 %v510
      %1240 = vmatpush1.msra.mxu0 %v509
      %1241 = vmatprep.subr.mxu0 %v518
      %1242 = vmatpush1.msra.mxu0 %v517
      %1243 = vmatprep.subr.mxu0 %v526
      %1244 = vmatpush1.msra.mxu0 %v525
      %1245 = vmatprep.subr.mxu0 %v534
      %1246 = vmatpush1.msra.mxu0 %v533
      %1247 = vmatprep.subr.mxu0 %v542
      %1248 = vmatpush1.msra.mxu0 %v541
      %1249 = vmatprep.subr.mxu0 %v550
      %1250 = vmatpush1.msra.mxu0 %v549
      %1251 = vmatprep.subr.mxu0 %v558
      %1252 = vmatpush1.msra.mxu0 %v557
      %1253 = vmatprep.subr.mxu0 %v566
      %1254 = vmatpush1.msra.mxu0 %v565
      %1255 = vmatprep.subr.mxu0 %v574
      %1256 = vmatpush1.msra.mxu0 %v573
      %1257 = vmatprep.subr.mxu0 %v582
      %1258 = vmatpush1.msra.mxu0 %v581
      %1259 = vmatprep.subr.mxu0 %v590
      %1260 = vmatpush1.msra.mxu0 %v589
      %1261 = vmatprep.subr.mxu0 %v598
      %1262 = vmatpush1.msra.mxu0 %v597
      %1263 = vmatprep.subr.mxu0 %v606
      %1264 = vmatpush1.msra.mxu0 %v605
      %1265 = vmatprep.subr.mxu0 %v614
      %1266 = vmatpush1.msra.mxu0 %v613
      %1267 = vmatprep.subr.mxu0 %v622
      %1268 = vmatpush1.msra.mxu0 %v621
      %1269 = vmatprep.subr.mxu0 %v630
      %1270 = vmatpush1.msra.mxu0 %v629
      %1271 = vmatprep.subr.mxu0 %v638
      %1272 = vmatpush1.msra.mxu0 %v637
      %1273 = vmatprep.subr.mxu0 %v646
      %1274 = vmatpush1.msra.mxu0 %v645
      %1275 = vmatprep.subr.mxu0 %v654
      %1276 = vmatpush1.msra.mxu0 %v653
      %1277 = vmatprep.subr.mxu0 %v662
      %1278 = vmatpush1.msra.mxu0 %v661
      %1279 = vmatprep.subr.mxu0 %v670
      %1280 = vmatpush1.msra.mxu0 %v669
      %1281 = vmatprep.subr.mxu0 %v678
      %1282 = vmatpush1.msra.mxu0 %v677
      %1283 = vmatprep.subr.mxu0 %v686
      %1284 = vmatpush1.msra.mxu0 %v685
      %1285 = vmatprep.subr.mxu0 %v694
      %1286 = vmatpush1.msra.mxu0 %v693
      %1287 = vmatprep.subr.mxu0 %v702
      %1288 = vmatpush1.msra.mxu0 %v701
      %1289 = vmatprep.subr.mxu0 %v710
      %1290 = vmatpush1.msra.mxu0 %v709
      %1291 = vmatprep.mubr.f32.mxu0 %v394
      %1292 = vmatmul.mubr.f32.gmra.mrb[0].mxu0 %v393
      %v1293 = vpop.f32.mrb[0].mxu0
      %v1294 = vadd.f32 0.0, %v1293
      %v1295 = vpop.f32.mrb[0].mxu0
      %v1296 = vadd.f32 0.0, %v1295
      %1297 = vmatprep.mubr.f32.mxu0 %v396
      %1298 = vmatmul.mubr.f32.gmra.mrb[0].mxu0 %v395
      %v1299 = vpop.f32.mrb[0].mxu0
      %v1300 = vadd.f32 0.0, %v1299
      %v1301 = vpop.f32.mrb[0].mxu0
      %v1302 = vadd.f32 0.0, %v1301
      %1303 = vmatprep.mubr.f32.mxu0 %v398
      %1304 = vmatmul.mubr.f32.gmra.mrb[0].mxu0 %v397
      %v1305 = vpop.f32.mrb[0].mxu0
      %v1306 = vadd.f32 0.0, %v1305
      %v1307 = vpop.f32.mrb[0].mxu0
      %v1308 = vadd.f32 0.0, %v1307
      %1309 = vmatprep.mubr.f32.mxu0 %v400
      %1310 = vmatmul.mubr.f32.gmra.mrb[0].mxu0 %v399
      %v1311 = vpop.f32.mrb[0].mxu0
      %v1312 = vadd.f32 0.0, %v1311
      %v1313 = vpop.f32.mrb[0].mxu0
      %v1314 = vadd.f32 0.0, %v1313
      %1315 = vmatprep.mubr.f32.mxu0 %v402
      %1316 = vmatmul.mubr.f32.gmra.mrb[0].mxu0 %v401
      %v1317 = vpop.f32.mrb[0].mxu0
      %v1318 = vadd.f32 0.0, %v1317
      %v1319 = vpop.f32.mrb[0].mxu0
      %v1320 = vadd.f32 0.0, %v1319
      %1321 = vmatprep.mubr.f32.mxu0 %v404
      %1322 = vmatmul.mubr.f32.gmra.mrb[0].mxu0 %v403
      %v1323 = vpop.f32.mrb[0].mxu0
      %v1324 = vadd.f32 0.0, %v1323
      %v1325 = vpop.f32.mrb[0].mxu0
      %v1326 = vadd.f32 0.0, %v1325
      %1327 = vmatprep.mubr.f32.mxu0 %v406
      %1328 = vmatmul.mubr.f32.gmra.mrb[0].mxu0 %v405
      %v1329 = vpop.f32.mrb[0].mxu0
      %v1330 = vadd.f32 0.0, %v1329
      %v1331 = vpop.f32.mrb[0].mxu0
      %v1332 = vadd.f32 0.0, %v1331
      %1333 = vmatprep.mubr.f32.mxu0 %v408
      %1334 = vmatmul.mubr.f32.gmra.mrb[0].mxu0 %v407
      %v1335 = vpop.f32.mrb[0].mxu0
      %v1336 = vadd.f32 0.0, %v1335
      %v1337 = vpop.f32.mrb[0].mxu0
      %v1338 = vadd.f32 0.0, %v1337
      %1339 = vmatprep.mubr.f32.mxu0 %v410
      %1340 = vmatmul.mubr.f32.gmra.mrb[0].mxu0 %v409
      %v1341 = vpop.f32.mrb[0].mxu0
      %v1342 = vadd.f32 0.0, %v1341
      %v1343 = vpop.f32.mrb[0].mxu0
      %v1344 = vadd.f32 0.0, %v1343
      %1345 = vmatprep.mubr.f32.mxu0 %v412
      %1346 = vmatmul.mubr.f32.gmra.mrb[0].mxu0 %v411
      %v1347 = vpop.f32.mrb[0].mxu0
      %v1348 = vadd.f32 0.0, %v1347
      %v1349 = vpop.f32.mrb[0].mxu0
      %v1350 = vadd.f32 0.0, %v1349
      %1351 = vmatprep.mubr.f32.mxu0 %v414
      %1352 = vmatmul.mubr.f32.gmra.mrb[0].mxu0 %v413
      %v1353 = vpop.f32.mrb[0].mxu0
      %v1354 = vadd.f32 0.0, %v1353
      %v1355 = vpop.f32.mrb[0].mxu0
      %v1356 = vadd.f32 0.0, %v1355
      %1357 = vmatprep.mubr.f32.mxu0 %v416
      %1358 = vmatmul.mubr.f32.gmra.mrb[0].mxu0 %v415
      %v1359 = vpop.f32.mrb[0].mxu0
      %v1360 = vadd.f32 0.0, %v1359
      %v1361 = vpop.f32.mrb[0].mxu0
      %v1362 = vadd.f32 0.0, %v1361
      %1363 = vmatprep.mubr.f32.mxu0 %v418
      %1364 = vmatmul.mubr.f32.gmra.mrb[0].mxu0 %v417
      %v1365 = vpop.f32.mrb[0].mxu0
      %v1366 = vadd.f32 0.0, %v1365
      %v1367 = vpop.f32.mrb[0].mxu0
      %v1368 = vadd.f32 0.0, %v1367
      %1369 = vmatprep.mubr.f32.mxu0 %v420
      %1370 = vmatmul.mubr.f32.gmra.mrb[0].mxu0 %v419
      %v1371 = vpop.f32.mrb[0].mxu0
      %v1372 = vadd.f32 0.0, %v1371
      %v1373 = vpop.f32.mrb[0].mxu0
      %v1374 = vadd.f32 0.0, %v1373
      %1375 = vmatprep.mubr.f32.mxu0 %v422
      %1376 = vmatmul.mubr.f32.gmra.mrb[0].mxu0 %v421
      %v1377 = vpop.f32.mrb[0].mxu0
      %v1378 = vadd.f32 0.0, %v1377
      %v1379 = vpop.f32.mrb[0].mxu0
      %v1380 = vadd.f32 0.0, %v1379
      %1381 = vmatprep.mubr.f32.mxu0 %v424
      %1382 = vmatmul.mubr.f32.gmra.mrb[0].mxu0 %v423
      %v1383 = vpop.f32.mrb[0].mxu0
      %v1384 = vadd.f32 0.0, %v1383
      %v1385 = vpop.f32.mrb[0].mxu0
      %v1386 = vadd.f32 0.0, %v1385
      %1387 = vmatprep.mubr.f32.mxu0 %v426
      %1388 = vmatmul.mubr.f32.gmra.mrb[0].mxu0 %v425
      %v1389 = vpop.f32.mrb[0].mxu0
      %v1390 = vadd.f32 0.0, %v1389
      %v1391 = vpop.f32.mrb[0].mxu0
      %v1392 = vadd.f32 0.0, %v1391
      %1393 = vmatprep.mubr.f32.mxu0 %v428
      %1394 = vmatmul.mubr.f32.gmra.mrb[0].mxu0 %v427
      %v1395 = vpop.f32.mrb[0].mxu0
      %v1396 = vadd.f32 0.0, %v1395
      %v1397 = vpop.f32.mrb[0].mxu0
      %v1398 = vadd.f32 0.0, %v1397
      %1399 = vmatprep.mubr.f32.mxu0 %v430
      %1400 = vmatmul.mubr.f32.gmra.mrb[0].mxu0 %v429
      %v1401 = vpop.f32.mrb[0].mxu0
      %v1402 = vadd.f32 0.0, %v1401
      %v1403 = vpop.f32.mrb[0].mxu0
      %v1404 = vadd.f32 0.0, %v1403
      %1405 = vmatprep.mubr.f32.mxu0 %v432
      %1406 = vmatmul.mubr.f32.gmra.mrb[0].mxu0 %v431
      %v1407 = vpop.f32.mrb[0].mxu0
      %v1408 = vadd.f32 0.0, %v1407
      %v1409 = vpop.f32.mrb[0].mxu0
      %v1410 = vadd.f32 0.0, %v1409
      %1411 = vmatprep.mubr.f32.mxu0 %v434
      %1412 = vmatmul.mubr.f32.gmra.mrb[0].mxu0 %v433
      %v1413 = vpop.f32.mrb[0].mxu0
      %v1414 = vadd.f32 0.0, %v1413
      %v1415 = vpop.f32.mrb[0].mxu0
      %v1416 = vadd.f32 0.0, %v1415
      %1417 = vmatprep.mubr.f32.mxu0 %v436
      %1418 = vmatmul.mubr.f32.gmra.mrb[0].mxu0 %v435
      %v1419 = vpop.f32.mrb[0].mxu0
      %v1420 = vadd.f32 0.0, %v1419
      %v1421 = vpop.f32.mrb[0].mxu0
      %v1422 = vadd.f32 0.0, %v1421
      %1423 = vmatprep.mubr.f32.mxu0 %v438
      %1424 = vmatmul.mubr.f32.gmra.mrb[0].mxu0 %v437
      %v1425 = vpop.f32.mrb[0].mxu0
      %v1426 = vadd.f32 0.0, %v1425
      %v1427 = vpop.f32.mrb[0].mxu0
      %v1428 = vadd.f32 0.0, %v1427
      %1429 = vmatprep.mubr.f32.mxu0 %v440
      %1430 = vmatmul.mubr.f32.gmra.mrb[0].mxu0 %v439
      %v1431 = vpop.f32.mrb[0].mxu0
      %v1432 = vadd.f32 0.0, %v1431
      %v1433 = vpop.f32.mrb[0].mxu0
      %v1434 = vadd.f32 0.0, %v1433
      %1435 = vmatprep.mubr.f32.mxu0 %v442
      %1436 = vmatmul.mubr.f32.gmra.mrb[0].mxu0 %v441
      %v1437 = vpop.f32.mrb[0].mxu0
      %v1438 = vadd.f32 0.0, %v1437
      %v1439 = vpop.f32.mrb[0].mxu0
      %v1440 = vadd.f32 0.0, %v1439
      %1441 = vmatprep.mubr.f32.mxu0 %v444
      %1442 = vmatmul.mubr.f32.gmra.mrb[0].mxu0 %v443
      %v1443 = vpop.f32.mrb[0].mxu0
      %v1444 = vadd.f32 0.0, %v1443
      %v1445 = vpop.f32.mrb[0].mxu0
      %v1446 = vadd.f32 0.0, %v1445
      %1447 = vmatprep.mubr.f32.mxu0 %v446
      %1448 = vmatmul.mubr.f32.gmra.mrb[0].mxu0 %v445
      %v1449 = vpop.f32.mrb[0].mxu0
      %v1450 = vadd.f32 0.0, %v1449
      %v1451 = vpop.f32.mrb[0].mxu0
      %v1452 = vadd.f32 0.0, %v1451
      %1453 = vmatprep.mubr.f32.mxu0 %v448
      %1454 = vmatmul.mubr.f32.gmra.mrb[0].mxu0 %v447
      %v1455 = vpop.f32.mrb[0].mxu0
      %v1456 = vadd.f32 0.0, %v1455
      %v1457 = vpop.f32.mrb[0].mxu0
      %v1458 = vadd.f32 0.0, %v1457
      %1459 = vmatprep.mubr.f32.mxu0 %v450
      %1460 = vmatmul.mubr.f32.gmra.mrb[0].mxu0 %v449
      %v1461 = vpop.f32.mrb[0].mxu0
      %v1462 = vadd.f32 0.0, %v1461
      %v1463 = vpop.f32.mrb[0].mxu0
      %v1464 = vadd.f32 0.0, %v1463
      %1465 = vmatprep.mubr.f32.mxu0 %v452
      %1466 = vmatmul.mubr.f32.gmra.mrb[0].mxu0 %v451
      %v1467 = vpop.f32.mrb[0].mxu0
      %v1468 = vadd.f32 0.0, %v1467
      %v1469 = vpop.f32.mrb[0].mxu0
      %v1470 = vadd.f32 0.0, %v1469
      %1471 = vmatprep.mubr.f32.mxu0 %v454
      %1472 = vmatmul.mubr.f32.gmra.mrb[0].mxu0 %v453
      %v1473 = vpop.f32.mrb[0].mxu0
      %v1474 = vadd.f32 0.0, %v1473
      %v1475 = vpop.f32.mrb[0].mxu0
      %v1476 = vadd.f32 0.0, %v1475
      %1477 = vmatprep.mubr.f32.mxu0 %v456
      %1478 = vmatmul.mubr.f32.gmra.mrb[0].mxu0 %v455
      %v1479 = vpop.f32.mrb[0].mxu0
      %v1480 = vadd.f32 0.0, %v1479
      %v1481 = vpop.f32.mrb[0].mxu0
      %v1482 = vadd.f32 0.0, %v1481
      %1483 = vdwg.mxu0
      %1484 = vmatprep.subr.mxu0 %v464
      %1485 = vmatpush1.msra.mxu0 %v463
      %1486 = vmatprep.subr.mxu0 %v472
      %1487 = vmatpush1.msra.mxu0 %v471
      %1488 = vmatprep.subr.mxu0 %v480
      %1489 = vmatpush1.msra.mxu0 %v479
      %1490 = vmatprep.subr.mxu0 %v488
      %1491 = vmatpush1.msra.mxu0 %v487
      %1492 = vmatprep.subr.mxu0 %v496
      %1493 = vmatpush1.msra.mxu0 %v495
      %1494 = vmatprep.subr.mxu0 %v504
      %1495 = vmatpush1.msra.mxu0 %v503
      %1496 = vmatprep.subr.mxu0 %v512
      %1497 = vmatpush1.msra.mxu0 %v511
      %1498 = vmatprep.subr.mxu0 %v520
      %1499 = vmatpush1.msra.mxu0 %v519
      %1500 = vmatprep.subr.mxu0 %v528
      %1501 = vmatpush1.msra.mxu0 %v527
      %1502 = vmatprep.subr.mxu0 %v536
      %1503 = vmatpush1.msra.mxu0 %v535
      %1504 = vmatprep.subr.mxu0 %v544
      %1505 = vmatpush1.msra.mxu0 %v543
      %1506 = vmatprep.subr.mxu0 %v552
      %1507 = vmatpush1.msra.mxu0 %v551
      %1508 = vmatprep.subr.mxu0 %v560
      %1509 = vmatpush1.msra.mxu0 %v559
      %1510 = vmatprep.subr.mxu0 %v568
      %1511 = vmatpush1.msra.mxu0 %v567
      %1512 = vmatprep.subr.mxu0 %v576
      %1513 = vmatpush1.msra.mxu0 %v575
      %1514 = vmatprep.subr.mxu0 %v584
      %1515 = vmatpush1.msra.mxu0 %v583
      %1516 = vmatprep.subr.mxu0 %v592
      %1517 = vmatpush1.msra.mxu0 %v591
      %1518 = vmatprep.subr.mxu0 %v600
      %1519 = vmatpush1.msra.mxu0 %v599
      %1520 = vmatprep.subr.mxu0 %v608
      %1521 = vmatpush1.msra.mxu0 %v607
      %1522 = vmatprep.subr.mxu0 %v616
      %1523 = vmatpush1.msra.mxu0 %v615
      %1524 = vmatprep.subr.mxu0 %v624
      %1525 = vmatpush1.msra.mxu0 %v623
      %1526 = vmatprep.subr.mxu0 %v632
      %1527 = vmatpush1.msra.mxu0 %v631
      %1528 = vmatprep.subr.mxu0 %v640
      %1529 = vmatpush1.msra.mxu0 %v639
      %1530 = vmatprep.subr.mxu0 %v648
      %1531 = vmatpush1.msra.mxu0 %v647
      %1532 = vmatprep.subr.mxu0 %v656
      %1533 = vmatpush1.msra.mxu0 %v655
      %1534 = vmatprep.subr.mxu0 %v664
      %1535 = vmatpush1.msra.mxu0 %v663
      %1536 = vmatprep.subr.mxu0 %v672
      %1537 = vmatpush1.msra.mxu0 %v671
      %1538 = vmatprep.subr.mxu0 %v680
      %1539 = vmatpush1.msra.mxu0 %v679
      %1540 = vmatprep.subr.mxu0 %v688
      %1541 = vmatpush1.msra.mxu0 %v687
      %1542 = vmatprep.subr.mxu0 %v696
      %1543 = vmatpush1.msra.mxu0 %v695
      %1544 = vmatprep.subr.mxu0 %v704
      %1545 = vmatpush1.msra.mxu0 %v703
      %1546 = vmatprep.subr.mxu0 %v712
      %1547 = vmatpush1.msra.mxu0 %v711
      %1548 = vmatprep.mubr.f32.mxu0 %v394
      %1549 = vmatmul.mubr.f32.gmra.mrb[0].mxu0 %v393
      %v1550 = vpop.f32.mrb[0].mxu0
      %v1551 = vadd.f32 0.0, %v1550
      %v1552 = vpop.f32.mrb[0].mxu0
      %v1553 = vadd.f32 0.0, %v1552
      %1554 = vmatprep.mubr.f32.mxu0 %v396
      %1555 = vmatmul.mubr.f32.gmra.mrb[0].mxu0 %v395
      %v1556 = vpop.f32.mrb[0].mxu0
      %v1557 = vadd.f32 0.0, %v1556
      %v1558 = vpop.f32.mrb[0].mxu0
      %v1559 = vadd.f32 0.0, %v1558
      %1560 = vmatprep.mubr.f32.mxu0 %v398
      %1561 = vmatmul.mubr.f32.gmra.mrb[0].mxu0 %v397
      %v1562 = vpop.f32.mrb[0].mxu0
      %v1563 = vadd.f32 0.0, %v1562
      %v1564 = vpop.f32.mrb[0].mxu0
      %v1565 = vadd.f32 0.0, %v1564
      %1566 = vmatprep.mubr.f32.mxu0 %v400
      %1567 = vmatmul.mubr.f32.gmra.mrb[0].mxu0 %v399
      %v1568 = vpop.f32.mrb[0].mxu0
      %v1569 = vadd.f32 0.0, %v1568
      %v1570 = vpop.f32.mrb[0].mxu0
      %v1571 = vadd.f32 0.0, %v1570
      %1572 = vmatprep.mubr.f32.mxu0 %v402
      %1573 = vmatmul.mubr.f32.gmra.mrb[0].mxu0 %v401
      %v1574 = vpop.f32.mrb[0].mxu0
      %v1575 = vadd.f32 0.0, %v1574
      %v1576 = vpop.f32.mrb[0].mxu0
      %v1577 = vadd.f32 0.0, %v1576
      %1578 = vmatprep.mubr.f32.mxu0 %v404
      %1579 = vmatmul.mubr.f32.gmra.mrb[0].mxu0 %v403
      %v1580 = vpop.f32.mrb[0].mxu0
      %v1581 = vadd.f32 0.0, %v1580
      %v1582 = vpop.f32.mrb[0].mxu0
      %v1583 = vadd.f32 0.0, %v1582
      %1584 = vmatprep.mubr.f32.mxu0 %v406
      %1585 = vmatmul.mubr.f32.gmra.mrb[0].mxu0 %v405
      %v1586 = vpop.f32.mrb[0].mxu0
      %v1587 = vadd.f32 0.0, %v1586
      %v1588 = vpop.f32.mrb[0].mxu0
      %v1589 = vadd.f32 0.0, %v1588
      %1590 = vmatprep.mubr.f32.mxu0 %v408
      %1591 = vmatmul.mubr.f32.gmra.mrb[0].mxu0 %v407
      %v1592 = vpop.f32.mrb[0].mxu0
      %v1593 = vadd.f32 0.0, %v1592
      %v1594 = vpop.f32.mrb[0].mxu0
      %v1595 = vadd.f32 0.0, %v1594
      %1596 = vmatprep.mubr.f32.mxu0 %v410
      %1597 = vmatmul.mubr.f32.gmra.mrb[0].mxu0 %v409
      %v1598 = vpop.f32.mrb[0].mxu0
      %v1599 = vadd.f32 0.0, %v1598
      %v1600 = vpop.f32.mrb[0].mxu0
      %v1601 = vadd.f32 0.0, %v1600
      %1602 = vmatprep.mubr.f32.mxu0 %v412
      %1603 = vmatmul.mubr.f32.gmra.mrb[0].mxu0 %v411
      %v1604 = vpop.f32.mrb[0].mxu0
      %v1605 = vadd.f32 0.0, %v1604
      %v1606 = vpop.f32.mrb[0].mxu0
      %v1607 = vadd.f32 0.0, %v1606
      %1608 = vmatprep.mubr.f32.mxu0 %v414
      %1609 = vmatmul.mubr.f32.gmra.mrb[0].mxu0 %v413
      %v1610 = vpop.f32.mrb[0].mxu0
      %v1611 = vadd.f32 0.0, %v1610
      %v1612 = vpop.f32.mrb[0].mxu0
      %v1613 = vadd.f32 0.0, %v1612
      %1614 = vmatprep.mubr.f32.mxu0 %v416
      %1615 = vmatmul.mubr.f32.gmra.mrb[0].mxu0 %v415
      %v1616 = vpop.f32.mrb[0].mxu0
      %v1617 = vadd.f32 0.0, %v1616
      %v1618 = vpop.f32.mrb[0].mxu0
      %v1619 = vadd.f32 0.0, %v1618
      %1620 = vmatprep.mubr.f32.mxu0 %v418
      %1621 = vmatmul.mubr.f32.gmra.mrb[0].mxu0 %v417
      %v1622 = vpop.f32.mrb[0].mxu0
      %v1623 = vadd.f32 0.0, %v1622
      %v1624 = vpop.f32.mrb[0].mxu0
      %v1625 = vadd.f32 0.0, %v1624
      %1626 = vmatprep.mubr.f32.mxu0 %v420
      %1627 = vmatmul.mubr.f32.gmra.mrb[0].mxu0 %v419
      %v1628 = vpop.f32.mrb[0].mxu0
      %v1629 = vadd.f32 0.0, %v1628
      %v1630 = vpop.f32.mrb[0].mxu0
      %v1631 = vadd.f32 0.0, %v1630
      %1632 = vmatprep.mubr.f32.mxu0 %v422
      %1633 = vmatmul.mubr.f32.gmra.mrb[0].mxu0 %v421
      %v1634 = vpop.f32.mrb[0].mxu0
      %v1635 = vadd.f32 0.0, %v1634
      %v1636 = vpop.f32.mrb[0].mxu0
      %v1637 = vadd.f32 0.0, %v1636
      %1638 = vmatprep.mubr.f32.mxu0 %v424
      %1639 = vmatmul.mubr.f32.gmra.mrb[0].mxu0 %v423
      %v1640 = vpop.f32.mrb[0].mxu0
      %v1641 = vadd.f32 0.0, %v1640
      %v1642 = vpop.f32.mrb[0].mxu0
      %v1643 = vadd.f32 0.0, %v1642
      %1644 = vmatprep.mubr.f32.mxu0 %v426
      %1645 = vmatmul.mubr.f32.gmra.mrb[0].mxu0 %v425
      %v1646 = vpop.f32.mrb[0].mxu0
      %v1647 = vadd.f32 0.0, %v1646
      %v1648 = vpop.f32.mrb[0].mxu0
      %v1649 = vadd.f32 0.0, %v1648
      %1650 = vmatprep.mubr.f32.mxu0 %v428
      %1651 = vmatmul.mubr.f32.gmra.mrb[0].mxu0 %v427
      %v1652 = vpop.f32.mrb[0].mxu0
      %v1653 = vadd.f32 0.0, %v1652
      %v1654 = vpop.f32.mrb[0].mxu0
      %v1655 = vadd.f32 0.0, %v1654
      %1656 = vmatprep.mubr.f32.mxu0 %v430
      %1657 = vmatmul.mubr.f32.gmra.mrb[0].mxu0 %v429
      %v1658 = vpop.f32.mrb[0].mxu0
      %v1659 = vadd.f32 0.0, %v1658
      %v1660 = vpop.f32.mrb[0].mxu0
      %v1661 = vadd.f32 0.0, %v1660
      %1662 = vmatprep.mubr.f32.mxu0 %v432
      %1663 = vmatmul.mubr.f32.gmra.mrb[0].mxu0 %v431
      %v1664 = vpop.f32.mrb[0].mxu0
      %v1665 = vadd.f32 0.0, %v1664
      %v1666 = vpop.f32.mrb[0].mxu0
      %v1667 = vadd.f32 0.0, %v1666
      %1668 = vmatprep.mubr.f32.mxu0 %v434
      %1669 = vmatmul.mubr.f32.gmra.mrb[0].mxu0 %v433
      %v1670 = vpop.f32.mrb[0].mxu0
      %v1671 = vadd.f32 0.0, %v1670
      %v1672 = vpop.f32.mrb[0].mxu0
      %v1673 = vadd.f32 0.0, %v1672
      %1674 = vmatprep.mubr.f32.mxu0 %v436
      %1675 = vmatmul.mubr.f32.gmra.mrb[0].mxu0 %v435
      %v1676 = vpop.f32.mrb[0].mxu0
      %v1677 = vadd.f32 0.0, %v1676
      %v1678 = vpop.f32.mrb[0].mxu0
      %v1679 = vadd.f32 0.0, %v1678
      %1680 = vmatprep.mubr.f32.mxu0 %v438
      %1681 = vmatmul.mubr.f32.gmra.mrb[0].mxu0 %v437
      %v1682 = vpop.f32.mrb[0].mxu0
      %v1683 = vadd.f32 0.0, %v1682
      %v1684 = vpop.f32.mrb[0].mxu0
      %v1685 = vadd.f32 0.0, %v1684
      %1686 = vmatprep.mubr.f32.mxu0 %v440
      %1687 = vmatmul.mubr.f32.gmra.mrb[0].mxu0 %v439
      %v1688 = vpop.f32.mrb[0].mxu0
      %v1689 = vadd.f32 0.0, %v1688
      %v1690 = vpop.f32.mrb[0].mxu0
      %v1691 = vadd.f32 0.0, %v1690
      %1692 = vmatprep.mubr.f32.mxu0 %v442
      %1693 = vmatmul.mubr.f32.gmra.mrb[0].mxu0 %v441
      %v1694 = vpop.f32.mrb[0].mxu0
      %v1695 = vadd.f32 0.0, %v1694
      %v1696 = vpop.f32.mrb[0].mxu0
      %v1697 = vadd.f32 0.0, %v1696
      %1698 = vmatprep.mubr.f32.mxu0 %v444
      %1699 = vmatmul.mubr.f32.gmra.mrb[0].mxu0 %v443
      %v1700 = vpop.f32.mrb[0].mxu0
      %v1701 = vadd.f32 0.0, %v1700
      %v1702 = vpop.f32.mrb[0].mxu0
      %v1703 = vadd.f32 0.0, %v1702
      %1704 = vmatprep.mubr.f32.mxu0 %v446
      %1705 = vmatmul.mubr.f32.gmra.mrb[0].mxu0 %v445
      %v1706 = vpop.f32.mrb[0].mxu0
      %v1707 = vadd.f32 0.0, %v1706
      %v1708 = vpop.f32.mrb[0].mxu0
      %v1709 = vadd.f32 0.0, %v1708
      %1710 = vmatprep.mubr.f32.mxu0 %v448
      %1711 = vmatmul.mubr.f32.gmra.mrb[0].mxu0 %v447
      %v1712 = vpop.f32.mrb[0].mxu0
      %v1713 = vadd.f32 0.0, %v1712
      %v1714 = vpop.f32.mrb[0].mxu0
      %v1715 = vadd.f32 0.0, %v1714
      %1716 = vmatprep.mubr.f32.mxu0 %v450
      %1717 = vmatmul.mubr.f32.gmra.mrb[0].mxu0 %v449
      %v1718 = vpop.f32.mrb[0].mxu0
      %v1719 = vadd.f32 0.0, %v1718
      %v1720 = vpop.f32.mrb[0].mxu0
      %v1721 = vadd.f32 0.0, %v1720
      %1722 = vmatprep.mubr.f32.mxu0 %v452
      %1723 = vmatmul.mubr.f32.gmra.mrb[0].mxu0 %v451
      %v1724 = vpop.f32.mrb[0].mxu0
      %v1725 = vadd.f32 0.0, %v1724
      %v1726 = vpop.f32.mrb[0].mxu0
      %v1727 = vadd.f32 0.0, %v1726
      %1728 = vmatprep.mubr.f32.mxu0 %v454
      %1729 = vmatmul.mubr.f32.gmra.mrb[0].mxu0 %v453
      %v1730 = vpop.f32.mrb[0].mxu0
      %v1731 = vadd.f32 0.0, %v1730
      %v1732 = vpop.f32.mrb[0].mxu0
      %v1733 = vadd.f32 0.0, %v1732
      %1734 = vmatprep.mubr.f32.mxu0 %v456
      %1735 = vmatmul.mubr.f32.gmra.mrb[0].mxu0 %v455
      %v1736 = vpop.f32.mrb[0].mxu0
      %v1737 = vadd.f32 0.0, %v1736
      %v1738 = vpop.f32.mrb[0].mxu0
      %v1739 = vadd.f32 0.0, %v1738
      %1740 = vdwg.mxu0
      %v1741 = vmax.f32 %v780, %v1294
      %v1742 = vmax.f32 %v782, %v1296
      %v1743 = vmax.f32 %v1037, %v1551
      %v1744 = vmax.f32 %v1039, %v1553
      %v1745 = vmax.f32 %v786, %v1300
      %v1746 = vmax.f32 %v788, %v1302
      %v1747 = vmax.f32 %v1043, %v1557
      %v1748 = vmax.f32 %v1045, %v1559
      %v1749 = vmax.f32 %v792, %v1306
      %v1750 = vmax.f32 %v794, %v1308
      %v1751 = vmax.f32 %v1049, %v1563
      %v1752 = vmax.f32 %v1051, %v1565
      %v1753 = vmax.f32 %v798, %v1312
      %v1754 = vmax.f32 %v800, %v1314
      %v1755 = vmax.f32 %v1055, %v1569
      %v1756 = vmax.f32 %v1057, %v1571
      %v1757 = vmax.f32 %v804, %v1318
      %v1758 = vmax.f32 %v806, %v1320
      %v1759 = vmax.f32 %v1061, %v1575
      %v1760 = vmax.f32 %v1063, %v1577
      %v1761 = vmax.f32 %v810, %v1324
      %v1762 = vmax.f32 %v812, %v1326
      %v1763 = vmax.f32 %v1067, %v1581
      %v1764 = vmax.f32 %v1069, %v1583
      %v1765 = vmax.f32 %v816, %v1330
      %v1766 = vmax.f32 %v818, %v1332
      %v1767 = vmax.f32 %v1073, %v1587
      %v1768 = vmax.f32 %v1075, %v1589
      %v1769 = vmax.f32 %v822, %v1336
      %v1770 = vmax.f32 %v824, %v1338
      %v1771 = vmax.f32 %v1079, %v1593
      %v1772 = vmax.f32 %v1081, %v1595
      %v1773 = vmax.f32 %v828, %v1342
      %v1774 = vmax.f32 %v830, %v1344
      %v1775 = vmax.f32 %v1085, %v1599
      %v1776 = vmax.f32 %v1087, %v1601
      %v1777 = vmax.f32 %v834, %v1348
      %v1778 = vmax.f32 %v836, %v1350
      %v1779 = vmax.f32 %v1091, %v1605
      %v1780 = vmax.f32 %v1093, %v1607
      %v1781 = vmax.f32 %v840, %v1354
      %v1782 = vmax.f32 %v842, %v1356
      %v1783 = vmax.f32 %v1097, %v1611
      %v1784 = vmax.f32 %v1099, %v1613
      %v1785 = vmax.f32 %v846, %v1360
      %v1786 = vmax.f32 %v848, %v1362
      %v1787 = vmax.f32 %v1103, %v1617
      %v1788 = vmax.f32 %v1105, %v1619
      %v1789 = vmax.f32 %v852, %v1366
      %v1790 = vmax.f32 %v854, %v1368
      %v1791 = vmax.f32 %v1109, %v1623
      %v1792 = vmax.f32 %v1111, %v1625
      %v1793 = vmax.f32 %v858, %v1372
      %v1794 = vmax.f32 %v860, %v1374
      %v1795 = vmax.f32 %v1115, %v1629
      %v1796 = vmax.f32 %v1117, %v1631
      %v1797 = vmax.f32 %v864, %v1378
      %v1798 = vmax.f32 %v866, %v1380
      %v1799 = vmax.f32 %v1121, %v1635
      %v1800 = vmax.f32 %v1123, %v1637
      %v1801 = vmax.f32 %v870, %v1384
      %v1802 = vmax.f32 %v872, %v1386
      %v1803 = vmax.f32 %v1127, %v1641
      %v1804 = vmax.f32 %v1129, %v1643
      %v1805 = vmax.f32 %v876, %v1390
      %v1806 = vmax.f32 %v878, %v1392
      %v1807 = vmax.f32 %v1133, %v1647
      %v1808 = vmax.f32 %v1135, %v1649
      %v1809 = vmax.f32 %v882, %v1396
      %v1810 = vmax.f32 %v884, %v1398
      %v1811 = vmax.f32 %v1139, %v1653
      %v1812 = vmax.f32 %v1141, %v1655
      %v1813 = vmax.f32 %v888, %v1402
      %v1814 = vmax.f32 %v890, %v1404
      %v1815 = vmax.f32 %v1145, %v1659
      %v1816 = vmax.f32 %v1147, %v1661
      %v1817 = vmax.f32 %v894, %v1408
      %v1818 = vmax.f32 %v896, %v1410
      %v1819 = vmax.f32 %v1151, %v1665
      %v1820 = vmax.f32 %v1153, %v1667
      %v1821 = vmax.f32 %v900, %v1414
      %v1822 = vmax.f32 %v902, %v1416
      %v1823 = vmax.f32 %v1157, %v1671
      %v1824 = vmax.f32 %v1159, %v1673
      %v1825 = vmax.f32 %v906, %v1420
      %v1826 = vmax.f32 %v908, %v1422
      %v1827 = vmax.f32 %v1163, %v1677
      %v1828 = vmax.f32 %v1165, %v1679
      %v1829 = vmax.f32 %v912, %v1426
      %v1830 = vmax.f32 %v914, %v1428
      %v1831 = vmax.f32 %v1169, %v1683
      %v1832 = vmax.f32 %v1171, %v1685
      %v1833 = vmax.f32 %v918, %v1432
      %v1834 = vmax.f32 %v920, %v1434
      %v1835 = vmax.f32 %v1175, %v1689
      %v1836 = vmax.f32 %v1177, %v1691
      %v1837 = vmax.f32 %v924, %v1438
      %v1838 = vmax.f32 %v926, %v1440
      %v1839 = vmax.f32 %v1181, %v1695
      %v1840 = vmax.f32 %v1183, %v1697
      %v1841 = vmax.f32 %v930, %v1444
      %v1842 = vmax.f32 %v932, %v1446
      %v1843 = vmax.f32 %v1187, %v1701
      %v1844 = vmax.f32 %v1189, %v1703
      %v1845 = vmax.f32 %v936, %v1450
      %v1846 = vmax.f32 %v938, %v1452
      %v1847 = vmax.f32 %v1193, %v1707
      %v1848 = vmax.f32 %v1195, %v1709
      %v1849 = vmax.f32 %v942, %v1456
      %v1850 = vmax.f32 %v944, %v1458
      %v1851 = vmax.f32 %v1199, %v1713
      %v1852 = vmax.f32 %v1201, %v1715
      %v1853 = vmax.f32 %v948, %v1462
      %v1854 = vmax.f32 %v950, %v1464
      %v1855 = vmax.f32 %v1205, %v1719
      %v1856 = vmax.f32 %v1207, %v1721
      %v1857 = vmax.f32 %v954, %v1468
      %v1858 = vmax.f32 %v956, %v1470
      %v1859 = vmax.f32 %v1211, %v1725
      %v1860 = vmax.f32 %v1213, %v1727
      %v1861 = vmax.f32 %v960, %v1474
      %v1862 = vmax.f32 %v962, %v1476
      %v1863 = vmax.f32 %v1217, %v1731
      %v1864 = vmax.f32 %v1219, %v1733
      %v1865 = vmax.f32 %v966, %v1480
      %v1866 = vmax.f32 %v968, %v1482
      %v1867 = vmax.f32 %v1223, %v1737
      %v1868 = vmax.f32 %v1225, %v1739
      %v1869 = vmax.f32 %v1741, %v1743
      %v1870 = vmax.f32 %v1742, %v1744
      %v1871 = vmax.f32 %v1745, %v1747
      %v1872 = vmax.f32 %v1746, %v1748
      %v1873 = vmax.f32 %v1749, %v1751
      %v1874 = vmax.f32 %v1750, %v1752
      %v1875 = vmax.f32 %v1753, %v1755
      %v1876 = vmax.f32 %v1754, %v1756
      %v1877 = vmax.f32 %v1757, %v1759
      %v1878 = vmax.f32 %v1758, %v1760
      %v1879 = vmax.f32 %v1761, %v1763
      %v1880 = vmax.f32 %v1762, %v1764
      %v1881 = vmax.f32 %v1765, %v1767
      %v1882 = vmax.f32 %v1766, %v1768
      %v1883 = vmax.f32 %v1769, %v1771
      %v1884 = vmax.f32 %v1770, %v1772
      %v1885 = vmax.f32 %v1773, %v1775
      %v1886 = vmax.f32 %v1774, %v1776
      %v1887 = vmax.f32 %v1777, %v1779
      %v1888 = vmax.f32 %v1778, %v1780
      %v1889 = vmax.f32 %v1781, %v1783
      %v1890 = vmax.f32 %v1782, %v1784
      %v1891 = vmax.f32 %v1785, %v1787
      %v1892 = vmax.f32 %v1786, %v1788
      %v1893 = vmax.f32 %v1789, %v1791
      %v1894 = vmax.f32 %v1790, %v1792
      %v1895 = vmax.f32 %v1793, %v1795
      %v1896 = vmax.f32 %v1794, %v1796
      %v1897 = vmax.f32 %v1797, %v1799
      %v1898 = vmax.f32 %v1798, %v1800
      %v1899 = vmax.f32 %v1801, %v1803
      %v1900 = vmax.f32 %v1802, %v1804
      %v1901 = vmax.f32 %v1805, %v1807
      %v1902 = vmax.f32 %v1806, %v1808
      %v1903 = vmax.f32 %v1809, %v1811
      %v1904 = vmax.f32 %v1810, %v1812
      %v1905 = vmax.f32 %v1813, %v1815
      %v1906 = vmax.f32 %v1814, %v1816
      %v1907 = vmax.f32 %v1817, %v1819
      %v1908 = vmax.f32 %v1818, %v1820
      %v1909 = vmax.f32 %v1821, %v1823
      %v1910 = vmax.f32 %v1822, %v1824
      %v1911 = vmax.f32 %v1825, %v1827
      %v1912 = vmax.f32 %v1826, %v1828
      %v1913 = vmax.f32 %v1829, %v1831
      %v1914 = vmax.f32 %v1830, %v1832
      %v1915 = vmax.f32 %v1833, %v1835
      %v1916 = vmax.f32 %v1834, %v1836
      %v1917 = vmax.f32 %v1837, %v1839
      %v1918 = vmax.f32 %v1838, %v1840
      %v1919 = vmax.f32 %v1841, %v1843
      %v1920 = vmax.f32 %v1842, %v1844
      %v1921 = vmax.f32 %v1845, %v1847
      %v1922 = vmax.f32 %v1846, %v1848
      %v1923 = vmax.f32 %v1849, %v1851
      %v1924 = vmax.f32 %v1850, %v1852
      %v1925 = vmax.f32 %v1853, %v1855
      %v1926 = vmax.f32 %v1854, %v1856
      %v1927 = vmax.f32 %v1857, %v1859
      %v1928 = vmax.f32 %v1858, %v1860
      %v1929 = vmax.f32 %v1861, %v1863
      %v1930 = vmax.f32 %v1862, %v1864
      %v1931 = vmax.f32 %v1865, %v1867
      %v1932 = vmax.f32 %v1866, %v1868
      %v1933 = vld [vmem:[%s2] sm:$0x3]
      %v1935 = vlaneseq
      %v1936 = vshrl.u32 %v1935, 7
      %v1937 = vsub.s32 0, %v1936
      %v1938 = vrot.slane %v1933, %v1937
      %v1939 = vlaneseq
      %v1940 = vshrl.u32 %v1939, 7
      %v1941 = vsub.s32 1, %v1940
      %v1942 = vrot.slane %v1933, %v1941
      %v1945 = vadd.f32 %v1869, %v1938
      %v1946 = vadd.f32 %v1870, %v1942
      %v1947 = vadd.f32 %v1871, %v1938
      %v1948 = vadd.f32 %v1872, %v1942
      %v1949 = vadd.f32 %v1873, %v1938
      %v1950 = vadd.f32 %v1874, %v1942
      %v1951 = vadd.f32 %v1875, %v1938
      %v1952 = vadd.f32 %v1876, %v1942
      %v1953 = vadd.f32 %v1877, %v1938
      %v1954 = vadd.f32 %v1878, %v1942
      %v1955 = vadd.f32 %v1879, %v1938
      %v1956 = vadd.f32 %v1880, %v1942
      %v1957 = vadd.f32 %v1881, %v1938
      %v1958 = vadd.f32 %v1882, %v1942
      %v1959 = vadd.f32 %v1883, %v1938
      %v1960 = vadd.f32 %v1884, %v1942
      %v1961 = vadd.f32 %v1885, %v1938
      %v1962 = vadd.f32 %v1886, %v1942
      %v1963 = vadd.f32 %v1887, %v1938
      %v1964 = vadd.f32 %v1888, %v1942
      %v1965 = vadd.f32 %v1889, %v1938
      %v1966 = vadd.f32 %v1890, %v1942
      %v1967 = vadd.f32 %v1891, %v1938
      %v1968 = vadd.f32 %v1892, %v1942
      %v1969 = vadd.f32 %v1893, %v1938
      %v1970 = vadd.f32 %v1894, %v1942
      %v1971 = vadd.f32 %v1895, %v1938
      %v1972 = vadd.f32 %v1896, %v1942
      %v1973 = vadd.f32 %v1897, %v1938
      %v1974 = vadd.f32 %v1898, %v1942
      %v1975 = vadd.f32 %v1899, %v1938
      %v1976 = vadd.f32 %v1900, %v1942
      %v1977 = vadd.f32 %v1901, %v1938
      %v1978 = vadd.f32 %v1902, %v1942
      %v1979 = vadd.f32 %v1903, %v1938
      %v1980 = vadd.f32 %v1904, %v1942
      %v1981 = vadd.f32 %v1905, %v1938
      %v1982 = vadd.f32 %v1906, %v1942
      %v1983 = vadd.f32 %v1907, %v1938
      %v1984 = vadd.f32 %v1908, %v1942
      %v1985 = vadd.f32 %v1909, %v1938
      %v1986 = vadd.f32 %v1910, %v1942
      %v1987 = vadd.f32 %v1911, %v1938
      %v1988 = vadd.f32 %v1912, %v1942
      %v1989 = vadd.f32 %v1913, %v1938
      %v1990 = vadd.f32 %v1914, %v1942
      %v1991 = vadd.f32 %v1915, %v1938
      %v1992 = vadd.f32 %v1916, %v1942
      %v1993 = vadd.f32 %v1917, %v1938
      %v1994 = vadd.f32 %v1918, %v1942
      %v1995 = vadd.f32 %v1919, %v1938
      %v1996 = vadd.f32 %v1920, %v1942
      %v1997 = vadd.f32 %v1921, %v1938
      %v1998 = vadd.f32 %v1922, %v1942
      %v1999 = vadd.f32 %v1923, %v1938
      %v2000 = vadd.f32 %v1924, %v1942
      %v2001 = vadd.f32 %v1925, %v1938
      %v2002 = vadd.f32 %v1926, %v1942
      %v2003 = vadd.f32 %v1927, %v1938
      %v2004 = vadd.f32 %v1928, %v1942
      %v2005 = vadd.f32 %v1929, %v1938
      %v2006 = vadd.f32 %v1930, %v1942
      %v2007 = vadd.f32 %v1931, %v1938
      %v2008 = vadd.f32 %v1932, %v1942
      %v2009 = vmax.f32 %v1945, 0.0
      %v2010 = vmax.f32 %v1946, 0.0
      %v2011 = vmax.f32 %v1947, 0.0
      %v2012 = vmax.f32 %v1948, 0.0
      %v2013 = vmax.f32 %v1949, 0.0
      %v2014 = vmax.f32 %v1950, 0.0
      %v2015 = vmax.f32 %v1951, 0.0
      %v2016 = vmax.f32 %v1952, 0.0
      %v2017 = vmax.f32 %v1953, 0.0
      %v2018 = vmax.f32 %v1954, 0.0
      %v2019 = vmax.f32 %v1955, 0.0
      %v2020 = vmax.f32 %v1956, 0.0
      %v2021 = vmax.f32 %v1957, 0.0
      %v2022 = vmax.f32 %v1958, 0.0
      %v2023 = vmax.f32 %v1959, 0.0
      %v2024 = vmax.f32 %v1960, 0.0
      %v2025 = vmax.f32 %v1961, 0.0
      %v2026 = vmax.f32 %v1962, 0.0
      %v2027 = vmax.f32 %v1963, 0.0
      %v2028 = vmax.f32 %v1964, 0.0
      %v2029 = vmax.f32 %v1965, 0.0
      %v2030 = vmax.f32 %v1966, 0.0
      %v2031 = vmax.f32 %v1967, 0.0
      %v2032 = vmax.f32 %v1968, 0.0
      %v2033 = vmax.f32 %v1969, 0.0
      %v2034 = vmax.f32 %v1970, 0.0
      %v2035 = vmax.f32 %v1971, 0.0
      %v2036 = vmax.f32 %v1972, 0.0
      %v2037 = vmax.f32 %v1973, 0.0
      %v2038 = vmax.f32 %v1974, 0.0
      %v2039 = vmax.f32 %v1975, 0.0
      %v2040 = vmax.f32 %v1976, 0.0
      %v2041 = vmax.f32 %v1977, 0.0
      %v2042 = vmax.f32 %v1978, 0.0
      %v2043 = vmax.f32 %v1979, 0.0
      %v2044 = vmax.f32 %v1980, 0.0
      %v2045 = vmax.f32 %v1981, 0.0
      %v2046 = vmax.f32 %v1982, 0.0
      %v2047 = vmax.f32 %v1983, 0.0
      %v2048 = vmax.f32 %v1984, 0.0
      %v2049 = vmax.f32 %v1985, 0.0
      %v2050 = vmax.f32 %v1986, 0.0
      %v2051 = vmax.f32 %v1987, 0.0
      %v2052 = vmax.f32 %v1988, 0.0
      %v2053 = vmax.f32 %v1989, 0.0
      %v2054 = vmax.f32 %v1990, 0.0
      %v2055 = vmax.f32 %v1991, 0.0
      %v2056 = vmax.f32 %v1992, 0.0
      %v2057 = vmax.f32 %v1993, 0.0
      %v2058 = vmax.f32 %v1994, 0.0
      %v2059 = vmax.f32 %v1995, 0.0
      %v2060 = vmax.f32 %v1996, 0.0
      %v2061 = vmax.f32 %v1997, 0.0
      %v2062 = vmax.f32 %v1998, 0.0
      %v2063 = vmax.f32 %v1999, 0.0
      %v2064 = vmax.f32 %v2000, 0.0
      %v2065 = vmax.f32 %v2001, 0.0
      %v2066 = vmax.f32 %v2002, 0.0
      %v2067 = vmax.f32 %v2003, 0.0
      %v2068 = vmax.f32 %v2004, 0.0
      %v2069 = vmax.f32 %v2005, 0.0
      %v2070 = vmax.f32 %v2006, 0.0
      %v2071 = vmax.f32 %v2007, 0.0
      %v2072 = vmax.f32 %v2008, 0.0
      %vm2137 = vcmask 1046528
      %v2138 = vrot.slane %v2009, 1
      %v2139 = vrot.slane %v2011, 1
      %v2140 = vsel %vm2137, %v2138, %v2139
      %v2141 = vrot.slane %v2010, 1
      %v2142 = vrot.slane %v2012, 1
      %v2143 = vsel %vm2137, %v2141, %v2142
      %v2144 = vrot.slane %v2013, 1
      %v2145 = vsel %vm2137, %v2139, %v2144
      %v2146 = vrot.slane %v2014, 1
      %v2147 = vsel %vm2137, %v2142, %v2146
      %v2148 = vrot.slane %v2015, 1
      %v2149 = vsel %vm2137, %v2144, %v2148
      %v2150 = vrot.slane %v2016, 1
      %v2151 = vsel %vm2137, %v2146, %v2150
      %v2152 = vrot.slane %v2017, 1
      %v2153 = vsel %vm2137, %v2148, %v2152
      %v2154 = vrot.slane %v2018, 1
      %v2155 = vsel %vm2137, %v2150, %v2154
      %v2156 = vrot.slane %v2019, 1
      %v2157 = vsel %vm2137, %v2152, %v2156
      %v2158 = vrot.slane %v2020, 1
      %v2159 = vsel %vm2137, %v2154, %v2158
      %v2160 = vrot.slane %v2021, 1
      %v2161 = vsel %vm2137, %v2156, %v2160
      %v2162 = vrot.slane %v2022, 1
      %v2163 = vsel %vm2137, %v2158, %v2162
      %v2164 = vrot.slane %v2023, 1
      %v2165 = vsel %vm2137, %v2160, %v2164
      %v2166 = vrot.slane %v2024, 1
      %v2167 = vsel %vm2137, %v2162, %v2166
      %v2168 = vrot.slane %v2025, 1
      %v2169 = vsel %vm2137, %v2164, %v2168
      %v2170 = vrot.slane %v2026, 1
      %v2171 = vsel %vm2137, %v2166, %v2170
      %v2172 = vrot.slane %v2027, 1
      %v2173 = vsel %vm2137, %v2168, %v2172
      %v2174 = vrot.slane %v2028, 1
      %v2175 = vsel %vm2137, %v2170, %v2174
      %v2176 = vrot.slane %v2029, 1
      %v2177 = vsel %vm2137, %v2172, %v2176
      %v2178 = vrot.slane %v2030, 1
      %v2179 = vsel %vm2137, %v2174, %v2178
      %v2180 = vrot.slane %v2031, 1
      %v2181 = vsel %vm2137, %v2176, %v2180
      %v2182 = vrot.slane %v2032, 1
      %v2183 = vsel %vm2137, %v2178, %v2182
      %v2184 = vrot.slane %v2033, 1
      %v2185 = vsel %vm2137, %v2180, %v2184
      %v2186 = vrot.slane %v2034, 1
      %v2187 = vsel %vm2137, %v2182, %v2186
      %v2188 = vrot.slane %v2035, 1
      %v2189 = vsel %vm2137, %v2184, %v2188
      %v2190 = vrot.slane %v2036, 1
      %v2191 = vsel %vm2137, %v2186, %v2190
      %v2192 = vrot.slane %v2037, 1
      %v2193 = vsel %vm2137, %v2188, %v2192
      %v2194 = vrot.slane %v2038, 1
      %v2195 = vsel %vm2137, %v2190, %v2194
      %v2196 = vrot.slane %v2039, 1
      %v2197 = vsel %vm2137, %v2192, %v2196
      %v2198 = vrot.slane %v2040, 1
      %v2199 = vsel %vm2137, %v2194, %v2198
      %v2200 = vrot.slane %v2041, 1
      %v2201 = vsel %vm2137, %v2196, %v2200
      %v2202 = vrot.slane %v2042, 1
      %v2203 = vsel %vm2137, %v2198, %v2202
      %v2204 = vrot.slane %v2043, 1
      %v2205 = vsel %vm2137, %v2200, %v2204
      %v2206 = vrot.slane %v2044, 1
      %v2207 = vsel %vm2137, %v2202, %v2206
      %v2208 = vrot.slane %v2045, 1
      %v2209 = vsel %vm2137, %v2204, %v2208
      %v2210 = vrot.slane %v2046, 1
      %v2211 = vsel %vm2137, %v2206, %v2210
      %v2212 = vrot.slane %v2047, 1
      %v2213 = vsel %vm2137, %v2208, %v2212
      %v2214 = vrot.slane %v2048, 1
      %v2215 = vsel %vm2137, %v2210, %v2214
      %v2216 = vrot.slane %v2049, 1
      %v2217 = vsel %vm2137, %v2212, %v2216
      %v2218 = vrot.slane %v2050, 1
      %v2219 = vsel %vm2137, %v2214, %v2218
      %v2220 = vrot.slane %v2051, 1
      %v2221 = vsel %vm2137, %v2216, %v2220
      %v2222 = vrot.slane %v2052, 1
      %v2223 = vsel %vm2137, %v2218, %v2222
      %v2224 = vrot.slane %v2053, 1
      %v2225 = vsel %vm2137, %v2220, %v2224
      %v2226 = vrot.slane %v2054, 1
      %v2227 = vsel %vm2137, %v2222, %v2226
      %v2228 = vrot.slane %v2055, 1
      %v2229 = vsel %vm2137, %v2224, %v2228
      %v2230 = vrot.slane %v2056, 1
      %v2231 = vsel %vm2137, %v2226, %v2230
      %v2232 = vrot.slane %v2057, 1
      %v2233 = vsel %vm2137, %v2228, %v2232
      %v2234 = vrot.slane %v2058, 1
      %v2235 = vsel %vm2137, %v2230, %v2234
      %v2236 = vrot.slane %v2059, 1
      %v2237 = vsel %vm2137, %v2232, %v2236
      %v2238 = vrot.slane %v2060, 1
      %v2239 = vsel %vm2137, %v2234, %v2238
      %v2240 = vrot.slane %v2061, 1
      %v2241 = vsel %vm2137, %v2236, %v2240
      %v2242 = vrot.slane %v2062, 1
      %v2243 = vsel %vm2137, %v2238, %v2242
      %v2244 = vrot.slane %v2063, 1
      %v2245 = vsel %vm2137, %v2240, %v2244
      %v2246 = vrot.slane %v2064, 1
      %v2247 = vsel %vm2137, %v2242, %v2246
      %v2248 = vrot.slane %v2065, 1
      %v2249 = vsel %vm2137, %v2244, %v2248
      %v2250 = vrot.slane %v2066, 1
      %v2251 = vsel %vm2137, %v2246, %v2250
      %v2252 = vrot.slane %v2067, 1
      %v2253 = vsel %vm2137, %v2248, %v2252
      %v2254 = vrot.slane %v2068, 1
      %v2255 = vsel %vm2137, %v2250, %v2254
      %v2256 = vrot.slane %v2069, 1
      %v2257 = vsel %vm2137, %v2252, %v2256
      %v2258 = vrot.slane %v2070, 1
      %v2259 = vsel %vm2137, %v2254, %v2258
      %v2260 = vrot.slane %v2071, 1
      %v2261 = vsel %vm2137, %v2256, %v2260
      %v2262 = vrot.slane %v2072, 1
      %v2263 = vsel %vm2137, %v2258, %v2262
      %v2330 = vsel %vm2137, %v2260, %v2138
      %v2331 = vsel %vm2137, %v2262, %v2141
      %vm2332 = vcmask 1045504
      %v2333 = vrot.slane %v2009, 2
      %v2334 = vrot.slane %v2011, 2
      %v2335 = vsel %vm2332, %v2333, %v2334
      %v2336 = vrot.slane %v2010, 2
      %v2337 = vrot.slane %v2012, 2
      %v2338 = vsel %vm2332, %v2336, %v2337
      %v2339 = vrot.slane %v2013, 2
      %v2340 = vsel %vm2332, %v2334, %v2339
      %v2341 = vrot.slane %v2014, 2
      %v2342 = vsel %vm2332, %v2337, %v2341
      %v2343 = vrot.slane %v2015, 2
      %v2344 = vsel %vm2332, %v2339, %v2343
      %v2345 = vrot.slane %v2016, 2
      %v2346 = vsel %vm2332, %v2341, %v2345
      %v2347 = vrot.slane %v2017, 2
      %v2348 = vsel %vm2332, %v2343, %v2347
      %v2349 = vrot.slane %v2018, 2
      %v2350 = vsel %vm2332, %v2345, %v2349
      %v2351 = vrot.slane %v2019, 2
      %v2352 = vsel %vm2332, %v2347, %v2351
      %v2353 = vrot.slane %v2020, 2
      %v2354 = vsel %vm2332, %v2349, %v2353
      %v2355 = vrot.slane %v2021, 2
      %v2356 = vsel %vm2332, %v2351, %v2355
      %v2357 = vrot.slane %v2022, 2
      %v2358 = vsel %vm2332, %v2353, %v2357
      %v2359 = vrot.slane %v2023, 2
      %v2360 = vsel %vm2332, %v2355, %v2359
      %v2361 = vrot.slane %v2024, 2
      %v2362 = vsel %vm2332, %v2357, %v2361
      %v2363 = vrot.slane %v2025, 2
      %v2364 = vsel %vm2332, %v2359, %v2363
      %v2365 = vrot.slane %v2026, 2
      %v2366 = vsel %vm2332, %v2361, %v2365
      %v2367 = vrot.slane %v2027, 2
      %v2368 = vsel %vm2332, %v2363, %v2367
      %v2369 = vrot.slane %v2028, 2
      %v2370 = vsel %vm2332, %v2365, %v2369
      %v2371 = vrot.slane %v2029, 2
      %v2372 = vsel %vm2332, %v2367, %v2371
      %v2373 = vrot.slane %v2030, 2
      %v2374 = vsel %vm2332, %v2369, %v2373
      %v2375 = vrot.slane %v2031, 2
      %v2376 = vsel %vm2332, %v2371, %v2375
      %v2377 = vrot.slane %v2032, 2
      %v2378 = vsel %vm2332, %v2373, %v2377
      %v2379 = vrot.slane %v2033, 2
      %v2380 = vsel %vm2332, %v2375, %v2379
      %v2381 = vrot.slane %v2034, 2
      %v2382 = vsel %vm2332, %v2377, %v2381
      %v2383 = vrot.slane %v2035, 2
      %v2384 = vsel %vm2332, %v2379, %v2383
      %v2385 = vrot.slane %v2036, 2
      %v2386 = vsel %vm2332, %v2381, %v2385
      %v2387 = vrot.slane %v2037, 2
      %v2388 = vsel %vm2332, %v2383, %v2387
      %v2389 = vrot.slane %v2038, 2
      %v2390 = vsel %vm2332, %v2385, %v2389
      %v2391 = vrot.slane %v2039, 2
      %v2392 = vsel %vm2332, %v2387, %v2391
      %v2393 = vrot.slane %v2040, 2
      %v2394 = vsel %vm2332, %v2389, %v2393
      %v2395 = vrot.slane %v2041, 2
      %v2396 = vsel %vm2332, %v2391, %v2395
      %v2397 = vrot.slane %v2042, 2
      %v2398 = vsel %vm2332, %v2393, %v2397
      %v2399 = vrot.slane %v2043, 2
      %v2400 = vsel %vm2332, %v2395, %v2399
      %v2401 = vrot.slane %v2044, 2
      %v2402 = vsel %vm2332, %v2397, %v2401
      %v2403 = vrot.slane %v2045, 2
      %v2404 = vsel %vm2332, %v2399, %v2403
      %v2405 = vrot.slane %v2046, 2
      %v2406 = vsel %vm2332, %v2401, %v2405
      %v2407 = vrot.slane %v2047, 2
      %v2408 = vsel %vm2332, %v2403, %v2407
      %v2409 = vrot.slane %v2048, 2
      %v2410 = vsel %vm2332, %v2405, %v2409
      %v2411 = vrot.slane %v2049, 2
      %v2412 = vsel %vm2332, %v2407, %v2411
      %v2413 = vrot.slane %v2050, 2
      %v2414 = vsel %vm2332, %v2409, %v2413
      %v2415 = vrot.slane %v2051, 2
      %v2416 = vsel %vm2332, %v2411, %v2415
      %v2417 = vrot.slane %v2052, 2
      %v2418 = vsel %vm2332, %v2413, %v2417
      %v2419 = vrot.slane %v2053, 2
      %v2420 = vsel %vm2332, %v2415, %v2419
      %v2421 = vrot.slane %v2054, 2
      %v2422 = vsel %vm2332, %v2417, %v2421
      %v2423 = vrot.slane %v2055, 2
      %v2424 = vsel %vm2332, %v2419, %v2423
      %v2425 = vrot.slane %v2056, 2
      %v2426 = vsel %vm2332, %v2421, %v2425
      %v2427 = vrot.slane %v2057, 2
      %v2428 = vsel %vm2332, %v2423, %v2427
      %v2429 = vrot.slane %v2058, 2
      %v2430 = vsel %vm2332, %v2425, %v2429
      %v2431 = vrot.slane %v2059, 2
      %v2432 = vsel %vm2332, %v2427, %v2431
      %v2433 = vrot.slane %v2060, 2
      %v2434 = vsel %vm2332, %v2429, %v2433
      %v2435 = vrot.slane %v2061, 2
      %v2436 = vsel %vm2332, %v2431, %v2435
      %v2437 = vrot.slane %v2062, 2
      %v2438 = vsel %vm2332, %v2433, %v2437
      %v2439 = vrot.slane %v2063, 2
      %v2440 = vsel %vm2332, %v2435, %v2439
      %v2441 = vrot.slane %v2064, 2
      %v2442 = vsel %vm2332, %v2437, %v2441
      %v2443 = vrot.slane %v2065, 2
      %v2444 = vsel %vm2332, %v2439, %v2443
      %v2445 = vrot.slane %v2066, 2
      %v2446 = vsel %vm2332, %v2441, %v2445
      %v2447 = vrot.slane %v2067, 2
      %v2448 = vsel %vm2332, %v2443, %v2447
      %v2449 = vrot.slane %v2068, 2
      %v2450 = vsel %vm2332, %v2445, %v2449
      %v2451 = vrot.slane %v2069, 2
      %v2452 = vsel %vm2332, %v2447, %v2451
      %v2453 = vrot.slane %v2070, 2
      %v2454 = vsel %vm2332, %v2449, %v2453
      %v2455 = vrot.slane %v2071, 2
      %v2456 = vsel %vm2332, %v2451, %v2455
      %v2457 = vrot.slane %v2072, 2
      %v2458 = vsel %vm2332, %v2453, %v2457
      %v2525 = vsel %vm2332, %v2455, %v2333
      %v2526 = vsel %vm2332, %v2457, %v2336
      %v2527 = vld [vmem:[%s3] sm:$0xff]
      %v2528 = vld [vmem:[%s3 + $0x8] sm:$0xff]
      %v2529 = vld [vmem:[%s3 + $0x10] sm:$0xff]
      %v2530 = vld [vmem:[%s3 + $0x18] sm:$0xff]
      %v2531 = vld [vmem:[%s3 + $0x20] sm:$0xff]
      %v2532 = vld [vmem:[%s3 + $0x28] sm:$0xff]
      %v2533 = vld [vmem:[%s3 + $0x30] sm:$0xff]
      %v2534 = vld [vmem:[%s3 + $0x38] sm:$0xff]
      %v2535 = vld [vmem:[%s3 + $0x40] sm:$0xff]
      %v2536 = vld [vmem:[%s3 + $0x48] sm:$0xff]
      %v2537 = vld [vmem:[%s3 + $0x50] sm:$0xff]
      %v2538 = vld [vmem:[%s3 + $0x58] sm:$0xff]
      %v2539 = vld [vmem:[%s3 + $0x60] sm:$0xff]
      %v2540 = vld [vmem:[%s3 + $0x68] sm:$0xff]
      %v2541 = vld [vmem:[%s3 + $0x70] sm:$0xff]
      %v2542 = vld [vmem:[%s3 + $0x78] sm:$0xff]
      %v2543 = vld [vmem:[%s3 + $0x80] sm:$0xff]
      %v2544 = vld [vmem:[%s3 + $0x88] sm:$0xff]
      %v2545 = vld [vmem:[%s3 + $0x90] sm:$0xff]
      %v2546 = vld [vmem:[%s3 + $0x98] sm:$0xff]
      %v2547 = vld [vmem:[%s3 + $0xa0] sm:$0xff]
      %v2548 = vld [vmem:[%s3 + $0xa8] sm:$0xff]
      %v2549 = vld [vmem:[%s3 + $0xb0] sm:$0xff]
      %v2550 = vld [vmem:[%s3 + $0xb8] sm:$0xff]
      %v2551 = vld [vmem:[%s3 + $0xc0] sm:$0xff]
      %v2552 = vld [vmem:[%s3 + $0xc8] sm:$0xff]
      %v2553 = vld [vmem:[%s3 + $0xd0] sm:$0xff]
      %v2554 = vld [vmem:[%s3 + $0xd8] sm:$0xff]
      %v2555 = vld [vmem:[%s3 + $0xe0] sm:$0xff]
      %v2556 = vld [vmem:[%s3 + $0xe8] sm:$0xff]
      %v2557 = vld [vmem:[%s3 + $0xf0] sm:$0xff]
      %v2558 = vld [vmem:[%s3 + $0xf8] sm:$0xff]
      %v2559 = vld [vmem:[%s3 + $0x100] sm:$0xff]
      %v2560 = vld [vmem:[%s3 + $0x108] sm:$0xff]
      %v2561 = vld [vmem:[%s3 + $0x110] sm:$0xff]
      %v2562 = vld [vmem:[%s3 + $0x118] sm:$0xff]
      %v2563 = vld [vmem:[%s3 + $0x120] sm:$0xff]
      %v2564 = vld [vmem:[%s3 + $0x128] sm:$0xff]
      %v2565 = vld [vmem:[%s3 + $0x130] sm:$0xff]
      %v2566 = vld [vmem:[%s3 + $0x138] sm:$0xff]
      %v2567 = vld [vmem:[%s3 + $0x140] sm:$0xff]
      %v2568 = vld [vmem:[%s3 + $0x148] sm:$0xff]
      %v2569 = vld [vmem:[%s3 + $0x150] sm:$0xff]
      %v2570 = vld [vmem:[%s3 + $0x158] sm:$0xff]
      %v2571 = vld [vmem:[%s3 + $0x160] sm:$0xff]
      %v2572 = vld [vmem:[%s3 + $0x168] sm:$0xff]
      %v2573 = vld [vmem:[%s3 + $0x170] sm:$0xff]
      %v2574 = vld [vmem:[%s3 + $0x178] sm:$0xff]
      %v2575 = vld [vmem:[%s3 + $0x180] sm:$0xff]
      %v2576 = vld [vmem:[%s3 + $0x188] sm:$0xff]
      %v2577 = vld [vmem:[%s3 + $0x190] sm:$0xff]
      %v2578 = vld [vmem:[%s3 + $0x198] sm:$0xff]
      %v2579 = vld [vmem:[%s3 + $0x1a0] sm:$0xff]
      %v2580 = vld [vmem:[%s3 + $0x1a8] sm:$0xff]
      %v2581 = vld [vmem:[%s3 + $0x1b0] sm:$0xff]
      %v2582 = vld [vmem:[%s3 + $0x1b8] sm:$0xff]
      %v2583 = vld [vmem:[%s3 + $0x1c0] sm:$0xff]
      %v2584 = vld [vmem:[%s3 + $0x1c8] sm:$0xff]
      %v2585 = vld [vmem:[%s3 + $0x1d0] sm:$0xff]
      %v2586 = vld [vmem:[%s3 + $0x1d8] sm:$0xff]
      %v2587 = vld [vmem:[%s3 + $0x1e0] sm:$0xff]
      %v2588 = vld [vmem:[%s3 + $0x1e8] sm:$0xff]
      %v2589 = vld [vmem:[%s3 + $0x1f0] sm:$0xff]
      %v2590 = vld [vmem:[%s3 + $0x1f8] sm:$0xff]
      %v2591 = vld [vmem:[%s3 + $0x200] sm:$0xff]
      %v2592 = vld [vmem:[%s3 + $0x208] sm:$0xff]
      %v2593 = vld [vmem:[%s3 + $0x210] sm:$0xff]
      %v2594 = vld [vmem:[%s3 + $0x218] sm:$0xff]
      %v2595 = vld [vmem:[%s3 + $0x220] sm:$0xff]
      %v2596 = vld [vmem:[%s3 + $0x228] sm:$0xff]
      %v2597 = vld [vmem:[%s3 + $0x230] sm:$0xff]
      %v2598 = vld [vmem:[%s3 + $0x238] sm:$0xff]
      %v2599 = vld [vmem:[%s3 + $0x240] sm:$0xff]
      %v2600 = vld [vmem:[%s3 + $0x248] sm:$0xff]
      %v2601 = vld [vmem:[%s3 + $0x250] sm:$0xff]
      %v2602 = vld [vmem:[%s3 + $0x258] sm:$0xff]
      %v2603 = vld [vmem:[%s3 + $0x260] sm:$0xff]
      %v2604 = vld [vmem:[%s3 + $0x268] sm:$0xff]
      %v2605 = vld [vmem:[%s3 + $0x270] sm:$0xff]
      %v2606 = vld [vmem:[%s3 + $0x278] sm:$0xff]
      %v2607 = vld [vmem:[%s3 + $0x280] sm:$0xff]
      %v2608 = vld [vmem:[%s3 + $0x288] sm:$0xff]
      %v2609 = vld [vmem:[%s3 + $0x290] sm:$0xff]
      %v2610 = vld [vmem:[%s3 + $0x298] sm:$0xff]
      %v2611 = vld [vmem:[%s3 + $0x2a0] sm:$0xff]
      %v2612 = vld [vmem:[%s3 + $0x2a8] sm:$0xff]
      %v2613 = vld [vmem:[%s3 + $0x2b0] sm:$0xff]
      %v2614 = vld [vmem:[%s3 + $0x2b8] sm:$0xff]
      %v2615 = vld [vmem:[%s3 + $0x2c0] sm:$0xff]
      %v2616 = vld [vmem:[%s3 + $0x2c8] sm:$0xff]
      %v2617 = vld [vmem:[%s3 + $0x2d0] sm:$0xff]
      %v2618 = vld [vmem:[%s3 + $0x2d8] sm:$0xff]
      %v2619 = vld [vmem:[%s3 + $0x2e0] sm:$0xff]
      %v2620 = vld [vmem:[%s3 + $0x2e8] sm:$0xff]
      %v2621 = vld [vmem:[%s3 + $0x2f0] sm:$0xff]
      %v2622 = vld [vmem:[%s3 + $0x2f8] sm:$0xff]
      %v2623 = vld [vmem:[%s3 + $0x300] sm:$0xff]
      %v2624 = vld [vmem:[%s3 + $0x308] sm:$0xff]
      %v2625 = vld [vmem:[%s3 + $0x310] sm:$0xff]
      %v2626 = vld [vmem:[%s3 + $0x318] sm:$0xff]
      %v2627 = vld [vmem:[%s3 + $0x320] sm:$0xff]
      %v2628 = vld [vmem:[%s3 + $0x328] sm:$0xff]
      %v2629 = vld [vmem:[%s3 + $0x330] sm:$0xff]
      %v2630 = vld [vmem:[%s3 + $0x338] sm:$0xff]
      %v2631 = vld [vmem:[%s3 + $0x340] sm:$0xff]
      %v2632 = vld [vmem:[%s3 + $0x348] sm:$0xff]
      %v2633 = vld [vmem:[%s3 + $0x350] sm:$0xff]
      %v2634 = vld [vmem:[%s3 + $0x358] sm:$0xff]
      %v2635 = vld [vmem:[%s3 + $0x360] sm:$0xff]
      %v2636 = vld [vmem:[%s3 + $0x368] sm:$0xff]
      %v2637 = vld [vmem:[%s3 + $0x370] sm:$0xff]
      %v2638 = vld [vmem:[%s3 + $0x378] sm:$0xff]
      %v2639 = vld [vmem:[%s3 + $0x380] sm:$0xff]
      %v2640 = vld [vmem:[%s3 + $0x388] sm:$0xff]
      %v2641 = vld [vmem:[%s3 + $0x390] sm:$0xff]
      %v2642 = vld [vmem:[%s3 + $0x398] sm:$0xff]
      %v2643 = vld [vmem:[%s3 + $0x3a0] sm:$0xff]
      %v2644 = vld [vmem:[%s3 + $0x3a8] sm:$0xff]
      %v2645 = vld [vmem:[%s3 + $0x3b0] sm:$0xff]
      %v2646 = vld [vmem:[%s3 + $0x3b8] sm:$0xff]
      %v2647 = vld [vmem:[%s3 + $0x3c0] sm:$0xff]
      %v2648 = vld [vmem:[%s3 + $0x3c8] sm:$0xff]
      %v2649 = vld [vmem:[%s3 + $0x3d0] sm:$0xff]
      %v2650 = vld [vmem:[%s3 + $0x3d8] sm:$0xff]
      %v2651 = vld [vmem:[%s3 + $0x3e0] sm:$0xff]
      %v2652 = vld [vmem:[%s3 + $0x3e8] sm:$0xff]
      %v2653 = vld [vmem:[%s3 + $0x3f0] sm:$0xff]
      %v2654 = vld [vmem:[%s3 + $0x3f8] sm:$0xff]
      %s2655 = scalar_lea.vmem %s3, 1024
      %v2656 = vld [vmem:[%s2655] sm:$0xff]
      %v2657 = vld [vmem:[%s2655 + $0x8] sm:$0xff]
      %v2658 = vld [vmem:[%s2655 + $0x10] sm:$0xff]
      %v2659 = vld [vmem:[%s2655 + $0x18] sm:$0xff]
      %v2660 = vld [vmem:[%s2655 + $0x20] sm:$0xff]
      %v2661 = vld [vmem:[%s2655 + $0x28] sm:$0xff]
      %v2662 = vld [vmem:[%s2655 + $0x30] sm:$0xff]
      %v2663 = vld [vmem:[%s2655 + $0x38] sm:$0xff]
      %v2664 = vld [vmem:[%s2655 + $0x40] sm:$0xff]
      %v2665 = vld [vmem:[%s2655 + $0x48] sm:$0xff]
      %v2666 = vld [vmem:[%s2655 + $0x50] sm:$0xff]
      %v2667 = vld [vmem:[%s2655 + $0x58] sm:$0xff]
      %v2668 = vld [vmem:[%s2655 + $0x60] sm:$0xff]
      %v2669 = vld [vmem:[%s2655 + $0x68] sm:$0xff]
      %v2670 = vld [vmem:[%s2655 + $0x70] sm:$0xff]
      %v2671 = vld [vmem:[%s2655 + $0x78] sm:$0xff]
      %v2672 = vld [vmem:[%s2655 + $0x80] sm:$0xff]
      %v2673 = vld [vmem:[%s2655 + $0x88] sm:$0xff]
      %v2674 = vld [vmem:[%s2655 + $0x90] sm:$0xff]
      %v2675 = vld [vmem:[%s2655 + $0x98] sm:$0xff]
      %v2676 = vld [vmem:[%s2655 + $0xa0] sm:$0xff]
      %v2677 = vld [vmem:[%s2655 + $0xa8] sm:$0xff]
      %v2678 = vld [vmem:[%s2655 + $0xb0] sm:$0xff]
      %v2679 = vld [vmem:[%s2655 + $0xb8] sm:$0xff]
      %v2680 = vld [vmem:[%s2655 + $0xc0] sm:$0xff]
      %v2681 = vld [vmem:[%s2655 + $0xc8] sm:$0xff]
      %v2682 = vld [vmem:[%s2655 + $0xd0] sm:$0xff]
      %v2683 = vld [vmem:[%s2655 + $0xd8] sm:$0xff]
      %v2684 = vld [vmem:[%s2655 + $0xe0] sm:$0xff]
      %v2685 = vld [vmem:[%s2655 + $0xe8] sm:$0xff]
      %v2686 = vld [vmem:[%s2655 + $0xf0] sm:$0xff]
      %v2687 = vld [vmem:[%s2655 + $0xf8] sm:$0xff]
      %v2688 = vld [vmem:[%s2655 + $0x100] sm:$0xff]
      %v2689 = vld [vmem:[%s2655 + $0x108] sm:$0xff]
      %v2690 = vld [vmem:[%s2655 + $0x110] sm:$0xff]
      %v2691 = vld [vmem:[%s2655 + $0x118] sm:$0xff]
      %v2692 = vld [vmem:[%s2655 + $0x120] sm:$0xff]
      %v2693 = vld [vmem:[%s2655 + $0x128] sm:$0xff]
      %v2694 = vld [vmem:[%s2655 + $0x130] sm:$0xff]
      %v2695 = vld [vmem:[%s2655 + $0x138] sm:$0xff]
      %v2696 = vld [vmem:[%s2655 + $0x140] sm:$0xff]
      %v2697 = vld [vmem:[%s2655 + $0x148] sm:$0xff]
      %v2698 = vld [vmem:[%s2655 + $0x150] sm:$0xff]
      %v2699 = vld [vmem:[%s2655 + $0x158] sm:$0xff]
      %v2700 = vld [vmem:[%s2655 + $0x160] sm:$0xff]
      %v2701 = vld [vmem:[%s2655 + $0x168] sm:$0xff]
      %v2702 = vld [vmem:[%s2655 + $0x170] sm:$0xff]
      %v2703 = vld [vmem:[%s2655 + $0x178] sm:$0xff]
      %v2704 = vld [vmem:[%s2655 + $0x180] sm:$0xff]
      %v2705 = vld [vmem:[%s2655 + $0x188] sm:$0xff]
      %v2706 = vld [vmem:[%s2655 + $0x190] sm:$0xff]
      %v2707 = vld [vmem:[%s2655 + $0x198] sm:$0xff]
      %v2708 = vld [vmem:[%s2655 + $0x1a0] sm:$0xff]
      %v2709 = vld [vmem:[%s2655 + $0x1a8] sm:$0xff]
      %v2710 = vld [vmem:[%s2655 + $0x1b0] sm:$0xff]
      %v2711 = vld [vmem:[%s2655 + $0x1b8] sm:$0xff]
      %v2712 = vld [vmem:[%s2655 + $0x1c0] sm:$0xff]
      %v2713 = vld [vmem:[%s2655 + $0x1c8] sm:$0xff]
      %v2714 = vld [vmem:[%s2655 + $0x1d0] sm:$0xff]
      %v2715 = vld [vmem:[%s2655 + $0x1d8] sm:$0xff]
      %v2716 = vld [vmem:[%s2655 + $0x1e0] sm:$0xff]
      %v2717 = vld [vmem:[%s2655 + $0x1e8] sm:$0xff]
      %v2718 = vld [vmem:[%s2655 + $0x1f0] sm:$0xff]
      %v2719 = vld [vmem:[%s2655 + $0x1f8] sm:$0xff]
      %v2720 = vld [vmem:[%s2655 + $0x200] sm:$0xff]
      %v2721 = vld [vmem:[%s2655 + $0x208] sm:$0xff]
      %v2722 = vld [vmem:[%s2655 + $0x210] sm:$0xff]
      %v2723 = vld [vmem:[%s2655 + $0x218] sm:$0xff]
      %v2724 = vld [vmem:[%s2655 + $0x220] sm:$0xff]
      %v2725 = vld [vmem:[%s2655 + $0x228] sm:$0xff]
      %v2726 = vld [vmem:[%s2655 + $0x230] sm:$0xff]
      %v2727 = vld [vmem:[%s2655 + $0x238] sm:$0xff]
      %v2728 = vld [vmem:[%s2655 + $0x240] sm:$0xff]
      %v2729 = vld [vmem:[%s2655 + $0x248] sm:$0xff]
      %v2730 = vld [vmem:[%s2655 + $0x250] sm:$0xff]
      %v2731 = vld [vmem:[%s2655 + $0x258] sm:$0xff]
      %v2732 = vld [vmem:[%s2655 + $0x260] sm:$0xff]
      %v2733 = vld [vmem:[%s2655 + $0x268] sm:$0xff]
      %v2734 = vld [vmem:[%s2655 + $0x270] sm:$0xff]
      %v2735 = vld [vmem:[%s2655 + $0x278] sm:$0xff]
      %v2736 = vld [vmem:[%s2655 + $0x280] sm:$0xff]
      %v2737 = vld [vmem:[%s2655 + $0x288] sm:$0xff]
      %v2738 = vld [vmem:[%s2655 + $0x290] sm:$0xff]
      %v2739 = vld [vmem:[%s2655 + $0x298] sm:$0xff]
      %v2740 = vld [vmem:[%s2655 + $0x2a0] sm:$0xff]
      %v2741 = vld [vmem:[%s2655 + $0x2a8] sm:$0xff]
      %v2742 = vld [vmem:[%s2655 + $0x2b0] sm:$0xff]
      %v2743 = vld [vmem:[%s2655 + $0x2b8] sm:$0xff]
      %v2744 = vld [vmem:[%s2655 + $0x2c0] sm:$0xff]
      %v2745 = vld [vmem:[%s2655 + $0x2c8] sm:$0xff]
      %v2746 = vld [vmem:[%s2655 + $0x2d0] sm:$0xff]
      %v2747 = vld [vmem:[%s2655 + $0x2d8] sm:$0xff]
      %v2748 = vld [vmem:[%s2655 + $0x2e0] sm:$0xff]
      %v2749 = vld [vmem:[%s2655 + $0x2e8] sm:$0xff]
      %v2750 = vld [vmem:[%s2655 + $0x2f0] sm:$0xff]
      %v2751 = vld [vmem:[%s2655 + $0x2f8] sm:$0xff]
      %v2752 = vld [vmem:[%s2655 + $0x300] sm:$0xff]
      %v2753 = vld [vmem:[%s2655 + $0x308] sm:$0xff]
      %v2754 = vld [vmem:[%s2655 + $0x310] sm:$0xff]
      %v2755 = vld [vmem:[%s2655 + $0x318] sm:$0xff]
      %v2756 = vld [vmem:[%s2655 + $0x320] sm:$0xff]
      %v2757 = vld [vmem:[%s2655 + $0x328] sm:$0xff]
      %v2758 = vld [vmem:[%s2655 + $0x330] sm:$0xff]
      %v2759 = vld [vmem:[%s2655 + $0x338] sm:$0xff]
      %v2760 = vld [vmem:[%s2655 + $0x340] sm:$0xff]
      %v2761 = vld [vmem:[%s2655 + $0x348] sm:$0xff]
      %v2762 = vld [vmem:[%s2655 + $0x350] sm:$0xff]
      %v2763 = vld [vmem:[%s2655 + $0x358] sm:$0xff]
      %v2764 = vld [vmem:[%s2655 + $0x360] sm:$0xff]
      %v2765 = vld [vmem:[%s2655 + $0x368] sm:$0xff]
      %v2766 = vld [vmem:[%s2655 + $0x370] sm:$0xff]
      %v2767 = vld [vmem:[%s2655 + $0x378] sm:$0xff]
      %v2768 = vld [vmem:[%s2655 + $0x380] sm:$0xff]
      %v2769 = vld [vmem:[%s2655 + $0x388] sm:$0xff]
      %v2770 = vld [vmem:[%s2655 + $0x390] sm:$0xff]
      %v2771 = vld [vmem:[%s2655 + $0x398] sm:$0xff]
      %v2772 = vld [vmem:[%s2655 + $0x3a0] sm:$0xff]
      %v2773 = vld [vmem:[%s2655 + $0x3a8] sm:$0xff]
      %v2774 = vld [vmem:[%s2655 + $0x3b0] sm:$0xff]
      %v2775 = vld [vmem:[%s2655 + $0x3b8] sm:$0xff]
      %v2776 = vld [vmem:[%s2655 + $0x3c0] sm:$0xff]
      %v2777 = vld [vmem:[%s2655 + $0x3c8] sm:$0xff]
      %v2778 = vld [vmem:[%s2655 + $0x3d0] sm:$0xff]
      %v2779 = vld [vmem:[%s2655 + $0x3d8] sm:$0xff]
      %v2780 = vld [vmem:[%s2655 + $0x3e0] sm:$0xff]
      %v2781 = vld [vmem:[%s2655 + $0x3e8] sm:$0xff]
      %v2782 = vld [vmem:[%s2655 + $0x3f0] sm:$0xff]
      %v2783 = vld [vmem:[%s2655 + $0x3f8] sm:$0xff]
      %2784 = vmatprep.subr.mxu0 %v2657
      %2785 = vmatpush1.msra.mxu0 %v2656
      %2786 = vmatprep.subr.mxu0 %v2661
      %2787 = vmatpush1.msra.mxu0 %v2660
      %2788 = vmatprep.subr.mxu0 %v2665
      %2789 = vmatpush1.msra.mxu0 %v2664
      %2790 = vmatprep.subr.mxu0 %v2669
      %2791 = vmatpush1.msra.mxu0 %v2668
      %2792 = vmatprep.subr.mxu0 %v2673
      %2793 = vmatpush1.msra.mxu0 %v2672
      %2794 = vmatprep.subr.mxu0 %v2677
      %2795 = vmatpush1.msra.mxu0 %v2676
      %2796 = vmatprep.subr.mxu0 %v2681
      %2797 = vmatpush1.msra.mxu0 %v2680
      %2798 = vmatprep.subr.mxu0 %v2685
      %2799 = vmatpush1.msra.mxu0 %v2684
      %2800 = vmatprep.subr.mxu0 %v2689
      %2801 = vmatpush1.msra.mxu0 %v2688
      %2802 = vmatprep.subr.mxu0 %v2693
      %2803 = vmatpush1.msra.mxu0 %v2692
      %2804 = vmatprep.subr.mxu0 %v2697
      %2805 = vmatpush1.msra.mxu0 %v2696
      %2806 = vmatprep.subr.mxu0 %v2701
      %2807 = vmatpush1.msra.mxu0 %v2700
      %2808 = vmatprep.subr.mxu0 %v2705
      %2809 = vmatpush1.msra.mxu0 %v2704
      %2810 = vmatprep.subr.mxu0 %v2709
      %2811 = vmatpush1.msra.mxu0 %v2708
      %2812 = vmatprep.subr.mxu0 %v2713
      %2813 = vmatpush1.msra.mxu0 %v2712
      %2814 = vmatprep.subr.mxu0 %v2717
      %2815 = vmatpush1.msra.mxu0 %v2716
      %2816 = vmatprep.subr.mxu0 %v2721
      %2817 = vmatpush1.msra.mxu0 %v2720
      %2818 = vmatprep.subr.mxu0 %v2725
      %2819 = vmatpush1.msra.mxu0 %v2724
      %2820 = vmatprep.subr.mxu0 %v2729
      %2821 = vmatpush1.msra.mxu0 %v2728
      %2822 = vmatprep.subr.mxu0 %v2733
      %2823 = vmatpush1.msra.mxu0 %v2732
      %2824 = vmatprep.subr.mxu0 %v2737
      %2825 = vmatpush1.msra.mxu0 %v2736
      %2826 = vmatprep.subr.mxu0 %v2741
      %2827 = vmatpush1.msra.mxu0 %v2740
      %2828 = vmatprep.subr.mxu0 %v2745
      %2829 = vmatpush1.msra.mxu0 %v2744
      %2830 = vmatprep.subr.mxu0 %v2749
      %2831 = vmatpush1.msra.mxu0 %v2748
      %2832 = vmatprep.subr.mxu0 %v2753
      %2833 = vmatpush1.msra.mxu0 %v2752
      %2834 = vmatprep.subr.mxu0 %v2757
      %2835 = vmatpush1.msra.mxu0 %v2756
      %2836 = vmatprep.subr.mxu0 %v2761
      %2837 = vmatpush1.msra.mxu0 %v2760
      %2838 = vmatprep.subr.mxu0 %v2765
      %2839 = vmatpush1.msra.mxu0 %v2764
      %2840 = vmatprep.subr.mxu0 %v2769
      %2841 = vmatpush1.msra.mxu0 %v2768
      %2842 = vmatprep.subr.mxu0 %v2773
      %2843 = vmatpush1.msra.mxu0 %v2772
      %2844 = vmatprep.subr.mxu0 %v2777
      %2845 = vmatpush1.msra.mxu0 %v2776
      %2846 = vmatprep.subr.mxu0 %v2781
      %2847 = vmatpush1.msra.mxu0 %v2780
      %2848 = vmatprep.mubr.f32.mxu0 %v2143
      %2849 = vmatmul.mubr.f32.gmra.mrb[0].mxu0 %v2140
      %v2850 = vpop.f32.mrb[0].mxu0
      %v2851 = vadd.f32 0.0, %v2850
      %v2852 = vpop.f32.mrb[0].mxu0
      %v2853 = vadd.f32 0.0, %v2852
      %2854 = vmatprep.mubr.f32.mxu0 %v2147
      %2855 = vmatmul.mubr.f32.gmra.mrb[0].mxu0 %v2145
      %v2856 = vpop.f32.mrb[0].mxu0
      %v2857 = vadd.f32 0.0, %v2856
      %v2858 = vpop.f32.mrb[0].mxu0
      %v2859 = vadd.f32 0.0, %v2858
      %2860 = vmatprep.mubr.f32.mxu0 %v2151
      %2861 = vmatmul.mubr.f32.gmra.mrb[0].mxu0 %v2149
      %v2862 = vpop.f32.mrb[0].mxu0
      %v2863 = vadd.f32 0.0, %v2862
      %v2864 = vpop.f32.mrb[0].mxu0
      %v2865 = vadd.f32 0.0, %v2864
      %2866 = vmatprep.mubr.f32.mxu0 %v2155
      %2867 = vmatmul.mubr.f32.gmra.mrb[0].mxu0 %v2153
      %v2868 = vpop.f32.mrb[0].mxu0
      %v2869 = vadd.f32 0.0, %v2868
      %v2870 = vpop.f32.mrb[0].mxu0
      %v2871 = vadd.f32 0.0, %v2870
      %2872 = vmatprep.mubr.f32.mxu0 %v2159
      %2873 = vmatmul.mubr.f32.gmra.mrb[0].mxu0 %v2157
      %v2874 = vpop.f32.mrb[0].mxu0
      %v2875 = vadd.f32 0.0, %v2874
      %v2876 = vpop.f32.mrb[0].mxu0
      %v2877 = vadd.f32 0.0, %v2876
      %2878 = vmatprep.mubr.f32.mxu0 %v2163
      %2879 = vmatmul.mubr.f32.gmra.mrb[0].mxu0 %v2161
      %v2880 = vpop.f32.mrb[0].mxu0
      %v2881 = vadd.f32 0.0, %v2880
      %v2882 = vpop.f32.mrb[0].mxu0
      %v2883 = vadd.f32 0.0, %v2882
      %2884 = vmatprep.mubr.f32.mxu0 %v2167
      %2885 = vmatmul.mubr.f32.gmra.mrb[0].mxu0 %v2165
      %v2886 = vpop.f32.mrb[0].mxu0
      %v2887 = vadd.f32 0.0, %v2886
      %v2888 = vpop.f32.mrb[0].mxu0
      %v2889 = vadd.f32 0.0, %v2888
      %2890 = vmatprep.mubr.f32.mxu0 %v2171
      %2891 = vmatmul.mubr.f32.gmra.mrb[0].mxu0 %v2169
      %v2892 = vpop.f32.mrb[0].mxu0
      %v2893 = vadd.f32 0.0, %v2892
      %v2894 = vpop.f32.mrb[0].mxu0
      %v2895 = vadd.f32 0.0, %v2894
      %2896 = vmatprep.mubr.f32.mxu0 %v2175
      %2897 = vmatmul.mubr.f32.gmra.mrb[0].mxu0 %v2173
      %v2898 = vpop.f32.mrb[0].mxu0
      %v2899 = vadd.f32 0.0, %v2898
      %v2900 = vpop.f32.mrb[0].mxu0
      %v2901 = vadd.f32 0.0, %v2900
      %2902 = vmatprep.mubr.f32.mxu0 %v2179
      %2903 = vmatmul.mubr.f32.gmra.mrb[0].mxu0 %v2177
      %v2904 = vpop.f32.mrb[0].mxu0
      %v2905 = vadd.f32 0.0, %v2904
      %v2906 = vpop.f32.mrb[0].mxu0
      %v2907 = vadd.f32 0.0, %v2906
      %2908 = vmatprep.mubr.f32.mxu0 %v2183
      %2909 = vmatmul.mubr.f32.gmra.mrb[0].mxu0 %v2181
      %v2910 = vpop.f32.mrb[0].mxu0
      %v2911 = vadd.f32 0.0, %v2910
      %v2912 = vpop.f32.mrb[0].mxu0
      %v2913 = vadd.f32 0.0, %v2912
      %2914 = vmatprep.mubr.f32.mxu0 %v2187
      %2915 = vmatmul.mubr.f32.gmra.mrb[0].mxu0 %v2185
      %v2916 = vpop.f32.mrb[0].mxu0
      %v2917 = vadd.f32 0.0, %v2916
      %v2918 = vpop.f32.mrb[0].mxu0
      %v2919 = vadd.f32 0.0, %v2918
      %2920 = vmatprep.mubr.f32.mxu0 %v2191
      %2921 = vmatmul.mubr.f32.gmra.mrb[0].mxu0 %v2189
      %v2922 = vpop.f32.mrb[0].mxu0
      %v2923 = vadd.f32 0.0, %v2922
      %v2924 = vpop.f32.mrb[0].mxu0
      %v2925 = vadd.f32 0.0, %v2924
      %2926 = vmatprep.mubr.f32.mxu0 %v2195
      %2927 = vmatmul.mubr.f32.gmra.mrb[0].mxu0 %v2193
      %v2928 = vpop.f32.mrb[0].mxu0
      %v2929 = vadd.f32 0.0, %v2928
      %v2930 = vpop.f32.mrb[0].mxu0
      %v2931 = vadd.f32 0.0, %v2930
      %2932 = vmatprep.mubr.f32.mxu0 %v2199
      %2933 = vmatmul.mubr.f32.gmra.mrb[0].mxu0 %v2197
      %v2934 = vpop.f32.mrb[0].mxu0
      %v2935 = vadd.f32 0.0, %v2934
      %v2936 = vpop.f32.mrb[0].mxu0
      %v2937 = vadd.f32 0.0, %v2936
      %2938 = vmatprep.mubr.f32.mxu0 %v2203
      %2939 = vmatmul.mubr.f32.gmra.mrb[0].mxu0 %v2201
      %v2940 = vpop.f32.mrb[0].mxu0
      %v2941 = vadd.f32 0.0, %v2940
      %v2942 = vpop.f32.mrb[0].mxu0
      %v2943 = vadd.f32 0.0, %v2942
      %2944 = vmatprep.mubr.f32.mxu0 %v2207
      %2945 = vmatmul.mubr.f32.gmra.mrb[0].mxu0 %v2205
      %v2946 = vpop.f32.mrb[0].mxu0
      %v2947 = vadd.f32 0.0, %v2946
      %v2948 = vpop.f32.mrb[0].mxu0
      %v2949 = vadd.f32 0.0, %v2948
      %2950 = vmatprep.mubr.f32.mxu0 %v2211
      %2951 = vmatmul.mubr.f32.gmra.mrb[0].mxu0 %v2209
      %v2952 = vpop.f32.mrb[0].mxu0
      %v2953 = vadd.f32 0.0, %v2952
      %v2954 = vpop.f32.mrb[0].mxu0
      %v2955 = vadd.f32 0.0, %v2954
      %2956 = vmatprep.mubr.f32.mxu0 %v2215
      %2957 = vmatmul.mubr.f32.gmra.mrb[0].mxu0 %v2213
      %v2958 = vpop.f32.mrb[0].mxu0
      %v2959 = vadd.f32 0.0, %v2958
      %v2960 = vpop.f32.mrb[0].mxu0
      %v2961 = vadd.f32 0.0, %v2960
      %2962 = vmatprep.mubr.f32.mxu0 %v2219
      %2963 = vmatmul.mubr.f32.gmra.mrb[0].mxu0 %v2217
      %v2964 = vpop.f32.mrb[0].mxu0
      %v2965 = vadd.f32 0.0, %v2964
      %v2966 = vpop.f32.mrb[0].mxu0
      %v2967 = vadd.f32 0.0, %v2966
      %2968 = vmatprep.mubr.f32.mxu0 %v2223
      %2969 = vmatmul.mubr.f32.gmra.mrb[0].mxu0 %v2221
      %v2970 = vpop.f32.mrb[0].mxu0
      %v2971 = vadd.f32 0.0, %v2970
      %v2972 = vpop.f32.mrb[0].mxu0
      %v2973 = vadd.f32 0.0, %v2972
      %2974 = vmatprep.mubr.f32.mxu0 %v2227
      %2975 = vmatmul.mubr.f32.gmra.mrb[0].mxu0 %v2225
      %v2976 = vpop.f32.mrb[0].mxu0
      %v2977 = vadd.f32 0.0, %v2976
      %v2978 = vpop.f32.mrb[0].mxu0
      %v2979 = vadd.f32 0.0, %v2978
      %2980 = vmatprep.mubr.f32.mxu0 %v2231
      %2981 = vmatmul.mubr.f32.gmra.mrb[0].mxu0 %v2229
      %v2982 = vpop.f32.mrb[0].mxu0
      %v2983 = vadd.f32 0.0, %v2982
      %v2984 = vpop.f32.mrb[0].mxu0
      %v2985 = vadd.f32 0.0, %v2984
      %2986 = vmatprep.mubr.f32.mxu0 %v2235
      %2987 = vmatmul.mubr.f32.gmra.mrb[0].mxu0 %v2233
      %v2988 = vpop.f32.mrb[0].mxu0
      %v2989 = vadd.f32 0.0, %v2988
      %v2990 = vpop.f32.mrb[0].mxu0
      %v2991 = vadd.f32 0.0, %v2990
      %2992 = vmatprep.mubr.f32.mxu0 %v2239
      %2993 = vmatmul.mubr.f32.gmra.mrb[0].mxu0 %v2237
      %v2994 = vpop.f32.mrb[0].mxu0
      %v2995 = vadd.f32 0.0, %v2994
      %v2996 = vpop.f32.mrb[0].mxu0
      %v2997 = vadd.f32 0.0, %v2996
      %2998 = vmatprep.mubr.f32.mxu0 %v2243
      %2999 = vmatmul.mubr.f32.gmra.mrb[0].mxu0 %v2241
      %v3000 = vpop.f32.mrb[0].mxu0
      %v3001 = vadd.f32 0.0, %v3000
      %v3002 = vpop.f32.mrb[0].mxu0
      %v3003 = vadd.f32 0.0, %v3002
      %3004 = vmatprep.mubr.f32.mxu0 %v2247
      %3005 = vmatmul.mubr.f32.gmra.mrb[0].mxu0 %v2245
      %v3006 = vpop.f32.mrb[0].mxu0
      %v3007 = vadd.f32 0.0, %v3006
      %v3008 = vpop.f32.mrb[0].mxu0
      %v3009 = vadd.f32 0.0, %v3008
      %3010 = vmatprep.mubr.f32.mxu0 %v2251
      %3011 = vmatmul.mubr.f32.gmra.mrb[0].mxu0 %v2249
      %v3012 = vpop.f32.mrb[0].mxu0
      %v3013 = vadd.f32 0.0, %v3012
      %v3014 = vpop.f32.mrb[0].mxu0
      %v3015 = vadd.f32 0.0, %v3014
      %3016 = vmatprep.mubr.f32.mxu0 %v2255
      %3017 = vmatmul.mubr.f32.gmra.mrb[0].mxu0 %v2253
      %v3018 = vpop.f32.mrb[0].mxu0
      %v3019 = vadd.f32 0.0, %v3018
      %v3020 = vpop.f32.mrb[0].mxu0
      %v3021 = vadd.f32 0.0, %v3020
      %3022 = vmatprep.mubr.f32.mxu0 %v2259
      %3023 = vmatmul.mubr.f32.gmra.mrb[0].mxu0 %v2257
      %v3024 = vpop.f32.mrb[0].mxu0
      %v3025 = vadd.f32 0.0, %v3024
      %v3026 = vpop.f32.mrb[0].mxu0
      %v3027 = vadd.f32 0.0, %v3026
      %3028 = vmatprep.mubr.f32.mxu0 %v2263
      %3029 = vmatmul.mubr.f32.gmra.mrb[0].mxu0 %v2261
      %v3030 = vpop.f32.mrb[0].mxu0
      %v3031 = vadd.f32 0.0, %v3030
      %v3032 = vpop.f32.mrb[0].mxu0
      %v3033 = vadd.f32 0.0, %v3032
      %3034 = vmatprep.mubr.f32.mxu0 %v2331
      %3035 = vmatmul.mubr.f32.gmra.mrb[0].mxu0 %v2330
      %v3036 = vpop.f32.mrb[0].mxu0
      %v3037 = vadd.f32 0.0, %v3036
      %v3038 = vpop.f32.mrb[0].mxu0
      %v3039 = vadd.f32 0.0, %v3038
      %3040 = vdwg.mxu0
      %3041 = vmatprep.subr.mxu0 %v2659
      %3042 = vmatpush1.msra.mxu0 %v2658
      %3043 = vmatprep.subr.mxu0 %v2663
      %3044 = vmatpush1.msra.mxu0 %v2662
      %3045 = vmatprep.subr.mxu0 %v2667
      %3046 = vmatpush1.msra.mxu0 %v2666
      %3047 = vmatprep.subr.mxu0 %v2671
      %3048 = vmatpush1.msra.mxu0 %v2670
      %3049 = vmatprep.subr.mxu0 %v2675
      %3050 = vmatpush1.msra.mxu0 %v2674
      %3051 = vmatprep.subr.mxu0 %v2679
      %3052 = vmatpush1.msra.mxu0 %v2678
      %3053 = vmatprep.subr.mxu0 %v2683
      %3054 = vmatpush1.msra.mxu0 %v2682
      %3055 = vmatprep.subr.mxu0 %v2687
      %3056 = vmatpush1.msra.mxu0 %v2686
      %3057 = vmatprep.subr.mxu0 %v2691
      %3058 = vmatpush1.msra.mxu0 %v2690
      %3059 = vmatprep.subr.mxu0 %v2695
      %3060 = vmatpush1.msra.mxu0 %v2694
      %3061 = vmatprep.subr.mxu0 %v2699
      %3062 = vmatpush1.msra.mxu0 %v2698
      %3063 = vmatprep.subr.mxu0 %v2703
      %3064 = vmatpush1.msra.mxu0 %v2702
      %3065 = vmatprep.subr.mxu0 %v2707
      %3066 = vmatpush1.msra.mxu0 %v2706
      %3067 = vmatprep.subr.mxu0 %v2711
      %3068 = vmatpush1.msra.mxu0 %v2710
      %3069 = vmatprep.subr.mxu0 %v2715
      %3070 = vmatpush1.msra.mxu0 %v2714
      %3071 = vmatprep.subr.mxu0 %v2719
      %3072 = vmatpush1.msra.mxu0 %v2718
      %3073 = vmatprep.subr.mxu0 %v2723
      %3074 = vmatpush1.msra.mxu0 %v2722
      %3075 = vmatprep.subr.mxu0 %v2727
      %3076 = vmatpush1.msra.mxu0 %v2726
      %3077 = vmatprep.subr.mxu0 %v2731
      %3078 = vmatpush1.msra.mxu0 %v2730
      %3079 = vmatprep.subr.mxu0 %v2735
      %3080 = vmatpush1.msra.mxu0 %v2734
      %3081 = vmatprep.subr.mxu0 %v2739
      %3082 = vmatpush1.msra.mxu0 %v2738
      %3083 = vmatprep.subr.mxu0 %v2743
      %3084 = vmatpush1.msra.mxu0 %v2742
      %3085 = vmatprep.subr.mxu0 %v2747
      %3086 = vmatpush1.msra.mxu0 %v2746
      %3087 = vmatprep.subr.mxu0 %v2751
      %3088 = vmatpush1.msra.mxu0 %v2750
      %3089 = vmatprep.subr.mxu0 %v2755
      %3090 = vmatpush1.msra.mxu0 %v2754
      %3091 = vmatprep.subr.mxu0 %v2759
      %3092 = vmatpush1.msra.mxu0 %v2758
      %3093 = vmatprep.subr.mxu0 %v2763
      %3094 = vmatpush1.msra.mxu0 %v2762
      %3095 = vmatprep.subr.mxu0 %v2767
      %3096 = vmatpush1.msra.mxu0 %v2766
      %3097 = vmatprep.subr.mxu0 %v2771
      %3098 = vmatpush1.msra.mxu0 %v2770
      %3099 = vmatprep.subr.mxu0 %v2775
      %3100 = vmatpush1.msra.mxu0 %v2774
      %3101 = vmatprep.subr.mxu0 %v2779
      %3102 = vmatpush1.msra.mxu0 %v2778
      %3103 = vmatprep.subr.mxu0 %v2783
      %3104 = vmatpush1.msra.mxu0 %v2782
      %3105 = vmatprep.mubr.f32.mxu0 %v2143
      %3106 = vmatmul.mubr.f32.gmra.mrb[0].mxu0 %v2140
      %v3107 = vpop.f32.mrb[0].mxu0
      %v3108 = vadd.f32 0.0, %v3107
      %v3109 = vpop.f32.mrb[0].mxu0
      %v3110 = vadd.f32 0.0, %v3109
      %3111 = vmatprep.mubr.f32.mxu0 %v2147
      %3112 = vmatmul.mubr.f32.gmra.mrb[0].mxu0 %v2145
      %v3113 = vpop.f32.mrb[0].mxu0
      %v3114 = vadd.f32 0.0, %v3113
      %v3115 = vpop.f32.mrb[0].mxu0
      %v3116 = vadd.f32 0.0, %v3115
      %3117 = vmatprep.mubr.f32.mxu0 %v2151
      %3118 = vmatmul.mubr.f32.gmra.mrb[0].mxu0 %v2149
      %v3119 = vpop.f32.mrb[0].mxu0
      %v3120 = vadd.f32 0.0, %v3119
      %v3121 = vpop.f32.mrb[0].mxu0
      %v3122 = vadd.f32 0.0, %v3121
      %3123 = vmatprep.mubr.f32.mxu0 %v2155
      %3124 = vmatmul.mubr.f32.gmra.mrb[0].mxu0 %v2153
      %v3125 = vpop.f32.mrb[0].mxu0
      %v3126 = vadd.f32 0.0, %v3125
      %v3127 = vpop.f32.mrb[0].mxu0
      %v3128 = vadd.f32 0.0, %v3127
      %3129 = vmatprep.mubr.f32.mxu0 %v2159
      %3130 = vmatmul.mubr.f32.gmra.mrb[0].mxu0 %v2157
      %v3131 = vpop.f32.mrb[0].mxu0
      %v3132 = vadd.f32 0.0, %v3131
      %v3133 = vpop.f32.mrb[0].mxu0
      %v3134 = vadd.f32 0.0, %v3133
      %3135 = vmatprep.mubr.f32.mxu0 %v2163
      %3136 = vmatmul.mubr.f32.gmra.mrb[0].mxu0 %v2161
      %v3137 = vpop.f32.mrb[0].mxu0
      %v3138 = vadd.f32 0.0, %v3137
      %v3139 = vpop.f32.mrb[0].mxu0
      %v3140 = vadd.f32 0.0, %v3139
      %3141 = vmatprep.mubr.f32.mxu0 %v2167
      %3142 = vmatmul.mubr.f32.gmra.mrb[0].mxu0 %v2165
      %v3143 = vpop.f32.mrb[0].mxu0
      %v3144 = vadd.f32 0.0, %v3143
      %v3145 = vpop.f32.mrb[0].mxu0
      %v3146 = vadd.f32 0.0, %v3145
      %3147 = vmatprep.mubr.f32.mxu0 %v2171
      %3148 = vmatmul.mubr.f32.gmra.mrb[0].mxu0 %v2169
      %v3149 = vpop.f32.mrb[0].mxu0
      %v3150 = vadd.f32 0.0, %v3149
      %v3151 = vpop.f32.mrb[0].mxu0
      %v3152 = vadd.f32 0.0, %v3151
      %3153 = vmatprep.mubr.f32.mxu0 %v2175
      %3154 = vmatmul.mubr.f32.gmra.mrb[0].mxu0 %v2173
      %v3155 = vpop.f32.mrb[0].mxu0
      %v3156 = vadd.f32 0.0, %v3155
      %v3157 = vpop.f32.mrb[0].mxu0
      %v3158 = vadd.f32 0.0, %v3157
      %3159 = vmatprep.mubr.f32.mxu0 %v2179
      %3160 = vmatmul.mubr.f32.gmra.mrb[0].mxu0 %v2177
      %v3161 = vpop.f32.mrb[0].mxu0
      %v3162 = vadd.f32 0.0, %v3161
      %v3163 = vpop.f32.mrb[0].mxu0
      %v3164 = vadd.f32 0.0, %v3163
      %3165 = vmatprep.mubr.f32.mxu0 %v2183
      %3166 = vmatmul.mubr.f32.gmra.mrb[0].mxu0 %v2181
      %v3167 = vpop.f32.mrb[0].mxu0
      %v3168 = vadd.f32 0.0, %v3167
      %v3169 = vpop.f32.mrb[0].mxu0
      %v3170 = vadd.f32 0.0, %v3169
      %3171 = vmatprep.mubr.f32.mxu0 %v2187
      %3172 = vmatmul.mubr.f32.gmra.mrb[0].mxu0 %v2185
      %v3173 = vpop.f32.mrb[0].mxu0
      %v3174 = vadd.f32 0.0, %v3173
      %v3175 = vpop.f32.mrb[0].mxu0
      %v3176 = vadd.f32 0.0, %v3175
      %3177 = vmatprep.mubr.f32.mxu0 %v2191
      %3178 = vmatmul.mubr.f32.gmra.mrb[0].mxu0 %v2189
      %v3179 = vpop.f32.mrb[0].mxu0
      %v3180 = vadd.f32 0.0, %v3179
      %v3181 = vpop.f32.mrb[0].mxu0
      %v3182 = vadd.f32 0.0, %v3181
      %3183 = vmatprep.mubr.f32.mxu0 %v2195
      %3184 = vmatmul.mubr.f32.gmra.mrb[0].mxu0 %v2193
      %v3185 = vpop.f32.mrb[0].mxu0
      %v3186 = vadd.f32 0.0, %v3185
      %v3187 = vpop.f32.mrb[0].mxu0
      %v3188 = vadd.f32 0.0, %v3187
      %3189 = vmatprep.mubr.f32.mxu0 %v2199
      %3190 = vmatmul.mubr.f32.gmra.mrb[0].mxu0 %v2197
      %v3191 = vpop.f32.mrb[0].mxu0
      %v3192 = vadd.f32 0.0, %v3191
      %v3193 = vpop.f32.mrb[0].mxu0
      %v3194 = vadd.f32 0.0, %v3193
      %3195 = vmatprep.mubr.f32.mxu0 %v2203
      %3196 = vmatmul.mubr.f32.gmra.mrb[0].mxu0 %v2201
      %v3197 = vpop.f32.mrb[0].mxu0
      %v3198 = vadd.f32 0.0, %v3197
      %v3199 = vpop.f32.mrb[0].mxu0
      %v3200 = vadd.f32 0.0, %v3199
      %3201 = vmatprep.mubr.f32.mxu0 %v2207
      %3202 = vmatmul.mubr.f32.gmra.mrb[0].mxu0 %v2205
      %v3203 = vpop.f32.mrb[0].mxu0
      %v3204 = vadd.f32 0.0, %v3203
      %v3205 = vpop.f32.mrb[0].mxu0
      %v3206 = vadd.f32 0.0, %v3205
      %3207 = vmatprep.mubr.f32.mxu0 %v2211
      %3208 = vmatmul.mubr.f32.gmra.mrb[0].mxu0 %v2209
      %v3209 = vpop.f32.mrb[0].mxu0
      %v3210 = vadd.f32 0.0, %v3209
      %v3211 = vpop.f32.mrb[0].mxu0
      %v3212 = vadd.f32 0.0, %v3211
      %3213 = vmatprep.mubr.f32.mxu0 %v2215
      %3214 = vmatmul.mubr.f32.gmra.mrb[0].mxu0 %v2213
      %v3215 = vpop.f32.mrb[0].mxu0
      %v3216 = vadd.f32 0.0, %v3215
      %v3217 = vpop.f32.mrb[0].mxu0
      %v3218 = vadd.f32 0.0, %v3217
      %3219 = vmatprep.mubr.f32.mxu0 %v2219
      %3220 = vmatmul.mubr.f32.gmra.mrb[0].mxu0 %v2217
      %v3221 = vpop.f32.mrb[0].mxu0
      %v3222 = vadd.f32 0.0, %v3221
      %v3223 = vpop.f32.mrb[0].mxu0
      %v3224 = vadd.f32 0.0, %v3223
      %3225 = vmatprep.mubr.f32.mxu0 %v2223
      %3226 = vmatmul.mubr.f32.gmra.mrb[0].mxu0 %v2221
      %v3227 = vpop.f32.mrb[0].mxu0
      %v3228 = vadd.f32 0.0, %v3227
      %v3229 = vpop.f32.mrb[0].mxu0
      %v3230 = vadd.f32 0.0, %v3229
      %3231 = vmatprep.mubr.f32.mxu0 %v2227
      %3232 = vmatmul.mubr.f32.gmra.mrb[0].mxu0 %v2225
      %v3233 = vpop.f32.mrb[0].mxu0
      %v3234 = vadd.f32 0.0, %v3233
      %v3235 = vpop.f32.mrb[0].mxu0
      %v3236 = vadd.f32 0.0, %v3235
      %3237 = vmatprep.mubr.f32.mxu0 %v2231
      %3238 = vmatmul.mubr.f32.gmra.mrb[0].mxu0 %v2229
      %v3239 = vpop.f32.mrb[0].mxu0
      %v3240 = vadd.f32 0.0, %v3239
      %v3241 = vpop.f32.mrb[0].mxu0
      %v3242 = vadd.f32 0.0, %v3241
      %3243 = vmatprep.mubr.f32.mxu0 %v2235
      %3244 = vmatmul.mubr.f32.gmra.mrb[0].mxu0 %v2233
      %v3245 = vpop.f32.mrb[0].mxu0
      %v3246 = vadd.f32 0.0, %v3245
      %v3247 = vpop.f32.mrb[0].mxu0
      %v3248 = vadd.f32 0.0, %v3247
      %3249 = vmatprep.mubr.f32.mxu0 %v2239
      %3250 = vmatmul.mubr.f32.gmra.mrb[0].mxu0 %v2237
      %v3251 = vpop.f32.mrb[0].mxu0
      %v3252 = vadd.f32 0.0, %v3251
      %v3253 = vpop.f32.mrb[0].mxu0
      %v3254 = vadd.f32 0.0, %v3253
      %3255 = vmatprep.mubr.f32.mxu0 %v2243
      %3256 = vmatmul.mubr.f32.gmra.mrb[0].mxu0 %v2241
      %v3257 = vpop.f32.mrb[0].mxu0
      %v3258 = vadd.f32 0.0, %v3257
      %v3259 = vpop.f32.mrb[0].mxu0
      %v3260 = vadd.f32 0.0, %v3259
      %3261 = vmatprep.mubr.f32.mxu0 %v2247
      %3262 = vmatmul.mubr.f32.gmra.mrb[0].mxu0 %v2245
      %v3263 = vpop.f32.mrb[0].mxu0
      %v3264 = vadd.f32 0.0, %v3263
      %v3265 = vpop.f32.mrb[0].mxu0
      %v3266 = vadd.f32 0.0, %v3265
      %3267 = vmatprep.mubr.f32.mxu0 %v2251
      %3268 = vmatmul.mubr.f32.gmra.mrb[0].mxu0 %v2249
      %v3269 = vpop.f32.mrb[0].mxu0
      %v3270 = vadd.f32 0.0, %v3269
      %v3271 = vpop.f32.mrb[0].mxu0
      %v3272 = vadd.f32 0.0, %v3271
      %3273 = vmatprep.mubr.f32.mxu0 %v2255
      %3274 = vmatmul.mubr.f32.gmra.mrb[0].mxu0 %v2253
      %v3275 = vpop.f32.mrb[0].mxu0
      %v3276 = vadd.f32 0.0, %v3275
      %v3277 = vpop.f32.mrb[0].mxu0
      %v3278 = vadd.f32 0.0, %v3277
      %3279 = vmatprep.mubr.f32.mxu0 %v2259
      %3280 = vmatmul.mubr.f32.gmra.mrb[0].mxu0 %v2257
      %v3281 = vpop.f32.mrb[0].mxu0
      %v3282 = vadd.f32 0.0, %v3281
      %v3283 = vpop.f32.mrb[0].mxu0
      %v3284 = vadd.f32 0.0, %v3283
      %3285 = vmatprep.mubr.f32.mxu0 %v2263
      %3286 = vmatmul.mubr.f32.gmra.mrb[0].mxu0 %v2261
      %v3287 = vpop.f32.mrb[0].mxu0
      %v3288 = vadd.f32 0.0, %v3287
      %v3289 = vpop.f32.mrb[0].mxu0
      %v3290 = vadd.f32 0.0, %v3289
      %3291 = vmatprep.mubr.f32.mxu0 %v2331
      %3292 = vmatmul.mubr.f32.gmra.mrb[0].mxu0 %v2330
      %v3293 = vpop.f32.mrb[0].mxu0
      %v3294 = vadd.f32 0.0, %v3293
      %v3295 = vpop.f32.mrb[0].mxu0
      %v3296 = vadd.f32 0.0, %v3295
      %3297 = vdwg.mxu0
      %3298 = vmatprep.subr.mxu0 %v2528
      %3299 = vmatpush1.msra.mxu0 %v2527
      %3300 = vmatprep.subr.mxu0 %v2532
      %3301 = vmatpush1.msra.mxu0 %v2531
      %3302 = vmatprep.subr.mxu0 %v2536
      %3303 = vmatpush1.msra.mxu0 %v2535
      %3304 = vmatprep.subr.mxu0 %v2540
      %3305 = vmatpush1.msra.mxu0 %v2539
      %3306 = vmatprep.subr.mxu0 %v2544
      %3307 = vmatpush1.msra.mxu0 %v2543
      %3308 = vmatprep.subr.mxu0 %v2548
      %3309 = vmatpush1.msra.mxu0 %v2547
      %3310 = vmatprep.subr.mxu0 %v2552
      %3311 = vmatpush1.msra.mxu0 %v2551
      %3312 = vmatprep.subr.mxu0 %v2556
      %3313 = vmatpush1.msra.mxu0 %v2555
      %3314 = vmatprep.subr.mxu0 %v2560
      %3315 = vmatpush1.msra.mxu0 %v2559
      %3316 = vmatprep.subr.mxu0 %v2564
      %3317 = vmatpush1.msra.mxu0 %v2563
      %3318 = vmatprep.subr.mxu0 %v2568
      %3319 = vmatpush1.msra.mxu0 %v2567
      %3320 = vmatprep.subr.mxu0 %v2572
      %3321 = vmatpush1.msra.mxu0 %v2571
      %3322 = vmatprep.subr.mxu0 %v2576
      %3323 = vmatpush1.msra.mxu0 %v2575
      %3324 = vmatprep.subr.mxu0 %v2580
      %3325 = vmatpush1.msra.mxu0 %v2579
      %3326 = vmatprep.subr.mxu0 %v2584
      %3327 = vmatpush1.msra.mxu0 %v2583
      %3328 = vmatprep.subr.mxu0 %v2588
      %3329 = vmatpush1.msra.mxu0 %v2587
      %3330 = vmatprep.subr.mxu0 %v2592
      %3331 = vmatpush1.msra.mxu0 %v2591
      %3332 = vmatprep.subr.mxu0 %v2596
      %3333 = vmatpush1.msra.mxu0 %v2595
      %3334 = vmatprep.subr.mxu0 %v2600
      %3335 = vmatpush1.msra.mxu0 %v2599
      %3336 = vmatprep.subr.mxu0 %v2604
      %3337 = vmatpush1.msra.mxu0 %v2603
      %3338 = vmatprep.subr.mxu0 %v2608
      %3339 = vmatpush1.msra.mxu0 %v2607
      %3340 = vmatprep.subr.mxu0 %v2612
      %3341 = vmatpush1.msra.mxu0 %v2611
      %3342 = vmatprep.subr.mxu0 %v2616
      %3343 = vmatpush1.msra.mxu0 %v2615
      %3344 = vmatprep.subr.mxu0 %v2620
      %3345 = vmatpush1.msra.mxu0 %v2619
      %3346 = vmatprep.subr.mxu0 %v2624
      %3347 = vmatpush1.msra.mxu0 %v2623
      %3348 = vmatprep.subr.mxu0 %v2628
      %3349 = vmatpush1.msra.mxu0 %v2627
      %3350 = vmatprep.subr.mxu0 %v2632
      %3351 = vmatpush1.msra.mxu0 %v2631
      %3352 = vmatprep.subr.mxu0 %v2636
      %3353 = vmatpush1.msra.mxu0 %v2635
      %3354 = vmatprep.subr.mxu0 %v2640
      %3355 = vmatpush1.msra.mxu0 %v2639
      %3356 = vmatprep.subr.mxu0 %v2644
      %3357 = vmatpush1.msra.mxu0 %v2643
      %3358 = vmatprep.subr.mxu0 %v2648
      %3359 = vmatpush1.msra.mxu0 %v2647
      %3360 = vmatprep.subr.mxu0 %v2652
      %3361 = vmatpush1.msra.mxu0 %v2651
      %3362 = vmatprep.mubr.f32.mxu0 %v2010
      %3363 = vmatmul.mubr.f32.gmra.mrb[0].mxu0 %v2009
      %v3364 = vpop.f32.mrb[0].mxu0
      %v3365 = vadd.f32 %v2851, %v3364
      %v3366 = vpop.f32.mrb[0].mxu0
      %v3367 = vadd.f32 %v2853, %v3366
      %3368 = vmatprep.mubr.f32.mxu0 %v2012
      %3369 = vmatmul.mubr.f32.gmra.mrb[0].mxu0 %v2011
      %v3370 = vpop.f32.mrb[0].mxu0
      %v3371 = vadd.f32 %v2857, %v3370
      %v3372 = vpop.f32.mrb[0].mxu0
      %v3373 = vadd.f32 %v2859, %v3372
      %3374 = vmatprep.mubr.f32.mxu0 %v2014
      %3375 = vmatmul.mubr.f32.gmra.mrb[0].mxu0 %v2013
      %v3376 = vpop.f32.mrb[0].mxu0
      %v3377 = vadd.f32 %v2863, %v3376
      %v3378 = vpop.f32.mrb[0].mxu0
      %v3379 = vadd.f32 %v2865, %v3378
      %3380 = vmatprep.mubr.f32.mxu0 %v2016
      %3381 = vmatmul.mubr.f32.gmra.mrb[0].mxu0 %v2015
      %v3382 = vpop.f32.mrb[0].mxu0
      %v3383 = vadd.f32 %v2869, %v3382
      %v3384 = vpop.f32.mrb[0].mxu0
      %v3385 = vadd.f32 %v2871, %v3384
      %3386 = vmatprep.mubr.f32.mxu0 %v2018
      %3387 = vmatmul.mubr.f32.gmra.mrb[0].mxu0 %v2017
      %v3388 = vpop.f32.mrb[0].mxu0
      %v3389 = vadd.f32 %v2875, %v3388
      %v3390 = vpop.f32.mrb[0].mxu0
      %v3391 = vadd.f32 %v2877, %v3390
      %3392 = vmatprep.mubr.f32.mxu0 %v2020
      %3393 = vmatmul.mubr.f32.gmra.mrb[0].mxu0 %v2019
      %v3394 = vpop.f32.mrb[0].mxu0
      %v3395 = vadd.f32 %v2881, %v3394
      %v3396 = vpop.f32.mrb[0].mxu0
      %v3397 = vadd.f32 %v2883, %v3396
      %3398 = vmatprep.mubr.f32.mxu0 %v2022
      %3399 = vmatmul.mubr.f32.gmra.mrb[0].mxu0 %v2021
      %v3400 = vpop.f32.mrb[0].mxu0
      %v3401 = vadd.f32 %v2887, %v3400
      %v3402 = vpop.f32.mrb[0].mxu0
      %v3403 = vadd.f32 %v2889, %v3402
      %3404 = vmatprep.mubr.f32.mxu0 %v2024
      %3405 = vmatmul.mubr.f32.gmra.mrb[0].mxu0 %v2023
      %v3406 = vpop.f32.mrb[0].mxu0
      %v3407 = vadd.f32 %v2893, %v3406
      %v3408 = vpop.f32.mrb[0].mxu0
      %v3409 = vadd.f32 %v2895, %v3408
      %3410 = vmatprep.mubr.f32.mxu0 %v2026
      %3411 = vmatmul.mubr.f32.gmra.mrb[0].mxu0 %v2025
      %v3412 = vpop.f32.mrb[0].mxu0
      %v3413 = vadd.f32 %v2899, %v3412
      %v3414 = vpop.f32.mrb[0].mxu0
      %v3415 = vadd.f32 %v2901, %v3414
      %3416 = vmatprep.mubr.f32.mxu0 %v2028
      %3417 = vmatmul.mubr.f32.gmra.mrb[0].mxu0 %v2027
      %v3418 = vpop.f32.mrb[0].mxu0
      %v3419 = vadd.f32 %v2905, %v3418
      %v3420 = vpop.f32.mrb[0].mxu0
      %v3421 = vadd.f32 %v2907, %v3420
      %3422 = vmatprep.mubr.f32.mxu0 %v2030
      %3423 = vmatmul.mubr.f32.gmra.mrb[0].mxu0 %v2029
      %v3424 = vpop.f32.mrb[0].mxu0
      %v3425 = vadd.f32 %v2911, %v3424
      %v3426 = vpop.f32.mrb[0].mxu0
      %v3427 = vadd.f32 %v2913, %v3426
      %3428 = vmatprep.mubr.f32.mxu0 %v2032
      %3429 = vmatmul.mubr.f32.gmra.mrb[0].mxu0 %v2031
      %v3430 = vpop.f32.mrb[0].mxu0
      %v3431 = vadd.f32 %v2917, %v3430
      %v3432 = vpop.f32.mrb[0].mxu0
      %v3433 = vadd.f32 %v2919, %v3432
      %3434 = vmatprep.mubr.f32.mxu0 %v2034
      %3435 = vmatmul.mubr.f32.gmra.mrb[0].mxu0 %v2033
      %v3436 = vpop.f32.mrb[0].mxu0
      %v3437 = vadd.f32 %v2923, %v3436
      %v3438 = vpop.f32.mrb[0].mxu0
      %v3439 = vadd.f32 %v2925, %v3438
      %3440 = vmatprep.mubr.f32.mxu0 %v2036
      %3441 = vmatmul.mubr.f32.gmra.mrb[0].mxu0 %v2035
      %v3442 = vpop.f32.mrb[0].mxu0
      %v3443 = vadd.f32 %v2929, %v3442
      %v3444 = vpop.f32.mrb[0].mxu0
      %v3445 = vadd.f32 %v2931, %v3444
      %3446 = vmatprep.mubr.f32.mxu0 %v2038
      %3447 = vmatmul.mubr.f32.gmra.mrb[0].mxu0 %v2037
      %v3448 = vpop.f32.mrb[0].mxu0
      %v3449 = vadd.f32 %v2935, %v3448
      %v3450 = vpop.f32.mrb[0].mxu0
      %v3451 = vadd.f32 %v2937, %v3450
      %3452 = vmatprep.mubr.f32.mxu0 %v2040
      %3453 = vmatmul.mubr.f32.gmra.mrb[0].mxu0 %v2039
      %v3454 = vpop.f32.mrb[0].mxu0
      %v3455 = vadd.f32 %v2941, %v3454
      %v3456 = vpop.f32.mrb[0].mxu0
      %v3457 = vadd.f32 %v2943, %v3456
      %3458 = vmatprep.mubr.f32.mxu0 %v2042
      %3459 = vmatmul.mubr.f32.gmra.mrb[0].mxu0 %v2041
      %v3460 = vpop.f32.mrb[0].mxu0
      %v3461 = vadd.f32 %v2947, %v3460
      %v3462 = vpop.f32.mrb[0].mxu0
      %v3463 = vadd.f32 %v2949, %v3462
      %3464 = vmatprep.mubr.f32.mxu0 %v2044
      %3465 = vmatmul.mubr.f32.gmra.mrb[0].mxu0 %v2043
      %v3466 = vpop.f32.mrb[0].mxu0
      %v3467 = vadd.f32 %v2953, %v3466
      %v3468 = vpop.f32.mrb[0].mxu0
      %v3469 = vadd.f32 %v2955, %v3468
      %3470 = vmatprep.mubr.f32.mxu0 %v2046
      %3471 = vmatmul.mubr.f32.gmra.mrb[0].mxu0 %v2045
      %v3472 = vpop.f32.mrb[0].mxu0
      %v3473 = vadd.f32 %v2959, %v3472
      %v3474 = vpop.f32.mrb[0].mxu0
      %v3475 = vadd.f32 %v2961, %v3474
      %3476 = vmatprep.mubr.f32.mxu0 %v2048
      %3477 = vmatmul.mubr.f32.gmra.mrb[0].mxu0 %v2047
      %v3478 = vpop.f32.mrb[0].mxu0
      %v3479 = vadd.f32 %v2965, %v3478
      %v3480 = vpop.f32.mrb[0].mxu0
      %v3481 = vadd.f32 %v2967, %v3480
      %3482 = vmatprep.mubr.f32.mxu0 %v2050
      %3483 = vmatmul.mubr.f32.gmra.mrb[0].mxu0 %v2049
      %v3484 = vpop.f32.mrb[0].mxu0
      %v3485 = vadd.f32 %v2971, %v3484
      %v3486 = vpop.f32.mrb[0].mxu0
      %v3487 = vadd.f32 %v2973, %v3486
      %3488 = vmatprep.mubr.f32.mxu0 %v2052
      %3489 = vmatmul.mubr.f32.gmra.mrb[0].mxu0 %v2051
      %v3490 = vpop.f32.mrb[0].mxu0
      %v3491 = vadd.f32 %v2977, %v3490
      %v3492 = vpop.f32.mrb[0].mxu0
      %v3493 = vadd.f32 %v2979, %v3492
      %3494 = vmatprep.mubr.f32.mxu0 %v2054
      %3495 = vmatmul.mubr.f32.gmra.mrb[0].mxu0 %v2053
      %v3496 = vpop.f32.mrb[0].mxu0
      %v3497 = vadd.f32 %v2983, %v3496
      %v3498 = vpop.f32.mrb[0].mxu0
      %v3499 = vadd.f32 %v2985, %v3498
      %3500 = vmatprep.mubr.f32.mxu0 %v2056
      %3501 = vmatmul.mubr.f32.gmra.mrb[0].mxu0 %v2055
      %v3502 = vpop.f32.mrb[0].mxu0
      %v3503 = vadd.f32 %v2989, %v3502
      %v3504 = vpop.f32.mrb[0].mxu0
      %v3505 = vadd.f32 %v2991, %v3504
      %3506 = vmatprep.mubr.f32.mxu0 %v2058
      %3507 = vmatmul.mubr.f32.gmra.mrb[0].mxu0 %v2057
      %v3508 = vpop.f32.mrb[0].mxu0
      %v3509 = vadd.f32 %v2995, %v3508
      %v3510 = vpop.f32.mrb[0].mxu0
      %v3511 = vadd.f32 %v2997, %v3510
      %3512 = vmatprep.mubr.f32.mxu0 %v2060
      %3513 = vmatmul.mubr.f32.gmra.mrb[0].mxu0 %v2059
      %v3514 = vpop.f32.mrb[0].mxu0
      %v3515 = vadd.f32 %v3001, %v3514
      %v3516 = vpop.f32.mrb[0].mxu0
      %v3517 = vadd.f32 %v3003, %v3516
      %3518 = vmatprep.mubr.f32.mxu0 %v2062
      %3519 = vmatmul.mubr.f32.gmra.mrb[0].mxu0 %v2061
      %v3520 = vpop.f32.mrb[0].mxu0
      %v3521 = vadd.f32 %v3007, %v3520
      %v3522 = vpop.f32.mrb[0].mxu0
      %v3523 = vadd.f32 %v3009, %v3522
      %3524 = vmatprep.mubr.f32.mxu0 %v2064
      %3525 = vmatmul.mubr.f32.gmra.mrb[0].mxu0 %v2063
      %v3526 = vpop.f32.mrb[0].mxu0
      %v3527 = vadd.f32 %v3013, %v3526
      %v3528 = vpop.f32.mrb[0].mxu0
      %v3529 = vadd.f32 %v3015, %v3528
      %3530 = vmatprep.mubr.f32.mxu0 %v2066
      %3531 = vmatmul.mubr.f32.gmra.mrb[0].mxu0 %v2065
      %v3532 = vpop.f32.mrb[0].mxu0
      %v3533 = vadd.f32 %v3019, %v3532
      %v3534 = vpop.f32.mrb[0].mxu0
      %v3535 = vadd.f32 %v3021, %v3534
      %3536 = vmatprep.mubr.f32.mxu0 %v2068
      %3537 = vmatmul.mubr.f32.gmra.mrb[0].mxu0 %v2067
      %v3538 = vpop.f32.mrb[0].mxu0
      %v3539 = vadd.f32 %v3025, %v3538
      %v3540 = vpop.f32.mrb[0].mxu0
      %v3541 = vadd.f32 %v3027, %v3540
      %3542 = vmatprep.mubr.f32.mxu0 %v2070
      %3543 = vmatmul.mubr.f32.gmra.mrb[0].mxu0 %v2069
      %v3544 = vpop.f32.mrb[0].mxu0
      %v3545 = vadd.f32 %v3031, %v3544
      %v3546 = vpop.f32.mrb[0].mxu0
      %v3547 = vadd.f32 %v3033, %v3546
      %3548 = vmatprep.mubr.f32.mxu0 %v2072
      %3549 = vmatmul.mubr.f32.gmra.mrb[0].mxu0 %v2071
      %v3550 = vpop.f32.mrb[0].mxu0
      %v3551 = vadd.f32 %v3037, %v3550
      %v3552 = vpop.f32.mrb[0].mxu0
      %v3553 = vadd.f32 %v3039, %v3552
      %3554 = vdwg.mxu0
      %3555 = vmatprep.subr.mxu0 %v2530
      %3556 = vmatpush1.msra.mxu0 %v2529
      %3557 = vmatprep.subr.mxu0 %v2534
      %3558 = vmatpush1.msra.mxu0 %v2533
      %3559 = vmatprep.subr.mxu0 %v2538
      %3560 = vmatpush1.msra.mxu0 %v2537
      %3561 = vmatprep.subr.mxu0 %v2542
      %3562 = vmatpush1.msra.mxu0 %v2541
      %3563 = vmatprep.subr.mxu0 %v2546
      %3564 = vmatpush1.msra.mxu0 %v2545
      %3565 = vmatprep.subr.mxu0 %v2550
      %3566 = vmatpush1.msra.mxu0 %v2549
      %3567 = vmatprep.subr.mxu0 %v2554
      %3568 = vmatpush1.msra.mxu0 %v2553
      %3569 = vmatprep.subr.mxu0 %v2558
      %3570 = vmatpush1.msra.mxu0 %v2557
      %3571 = vmatprep.subr.mxu0 %v2562
      %3572 = vmatpush1.msra.mxu0 %v2561
      %3573 = vmatprep.subr.mxu0 %v2566
      %3574 = vmatpush1.msra.mxu0 %v2565
      %3575 = vmatprep.subr.mxu0 %v2570
      %3576 = vmatpush1.msra.mxu0 %v2569
      %3577 = vmatprep.subr.mxu0 %v2574
      %3578 = vmatpush1.msra.mxu0 %v2573
      %3579 = vmatprep.subr.mxu0 %v2578
      %3580 = vmatpush1.msra.mxu0 %v2577
      %3581 = vmatprep.subr.mxu0 %v2582
      %3582 = vmatpush1.msra.mxu0 %v2581
      %3583 = vmatprep.subr.mxu0 %v2586
      %3584 = vmatpush1.msra.mxu0 %v2585
      %3585 = vmatprep.subr.mxu0 %v2590
      %3586 = vmatpush1.msra.mxu0 %v2589
      %3587 = vmatprep.subr.mxu0 %v2594
      %3588 = vmatpush1.msra.mxu0 %v2593
      %3589 = vmatprep.subr.mxu0 %v2598
      %3590 = vmatpush1.msra.mxu0 %v2597
      %3591 = vmatprep.subr.mxu0 %v2602
      %3592 = vmatpush1.msra.mxu0 %v2601
      %3593 = vmatprep.subr.mxu0 %v2606
      %3594 = vmatpush1.msra.mxu0 %v2605
      %3595 = vmatprep.subr.mxu0 %v2610
      %3596 = vmatpush1.msra.mxu0 %v2609
      %3597 = vmatprep.subr.mxu0 %v2614
      %3598 = vmatpush1.msra.mxu0 %v2613
      %3599 = vmatprep.subr.mxu0 %v2618
      %3600 = vmatpush1.msra.mxu0 %v2617
      %3601 = vmatprep.subr.mxu0 %v2622
      %3602 = vmatpush1.msra.mxu0 %v2621
      %3603 = vmatprep.subr.mxu0 %v2626
      %3604 = vmatpush1.msra.mxu0 %v2625
      %3605 = vmatprep.subr.mxu0 %v2630
      %3606 = vmatpush1.msra.mxu0 %v2629
      %3607 = vmatprep.subr.mxu0 %v2634
      %3608 = vmatpush1.msra.mxu0 %v2633
      %3609 = vmatprep.subr.mxu0 %v2638
      %3610 = vmatpush1.msra.mxu0 %v2637
      %3611 = vmatprep.subr.mxu0 %v2642
      %3612 = vmatpush1.msra.mxu0 %v2641
      %3613 = vmatprep.subr.mxu0 %v2646
      %3614 = vmatpush1.msra.mxu0 %v2645
      %3615 = vmatprep.subr.mxu0 %v2650
      %3616 = vmatpush1.msra.mxu0 %v2649
      %3617 = vmatprep.subr.mxu0 %v2654
      %3618 = vmatpush1.msra.mxu0 %v2653
      %3619 = vmatprep.mubr.f32.mxu0 %v2010
      %3620 = vmatmul.mubr.f32.gmra.mrb[0].mxu0 %v2009
      %v3621 = vpop.f32.mrb[0].mxu0
      %v3622 = vadd.f32 %v3108, %v3621
      %v3623 = vpop.f32.mrb[0].mxu0
      %v3624 = vadd.f32 %v3110, %v3623
      %3625 = vmatprep.mubr.f32.mxu0 %v2012
      %3626 = vmatmul.mubr.f32.gmra.mrb[0].mxu0 %v2011
      %v3627 = vpop.f32.mrb[0].mxu0
      %v3628 = vadd.f32 %v3114, %v3627
      %v3629 = vpop.f32.mrb[0].mxu0
      %v3630 = vadd.f32 %v3116, %v3629
      %3631 = vmatprep.mubr.f32.mxu0 %v2014
      %3632 = vmatmul.mubr.f32.gmra.mrb[0].mxu0 %v2013
      %v3633 = vpop.f32.mrb[0].mxu0
      %v3634 = vadd.f32 %v3120, %v3633
      %v3635 = vpop.f32.mrb[0].mxu0
      %v3636 = vadd.f32 %v3122, %v3635
      %3637 = vmatprep.mubr.f32.mxu0 %v2016
      %3638 = vmatmul.mubr.f32.gmra.mrb[0].mxu0 %v2015
      %v3639 = vpop.f32.mrb[0].mxu0
      %v3640 = vadd.f32 %v3126, %v3639
      %v3641 = vpop.f32.mrb[0].mxu0
      %v3642 = vadd.f32 %v3128, %v3641
      %3643 = vmatprep.mubr.f32.mxu0 %v2018
      %3644 = vmatmul.mubr.f32.gmra.mrb[0].mxu0 %v2017
      %v3645 = vpop.f32.mrb[0].mxu0
      %v3646 = vadd.f32 %v3132, %v3645
      %v3647 = vpop.f32.mrb[0].mxu0
      %v3648 = vadd.f32 %v3134, %v3647
      %3649 = vmatprep.mubr.f32.mxu0 %v2020
      %3650 = vmatmul.mubr.f32.gmra.mrb[0].mxu0 %v2019
      %v3651 = vpop.f32.mrb[0].mxu0
      %v3652 = vadd.f32 %v3138, %v3651
      %v3653 = vpop.f32.mrb[0].mxu0
      %v3654 = vadd.f32 %v3140, %v3653
      %3655 = vmatprep.mubr.f32.mxu0 %v2022
      %3656 = vmatmul.mubr.f32.gmra.mrb[0].mxu0 %v2021
      %v3657 = vpop.f32.mrb[0].mxu0
      %v3658 = vadd.f32 %v3144, %v3657
      %v3659 = vpop.f32.mrb[0].mxu0
      %v3660 = vadd.f32 %v3146, %v3659
      %3661 = vmatprep.mubr.f32.mxu0 %v2024
      %3662 = vmatmul.mubr.f32.gmra.mrb[0].mxu0 %v2023
      %v3663 = vpop.f32.mrb[0].mxu0
      %v3664 = vadd.f32 %v3150, %v3663
      %v3665 = vpop.f32.mrb[0].mxu0
      %v3666 = vadd.f32 %v3152, %v3665
      %3667 = vmatprep.mubr.f32.mxu0 %v2026
      %3668 = vmatmul.mubr.f32.gmra.mrb[0].mxu0 %v2025
      %v3669 = vpop.f32.mrb[0].mxu0
      %v3670 = vadd.f32 %v3156, %v3669
      %v3671 = vpop.f32.mrb[0].mxu0
      %v3672 = vadd.f32 %v3158, %v3671
      %3673 = vmatprep.mubr.f32.mxu0 %v2028
      %3674 = vmatmul.mubr.f32.gmra.mrb[0].mxu0 %v2027
      %v3675 = vpop.f32.mrb[0].mxu0
      %v3676 = vadd.f32 %v3162, %v3675
      %v3677 = vpop.f32.mrb[0].mxu0
      %v3678 = vadd.f32 %v3164, %v3677
      %3679 = vmatprep.mubr.f32.mxu0 %v2030
      %3680 = vmatmul.mubr.f32.gmra.mrb[0].mxu0 %v2029
      %v3681 = vpop.f32.mrb[0].mxu0
      %v3682 = vadd.f32 %v3168, %v3681
      %v3683 = vpop.f32.mrb[0].mxu0
      %v3684 = vadd.f32 %v3170, %v3683
      %3685 = vmatprep.mubr.f32.mxu0 %v2032
      %3686 = vmatmul.mubr.f32.gmra.mrb[0].mxu0 %v2031
      %v3687 = vpop.f32.mrb[0].mxu0
      %v3688 = vadd.f32 %v3174, %v3687
      %v3689 = vpop.f32.mrb[0].mxu0
      %v3690 = vadd.f32 %v3176, %v3689
      %3691 = vmatprep.mubr.f32.mxu0 %v2034
      %3692 = vmatmul.mubr.f32.gmra.mrb[0].mxu0 %v2033
      %v3693 = vpop.f32.mrb[0].mxu0
      %v3694 = vadd.f32 %v3180, %v3693
      %v3695 = vpop.f32.mrb[0].mxu0
      %v3696 = vadd.f32 %v3182, %v3695
      %3697 = vmatprep.mubr.f32.mxu0 %v2036
      %3698 = vmatmul.mubr.f32.gmra.mrb[0].mxu0 %v2035
      %v3699 = vpop.f32.mrb[0].mxu0
      %v3700 = vadd.f32 %v3186, %v3699
      %v3701 = vpop.f32.mrb[0].mxu0
      %v3702 = vadd.f32 %v3188, %v3701
      %3703 = vmatprep.mubr.f32.mxu0 %v2038
      %3704 = vmatmul.mubr.f32.gmra.mrb[0].mxu0 %v2037
      %v3705 = vpop.f32.mrb[0].mxu0
      %v3706 = vadd.f32 %v3192, %v3705
      %v3707 = vpop.f32.mrb[0].mxu0
      %v3708 = vadd.f32 %v3194, %v3707
      %3709 = vmatprep.mubr.f32.mxu0 %v2040
      %3710 = vmatmul.mubr.f32.gmra.mrb[0].mxu0 %v2039
      %v3711 = vpop.f32.mrb[0].mxu0
      %v3712 = vadd.f32 %v3198, %v3711
      %v3713 = vpop.f32.mrb[0].mxu0
      %v3714 = vadd.f32 %v3200, %v3713
      %3715 = vmatprep.mubr.f32.mxu0 %v2042
      %3716 = vmatmul.mubr.f32.gmra.mrb[0].mxu0 %v2041
      %v3717 = vpop.f32.mrb[0].mxu0
      %v3718 = vadd.f32 %v3204, %v3717
      %v3719 = vpop.f32.mrb[0].mxu0
      %v3720 = vadd.f32 %v3206, %v3719
      %3721 = vmatprep.mubr.f32.mxu0 %v2044
      %3722 = vmatmul.mubr.f32.gmra.mrb[0].mxu0 %v2043
      %v3723 = vpop.f32.mrb[0].mxu0
      %v3724 = vadd.f32 %v3210, %v3723
      %v3725 = vpop.f32.mrb[0].mxu0
      %v3726 = vadd.f32 %v3212, %v3725
      %3727 = vmatprep.mubr.f32.mxu0 %v2046
      %3728 = vmatmul.mubr.f32.gmra.mrb[0].mxu0 %v2045
      %v3729 = vpop.f32.mrb[0].mxu0
      %v3730 = vadd.f32 %v3216, %v3729
      %v3731 = vpop.f32.mrb[0].mxu0
      %v3732 = vadd.f32 %v3218, %v3731
      %3733 = vmatprep.mubr.f32.mxu0 %v2048
      %3734 = vmatmul.mubr.f32.gmra.mrb[0].mxu0 %v2047
      %v3735 = vpop.f32.mrb[0].mxu0
      %v3736 = vadd.f32 %v3222, %v3735
      %v3737 = vpop.f32.mrb[0].mxu0
      %v3738 = vadd.f32 %v3224, %v3737
      %3739 = vmatprep.mubr.f32.mxu0 %v2050
      %3740 = vmatmul.mubr.f32.gmra.mrb[0].mxu0 %v2049
      %v3741 = vpop.f32.mrb[0].mxu0
      %v3742 = vadd.f32 %v3228, %v3741
      %v3743 = vpop.f32.mrb[0].mxu0
      %v3744 = vadd.f32 %v3230, %v3743
      %3745 = vmatprep.mubr.f32.mxu0 %v2052
      %3746 = vmatmul.mubr.f32.gmra.mrb[0].mxu0 %v2051
      %v3747 = vpop.f32.mrb[0].mxu0
      %v3748 = vadd.f32 %v3234, %v3747
      %v3749 = vpop.f32.mrb[0].mxu0
      %v3750 = vadd.f32 %v3236, %v3749
      %3751 = vmatprep.mubr.f32.mxu0 %v2054
      %3752 = vmatmul.mubr.f32.gmra.mrb[0].mxu0 %v2053
      %v3753 = vpop.f32.mrb[0].mxu0
      %v3754 = vadd.f32 %v3240, %v3753
      %v3755 = vpop.f32.mrb[0].mxu0
      %v3756 = vadd.f32 %v3242, %v3755
      %3757 = vmatprep.mubr.f32.mxu0 %v2056
      %3758 = vmatmul.mubr.f32.gmra.mrb[0].mxu0 %v2055
      %v3759 = vpop.f32.mrb[0].mxu0
      %v3760 = vadd.f32 %v3246, %v3759
      %v3761 = vpop.f32.mrb[0].mxu0
      %v3762 = vadd.f32 %v3248, %v3761
      %3763 = vmatprep.mubr.f32.mxu0 %v2058
      %3764 = vmatmul.mubr.f32.gmra.mrb[0].mxu0 %v2057
      %v3765 = vpop.f32.mrb[0].mxu0
      %v3766 = vadd.f32 %v3252, %v3765
      %v3767 = vpop.f32.mrb[0].mxu0
      %v3768 = vadd.f32 %v3254, %v3767
      %3769 = vmatprep.mubr.f32.mxu0 %v2060
      %3770 = vmatmul.mubr.f32.gmra.mrb[0].mxu0 %v2059
      %v3771 = vpop.f32.mrb[0].mxu0
      %v3772 = vadd.f32 %v3258, %v3771
      %v3773 = vpop.f32.mrb[0].mxu0
      %v3774 = vadd.f32 %v3260, %v3773
      %3775 = vmatprep.mubr.f32.mxu0 %v2062
      %3776 = vmatmul.mubr.f32.gmra.mrb[0].mxu0 %v2061
      %v3777 = vpop.f32.mrb[0].mxu0
      %v3778 = vadd.f32 %v3264, %v3777
      %v3779 = vpop.f32.mrb[0].mxu0
      %v3780 = vadd.f32 %v3266, %v3779
      %3781 = vmatprep.mubr.f32.mxu0 %v2064
      %3782 = vmatmul.mubr.f32.gmra.mrb[0].mxu0 %v2063
      %v3783 = vpop.f32.mrb[0].mxu0
      %v3784 = vadd.f32 %v3270, %v3783
      %v3785 = vpop.f32.mrb[0].mxu0
      %v3786 = vadd.f32 %v3272, %v3785
      %3787 = vmatprep.mubr.f32.mxu0 %v2066
      %3788 = vmatmul.mubr.f32.gmra.mrb[0].mxu0 %v2065
      %v3789 = vpop.f32.mrb[0].mxu0
      %v3790 = vadd.f32 %v3276, %v3789
      %v3791 = vpop.f32.mrb[0].mxu0
      %v3792 = vadd.f32 %v3278, %v3791
      %3793 = vmatprep.mubr.f32.mxu0 %v2068
      %3794 = vmatmul.mubr.f32.gmra.mrb[0].mxu0 %v2067
      %v3795 = vpop.f32.mrb[0].mxu0
      %v3796 = vadd.f32 %v3282, %v3795
      %v3797 = vpop.f32.mrb[0].mxu0
      %v3798 = vadd.f32 %v3284, %v3797
      %3799 = vmatprep.mubr.f32.mxu0 %v2070
      %3800 = vmatmul.mubr.f32.gmra.mrb[0].mxu0 %v2069
      %v3801 = vpop.f32.mrb[0].mxu0
      %v3802 = vadd.f32 %v3288, %v3801
      %v3803 = vpop.f32.mrb[0].mxu0
      %v3804 = vadd.f32 %v3290, %v3803
      %3805 = vmatprep.mubr.f32.mxu0 %v2072
      %3806 = vmatmul.mubr.f32.gmra.mrb[0].mxu0 %v2071
      %v3807 = vpop.f32.mrb[0].mxu0
      %v3808 = vadd.f32 %v3294, %v3807
      %v3809 = vpop.f32.mrb[0].mxu0
      %v3810 = vadd.f32 %v3296, %v3809
      %3811 = vdwg.mxu0
      %s3812 = scalar_lea.vmem %s3, 2048
      %v3813 = vld [vmem:[%s3812] sm:$0xff]
      %v3814 = vld [vmem:[%s3812 + $0x8] sm:$0xff]
      %v3815 = vld [vmem:[%s3812 + $0x10] sm:$0xff]
      %v3816 = vld [vmem:[%s3812 + $0x18] sm:$0xff]
      %v3817 = vld [vmem:[%s3812 + $0x20] sm:$0xff]
      %v3818 = vld [vmem:[%s3812 + $0x28] sm:$0xff]
      %v3819 = vld [vmem:[%s3812 + $0x30] sm:$0xff]
      %v3820 = vld [vmem:[%s3812 + $0x38] sm:$0xff]
      %v3821 = vld [vmem:[%s3812 + $0x40] sm:$0xff]
      %v3822 = vld [vmem:[%s3812 + $0x48] sm:$0xff]
      %v3823 = vld [vmem:[%s3812 + $0x50] sm:$0xff]
      %v3824 = vld [vmem:[%s3812 + $0x58] sm:$0xff]
      %v3825 = vld [vmem:[%s3812 + $0x60] sm:$0xff]
      %v3826 = vld [vmem:[%s3812 + $0x68] sm:$0xff]
      %v3827 = vld [vmem:[%s3812 + $0x70] sm:$0xff]
      %v3828 = vld [vmem:[%s3812 + $0x78] sm:$0xff]
      %v3829 = vld [vmem:[%s3812 + $0x80] sm:$0xff]
      %v3830 = vld [vmem:[%s3812 + $0x88] sm:$0xff]
      %v3831 = vld [vmem:[%s3812 + $0x90] sm:$0xff]
      %v3832 = vld [vmem:[%s3812 + $0x98] sm:$0xff]
      %v3833 = vld [vmem:[%s3812 + $0xa0] sm:$0xff]
      %v3834 = vld [vmem:[%s3812 + $0xa8] sm:$0xff]
      %v3835 = vld [vmem:[%s3812 + $0xb0] sm:$0xff]
      %v3836 = vld [vmem:[%s3812 + $0xb8] sm:$0xff]
      %v3837 = vld [vmem:[%s3812 + $0xc0] sm:$0xff]
      %v3838 = vld [vmem:[%s3812 + $0xc8] sm:$0xff]
      %v3839 = vld [vmem:[%s3812 + $0xd0] sm:$0xff]
      %v3840 = vld [vmem:[%s3812 + $0xd8] sm:$0xff]
      %v3841 = vld [vmem:[%s3812 + $0xe0] sm:$0xff]
      %v3842 = vld [vmem:[%s3812 + $0xe8] sm:$0xff]
      %v3843 = vld [vmem:[%s3812 + $0xf0] sm:$0xff]
      %v3844 = vld [vmem:[%s3812 + $0xf8] sm:$0xff]
      %v3845 = vld [vmem:[%s3812 + $0x100] sm:$0xff]
      %v3846 = vld [vmem:[%s3812 + $0x108] sm:$0xff]
      %v3847 = vld [vmem:[%s3812 + $0x110] sm:$0xff]
      %v3848 = vld [vmem:[%s3812 + $0x118] sm:$0xff]
      %v3849 = vld [vmem:[%s3812 + $0x120] sm:$0xff]
      %v3850 = vld [vmem:[%s3812 + $0x128] sm:$0xff]
      %v3851 = vld [vmem:[%s3812 + $0x130] sm:$0xff]
      %v3852 = vld [vmem:[%s3812 + $0x138] sm:$0xff]
      %v3853 = vld [vmem:[%s3812 + $0x140] sm:$0xff]
      %v3854 = vld [vmem:[%s3812 + $0x148] sm:$0xff]
      %v3855 = vld [vmem:[%s3812 + $0x150] sm:$0xff]
      %v3856 = vld [vmem:[%s3812 + $0x158] sm:$0xff]
      %v3857 = vld [vmem:[%s3812 + $0x160] sm:$0xff]
      %v3858 = vld [vmem:[%s3812 + $0x168] sm:$0xff]
      %v3859 = vld [vmem:[%s3812 + $0x170] sm:$0xff]
      %v3860 = vld [vmem:[%s3812 + $0x178] sm:$0xff]
      %v3861 = vld [vmem:[%s3812 + $0x180] sm:$0xff]
      %v3862 = vld [vmem:[%s3812 + $0x188] sm:$0xff]
      %v3863 = vld [vmem:[%s3812 + $0x190] sm:$0xff]
      %v3864 = vld [vmem:[%s3812 + $0x198] sm:$0xff]
      %v3865 = vld [vmem:[%s3812 + $0x1a0] sm:$0xff]
      %v3866 = vld [vmem:[%s3812 + $0x1a8] sm:$0xff]
      %v3867 = vld [vmem:[%s3812 + $0x1b0] sm:$0xff]
      %v3868 = vld [vmem:[%s3812 + $0x1b8] sm:$0xff]
      %v3869 = vld [vmem:[%s3812 + $0x1c0] sm:$0xff]
      %v3870 = vld [vmem:[%s3812 + $0x1c8] sm:$0xff]
      %v3871 = vld [vmem:[%s3812 + $0x1d0] sm:$0xff]
      %v3872 = vld [vmem:[%s3812 + $0x1d8] sm:$0xff]
      %v3873 = vld [vmem:[%s3812 + $0x1e0] sm:$0xff]
      %v3874 = vld [vmem:[%s3812 + $0x1e8] sm:$0xff]
      %v3875 = vld [vmem:[%s3812 + $0x1f0] sm:$0xff]
      %v3876 = vld [vmem:[%s3812 + $0x1f8] sm:$0xff]
      %v3877 = vld [vmem:[%s3812 + $0x200] sm:$0xff]
      %v3878 = vld [vmem:[%s3812 + $0x208] sm:$0xff]
      %v3879 = vld [vmem:[%s3812 + $0x210] sm:$0xff]
      %v3880 = vld [vmem:[%s3812 + $0x218] sm:$0xff]
      %v3881 = vld [vmem:[%s3812 + $0x220] sm:$0xff]
      %v3882 = vld [vmem:[%s3812 + $0x228] sm:$0xff]
      %v3883 = vld [vmem:[%s3812 + $0x230] sm:$0xff]
      %v3884 = vld [vmem:[%s3812 + $0x238] sm:$0xff]
      %v3885 = vld [vmem:[%s3812 + $0x240] sm:$0xff]
      %v3886 = vld [vmem:[%s3812 + $0x248] sm:$0xff]
      %v3887 = vld [vmem:[%s3812 + $0x250] sm:$0xff]
      %v3888 = vld [vmem:[%s3812 + $0x258] sm:$0xff]
      %v3889 = vld [vmem:[%s3812 + $0x260] sm:$0xff]
      %v3890 = vld [vmem:[%s3812 + $0x268] sm:$0xff]
      %v3891 = vld [vmem:[%s3812 + $0x270] sm:$0xff]
      %v3892 = vld [vmem:[%s3812 + $0x278] sm:$0xff]
      %v3893 = vld [vmem:[%s3812 + $0x280] sm:$0xff]
      %v3894 = vld [vmem:[%s3812 + $0x288] sm:$0xff]
      %v3895 = vld [vmem:[%s3812 + $0x290] sm:$0xff]
      %v3896 = vld [vmem:[%s3812 + $0x298] sm:$0xff]
      %v3897 = vld [vmem:[%s3812 + $0x2a0] sm:$0xff]
      %v3898 = vld [vmem:[%s3812 + $0x2a8] sm:$0xff]
      %v3899 = vld [vmem:[%s3812 + $0x2b0] sm:$0xff]
      %v3900 = vld [vmem:[%s3812 + $0x2b8] sm:$0xff]
      %v3901 = vld [vmem:[%s3812 + $0x2c0] sm:$0xff]
      %v3902 = vld [vmem:[%s3812 + $0x2c8] sm:$0xff]
      %v3903 = vld [vmem:[%s3812 + $0x2d0] sm:$0xff]
      %v3904 = vld [vmem:[%s3812 + $0x2d8] sm:$0xff]
      %v3905 = vld [vmem:[%s3812 + $0x2e0] sm:$0xff]
      %v3906 = vld [vmem:[%s3812 + $0x2e8] sm:$0xff]
      %v3907 = vld [vmem:[%s3812 + $0x2f0] sm:$0xff]
      %v3908 = vld [vmem:[%s3812 + $0x2f8] sm:$0xff]
      %v3909 = vld [vmem:[%s3812 + $0x300] sm:$0xff]
      %v3910 = vld [vmem:[%s3812 + $0x308] sm:$0xff]
      %v3911 = vld [vmem:[%s3812 + $0x310] sm:$0xff]
      %v3912 = vld [vmem:[%s3812 + $0x318] sm:$0xff]
      %v3913 = vld [vmem:[%s3812 + $0x320] sm:$0xff]
      %v3914 = vld [vmem:[%s3812 + $0x328] sm:$0xff]
      %v3915 = vld [vmem:[%s3812 + $0x330] sm:$0xff]
      %v3916 = vld [vmem:[%s3812 + $0x338] sm:$0xff]
      %v3917 = vld [vmem:[%s3812 + $0x340] sm:$0xff]
      %v3918 = vld [vmem:[%s3812 + $0x348] sm:$0xff]
      %v3919 = vld [vmem:[%s3812 + $0x350] sm:$0xff]
      %v3920 = vld [vmem:[%s3812 + $0x358] sm:$0xff]
      %v3921 = vld [vmem:[%s3812 + $0x360] sm:$0xff]
      %v3922 = vld [vmem:[%s3812 + $0x368] sm:$0xff]
      %v3923 = vld [vmem:[%s3812 + $0x370] sm:$0xff]
      %v3924 = vld [vmem:[%s3812 + $0x378] sm:$0xff]
      %v3925 = vld [vmem:[%s3812 + $0x380] sm:$0xff]
      %v3926 = vld [vmem:[%s3812 + $0x388] sm:$0xff]
      %v3927 = vld [vmem:[%s3812 + $0x390] sm:$0xff]
      %v3928 = vld [vmem:[%s3812 + $0x398] sm:$0xff]
      %v3929 = vld [vmem:[%s3812 + $0x3a0] sm:$0xff]
      %v3930 = vld [vmem:[%s3812 + $0x3a8] sm:$0xff]
      %v3931 = vld [vmem:[%s3812 + $0x3b0] sm:$0xff]
      %v3932 = vld [vmem:[%s3812 + $0x3b8] sm:$0xff]
      %v3933 = vld [vmem:[%s3812 + $0x3c0] sm:$0xff]
      %v3934 = vld [vmem:[%s3812 + $0x3c8] sm:$0xff]
      %v3935 = vld [vmem:[%s3812 + $0x3d0] sm:$0xff]
      %v3936 = vld [vmem:[%s3812 + $0x3d8] sm:$0xff]
      %v3937 = vld [vmem:[%s3812 + $0x3e0] sm:$0xff]
      %v3938 = vld [vmem:[%s3812 + $0x3e8] sm:$0xff]
      %v3939 = vld [vmem:[%s3812 + $0x3f0] sm:$0xff]
      %v3940 = vld [vmem:[%s3812 + $0x3f8] sm:$0xff]
      %3941 = vmatprep.subr.mxu0 %v3814
      %3942 = vmatpush1.msra.mxu0 %v3813
      %3943 = vmatprep.subr.mxu0 %v3818
      %3944 = vmatpush1.msra.mxu0 %v3817
      %3945 = vmatprep.subr.mxu0 %v3822
      %3946 = vmatpush1.msra.mxu0 %v3821
      %3947 = vmatprep.subr.mxu0 %v3826
      %3948 = vmatpush1.msra.mxu0 %v3825
      %3949 = vmatprep.subr.mxu0 %v3830
      %3950 = vmatpush1.msra.mxu0 %v3829
      %3951 = vmatprep.subr.mxu0 %v3834
      %3952 = vmatpush1.msra.mxu0 %v3833
      %3953 = vmatprep.subr.mxu0 %v3838
      %3954 = vmatpush1.msra.mxu0 %v3837
      %3955 = vmatprep.subr.mxu0 %v3842
      %3956 = vmatpush1.msra.mxu0 %v3841
      %3957 = vmatprep.subr.mxu0 %v3846
      %3958 = vmatpush1.msra.mxu0 %v3845
      %3959 = vmatprep.subr.mxu0 %v3850
      %3960 = vmatpush1.msra.mxu0 %v3849
      %3961 = vmatprep.subr.mxu0 %v3854
      %3962 = vmatpush1.msra.mxu0 %v3853
      %3963 = vmatprep.subr.mxu0 %v3858
      %3964 = vmatpush1.msra.mxu0 %v3857
      %3965 = vmatprep.subr.mxu0 %v3862
      %3966 = vmatpush1.msra.mxu0 %v3861
      %3967 = vmatprep.subr.mxu0 %v3866
      %3968 = vmatpush1.msra.mxu0 %v3865
      %3969 = vmatprep.subr.mxu0 %v3870
      %3970 = vmatpush1.msra.mxu0 %v3869
      %3971 = vmatprep.subr.mxu0 %v3874
      %3972 = vmatpush1.msra.mxu0 %v3873
      %3973 = vmatprep.subr.mxu0 %v3878
      %3974 = vmatpush1.msra.mxu0 %v3877
      %3975 = vmatprep.subr.mxu0 %v3882
      %3976 = vmatpush1.msra.mxu0 %v3881
      %3977 = vmatprep.subr.mxu0 %v3886
      %3978 = vmatpush1.msra.mxu0 %v3885
      %3979 = vmatprep.subr.mxu0 %v3890
      %3980 = vmatpush1.msra.mxu0 %v3889
      %3981 = vmatprep.subr.mxu0 %v3894
      %3982 = vmatpush1.msra.mxu0 %v3893
      %3983 = vmatprep.subr.mxu0 %v3898
      %3984 = vmatpush1.msra.mxu0 %v3897
      %3985 = vmatprep.subr.mxu0 %v3902
      %3986 = vmatpush1.msra.mxu0 %v3901
      %3987 = vmatprep.subr.mxu0 %v3906
      %3988 = vmatpush1.msra.mxu0 %v3905
      %3989 = vmatprep.subr.mxu0 %v3910
      %3990 = vmatpush1.msra.mxu0 %v3909
      %3991 = vmatprep.subr.mxu0 %v3914
      %3992 = vmatpush1.msra.mxu0 %v3913
      %3993 = vmatprep.subr.mxu0 %v3918
      %3994 = vmatpush1.msra.mxu0 %v3917
      %3995 = vmatprep.subr.mxu0 %v3922
      %3996 = vmatpush1.msra.mxu0 %v3921
      %3997 = vmatprep.subr.mxu0 %v3926
      %3998 = vmatpush1.msra.mxu0 %v3925
      %3999 = vmatprep.subr.mxu0 %v3930
      %4000 = vmatpush1.msra.mxu0 %v3929
      %4001 = vmatprep.subr.mxu0 %v3934
      %4002 = vmatpush1.msra.mxu0 %v3933
      %4003 = vmatprep.subr.mxu0 %v3938
      %4004 = vmatpush1.msra.mxu0 %v3937
      %4005 = vmatprep.mubr.f32.mxu0 %v2338
      %4006 = vmatmul.mubr.f32.gmra.mrb[0].mxu0 %v2335
      %v4007 = vpop.f32.mrb[0].mxu0
      %v4008 = vadd.f32 0.0, %v4007
      %v4009 = vpop.f32.mrb[0].mxu0
      %v4010 = vadd.f32 0.0, %v4009
      %4011 = vmatprep.mubr.f32.mxu0 %v2342
      %4012 = vmatmul.mubr.f32.gmra.mrb[0].mxu0 %v2340
      %v4013 = vpop.f32.mrb[0].mxu0
      %v4014 = vadd.f32 0.0, %v4013
      %v4015 = vpop.f32.mrb[0].mxu0
      %v4016 = vadd.f32 0.0, %v4015
      %4017 = vmatprep.mubr.f32.mxu0 %v2346
      %4018 = vmatmul.mubr.f32.gmra.mrb[0].mxu0 %v2344
      %v4019 = vpop.f32.mrb[0].mxu0
      %v4020 = vadd.f32 0.0, %v4019
      %v4021 = vpop.f32.mrb[0].mxu0
      %v4022 = vadd.f32 0.0, %v4021
      %4023 = vmatprep.mubr.f32.mxu0 %v2350
      %4024 = vmatmul.mubr.f32.gmra.mrb[0].mxu0 %v2348
      %v4025 = vpop.f32.mrb[0].mxu0
      %v4026 = vadd.f32 0.0, %v4025
      %v4027 = vpop.f32.mrb[0].mxu0
      %v4028 = vadd.f32 0.0, %v4027
      %4029 = vmatprep.mubr.f32.mxu0 %v2354
      %4030 = vmatmul.mubr.f32.gmra.mrb[0].mxu0 %v2352
      %v4031 = vpop.f32.mrb[0].mxu0
      %v4032 = vadd.f32 0.0, %v4031
      %v4033 = vpop.f32.mrb[0].mxu0
      %v4034 = vadd.f32 0.0, %v4033
      %4035 = vmatprep.mubr.f32.mxu0 %v2358
      %4036 = vmatmul.mubr.f32.gmra.mrb[0].mxu0 %v2356
      %v4037 = vpop.f32.mrb[0].mxu0
      %v4038 = vadd.f32 0.0, %v4037
      %v4039 = vpop.f32.mrb[0].mxu0
      %v4040 = vadd.f32 0.0, %v4039
      %4041 = vmatprep.mubr.f32.mxu0 %v2362
      %4042 = vmatmul.mubr.f32.gmra.mrb[0].mxu0 %v2360
      %v4043 = vpop.f32.mrb[0].mxu0
      %v4044 = vadd.f32 0.0, %v4043
      %v4045 = vpop.f32.mrb[0].mxu0
      %v4046 = vadd.f32 0.0, %v4045
      %4047 = vmatprep.mubr.f32.mxu0 %v2366
      %4048 = vmatmul.mubr.f32.gmra.mrb[0].mxu0 %v2364
      %v4049 = vpop.f32.mrb[0].mxu0
      %v4050 = vadd.f32 0.0, %v4049
      %v4051 = vpop.f32.mrb[0].mxu0
      %v4052 = vadd.f32 0.0, %v4051
      %4053 = vmatprep.mubr.f32.mxu0 %v2370
      %4054 = vmatmul.mubr.f32.gmra.mrb[0].mxu0 %v2368
      %v4055 = vpop.f32.mrb[0].mxu0
      %v4056 = vadd.f32 0.0, %v4055
      %v4057 = vpop.f32.mrb[0].mxu0
      %v4058 = vadd.f32 0.0, %v4057
      %4059 = vmatprep.mubr.f32.mxu0 %v2374
      %4060 = vmatmul.mubr.f32.gmra.mrb[0].mxu0 %v2372
      %v4061 = vpop.f32.mrb[0].mxu0
      %v4062 = vadd.f32 0.0, %v4061
      %v4063 = vpop.f32.mrb[0].mxu0
      %v4064 = vadd.f32 0.0, %v4063
      %4065 = vmatprep.mubr.f32.mxu0 %v2378
      %4066 = vmatmul.mubr.f32.gmra.mrb[0].mxu0 %v2376
      %v4067 = vpop.f32.mrb[0].mxu0
      %v4068 = vadd.f32 0.0, %v4067
      %v4069 = vpop.f32.mrb[0].mxu0
      %v4070 = vadd.f32 0.0, %v4069
      %4071 = vmatprep.mubr.f32.mxu0 %v2382
      %4072 = vmatmul.mubr.f32.gmra.mrb[0].mxu0 %v2380
      %v4073 = vpop.f32.mrb[0].mxu0
      %v4074 = vadd.f32 0.0, %v4073
      %v4075 = vpop.f32.mrb[0].mxu0
      %v4076 = vadd.f32 0.0, %v4075
      %4077 = vmatprep.mubr.f32.mxu0 %v2386
      %4078 = vmatmul.mubr.f32.gmra.mrb[0].mxu0 %v2384
      %v4079 = vpop.f32.mrb[0].mxu0
      %v4080 = vadd.f32 0.0, %v4079
      %v4081 = vpop.f32.mrb[0].mxu0
      %v4082 = vadd.f32 0.0, %v4081
      %4083 = vmatprep.mubr.f32.mxu0 %v2390
      %4084 = vmatmul.mubr.f32.gmra.mrb[0].mxu0 %v2388
      %v4085 = vpop.f32.mrb[0].mxu0
      %v4086 = vadd.f32 0.0, %v4085
      %v4087 = vpop.f32.mrb[0].mxu0
      %v4088 = vadd.f32 0.0, %v4087
      %4089 = vmatprep.mubr.f32.mxu0 %v2394
      %4090 = vmatmul.mubr.f32.gmra.mrb[0].mxu0 %v2392
      %v4091 = vpop.f32.mrb[0].mxu0
      %v4092 = vadd.f32 0.0, %v4091
      %v4093 = vpop.f32.mrb[0].mxu0
      %v4094 = vadd.f32 0.0, %v4093
      %4095 = vmatprep.mubr.f32.mxu0 %v2398
      %4096 = vmatmul.mubr.f32.gmra.mrb[0].mxu0 %v2396
      %v4097 = vpop.f32.mrb[0].mxu0
      %v4098 = vadd.f32 0.0, %v4097
      %v4099 = vpop.f32.mrb[0].mxu0
      %v4100 = vadd.f32 0.0, %v4099
      %4101 = vmatprep.mubr.f32.mxu0 %v2402
      %4102 = vmatmul.mubr.f32.gmra.mrb[0].mxu0 %v2400
      %v4103 = vpop.f32.mrb[0].mxu0
      %v4104 = vadd.f32 0.0, %v4103
      %v4105 = vpop.f32.mrb[0].mxu0
      %v4106 = vadd.f32 0.0, %v4105
      %4107 = vmatprep.mubr.f32.mxu0 %v2406
      %4108 = vmatmul.mubr.f32.gmra.mrb[0].mxu0 %v2404
      %v4109 = vpop.f32.mrb[0].mxu0
      %v4110 = vadd.f32 0.0, %v4109
      %v4111 = vpop.f32.mrb[0].mxu0
      %v4112 = vadd.f32 0.0, %v4111
      %4113 = vmatprep.mubr.f32.mxu0 %v2410
      %4114 = vmatmul.mubr.f32.gmra.mrb[0].mxu0 %v2408
      %v4115 = vpop.f32.mrb[0].mxu0
      %v4116 = vadd.f32 0.0, %v4115
      %v4117 = vpop.f32.mrb[0].mxu0
      %v4118 = vadd.f32 0.0, %v4117
      %4119 = vmatprep.mubr.f32.mxu0 %v2414
      %4120 = vmatmul.mubr.f32.gmra.mrb[0].mxu0 %v2412
      %v4121 = vpop.f32.mrb[0].mxu0
      %v4122 = vadd.f32 0.0, %v4121
      %v4123 = vpop.f32.mrb[0].mxu0
      %v4124 = vadd.f32 0.0, %v4123
      %4125 = vmatprep.mubr.f32.mxu0 %v2418
      %4126 = vmatmul.mubr.f32.gmra.mrb[0].mxu0 %v2416
      %v4127 = vpop.f32.mrb[0].mxu0
      %v4128 = vadd.f32 0.0, %v4127
      %v4129 = vpop.f32.mrb[0].mxu0
      %v4130 = vadd.f32 0.0, %v4129
      %4131 = vmatprep.mubr.f32.mxu0 %v2422
      %4132 = vmatmul.mubr.f32.gmra.mrb[0].mxu0 %v2420
      %v4133 = vpop.f32.mrb[0].mxu0
      %v4134 = vadd.f32 0.0, %v4133
      %v4135 = vpop.f32.mrb[0].mxu0
      %v4136 = vadd.f32 0.0, %v4135
      %4137 = vmatprep.mubr.f32.mxu0 %v2426
      %4138 = vmatmul.mubr.f32.gmra.mrb[0].mxu0 %v2424
      %v4139 = vpop.f32.mrb[0].mxu0
      %v4140 = vadd.f32 0.0, %v4139
      %v4141 = vpop.f32.mrb[0].mxu0
      %v4142 = vadd.f32 0.0, %v4141
      %4143 = vmatprep.mubr.f32.mxu0 %v2430
      %4144 = vmatmul.mubr.f32.gmra.mrb[0].mxu0 %v2428
      %v4145 = vpop.f32.mrb[0].mxu0
      %v4146 = vadd.f32 0.0, %v4145
      %v4147 = vpop.f32.mrb[0].mxu0
      %v4148 = vadd.f32 0.0, %v4147
      %4149 = vmatprep.mubr.f32.mxu0 %v2434
      %4150 = vmatmul.mubr.f32.gmra.mrb[0].mxu0 %v2432
      %v4151 = vpop.f32.mrb[0].mxu0
      %v4152 = vadd.f32 0.0, %v4151
      %v4153 = vpop.f32.mrb[0].mxu0
      %v4154 = vadd.f32 0.0, %v4153
      %4155 = vmatprep.mubr.f32.mxu0 %v2438
      %4156 = vmatmul.mubr.f32.gmra.mrb[0].mxu0 %v2436
      %v4157 = vpop.f32.mrb[0].mxu0
      %v4158 = vadd.f32 0.0, %v4157
      %v4159 = vpop.f32.mrb[0].mxu0
      %v4160 = vadd.f32 0.0, %v4159
      %4161 = vmatprep.mubr.f32.mxu0 %v2442
      %4162 = vmatmul.mubr.f32.gmra.mrb[0].mxu0 %v2440
      %v4163 = vpop.f32.mrb[0].mxu0
      %v4164 = vadd.f32 0.0, %v4163
      %v4165 = vpop.f32.mrb[0].mxu0
      %v4166 = vadd.f32 0.0, %v4165
      %4167 = vmatprep.mubr.f32.mxu0 %v2446
      %4168 = vmatmul.mubr.f32.gmra.mrb[0].mxu0 %v2444
      %v4169 = vpop.f32.mrb[0].mxu0
      %v4170 = vadd.f32 0.0, %v4169
      %v4171 = vpop.f32.mrb[0].mxu0
      %v4172 = vadd.f32 0.0, %v4171
      %4173 = vmatprep.mubr.f32.mxu0 %v2450
      %4174 = vmatmul.mubr.f32.gmra.mrb[0].mxu0 %v2448
      %v4175 = vpop.f32.mrb[0].mxu0
      %v4176 = vadd.f32 0.0, %v4175
      %v4177 = vpop.f32.mrb[0].mxu0
      %v4178 = vadd.f32 0.0, %v4177
      %4179 = vmatprep.mubr.f32.mxu0 %v2454
      %4180 = vmatmul.mubr.f32.gmra.mrb[0].mxu0 %v2452
      %v4181 = vpop.f32.mrb[0].mxu0
      %v4182 = vadd.f32 0.0, %v4181
      %v4183 = vpop.f32.mrb[0].mxu0
      %v4184 = vadd.f32 0.0, %v4183
      %4185 = vmatprep.mubr.f32.mxu0 %v2458
      %4186 = vmatmul.mubr.f32.gmra.mrb[0].mxu0 %v2456
      %v4187 = vpop.f32.mrb[0].mxu0
      %v4188 = vadd.f32 0.0, %v4187
      %v4189 = vpop.f32.mrb[0].mxu0
      %v4190 = vadd.f32 0.0, %v4189
      %4191 = vmatprep.mubr.f32.mxu0 %v2526
      %4192 = vmatmul.mubr.f32.gmra.mrb[0].mxu0 %v2525
      %v4193 = vpop.f32.mrb[0].mxu0
      %v4194 = vadd.f32 0.0, %v4193
      %v4195 = vpop.f32.mrb[0].mxu0
      %v4196 = vadd.f32 0.0, %v4195
      %4197 = vdwg.mxu0
      %4198 = vmatprep.subr.mxu0 %v3816
      %4199 = vmatpush1.msra.mxu0 %v3815
      %4200 = vmatprep.subr.mxu0 %v3820
      %4201 = vmatpush1.msra.mxu0 %v3819
      %4202 = vmatprep.subr.mxu0 %v3824
      %4203 = vmatpush1.msra.mxu0 %v3823
      %4204 = vmatprep.subr.mxu0 %v3828
      %4205 = vmatpush1.msra.mxu0 %v3827
      %4206 = vmatprep.subr.mxu0 %v3832
      %4207 = vmatpush1.msra.mxu0 %v3831
      %4208 = vmatprep.subr.mxu0 %v3836
      %4209 = vmatpush1.msra.mxu0 %v3835
      %4210 = vmatprep.subr.mxu0 %v3840
      %4211 = vmatpush1.msra.mxu0 %v3839
      %4212 = vmatprep.subr.mxu0 %v3844
      %4213 = vmatpush1.msra.mxu0 %v3843
      %4214 = vmatprep.subr.mxu0 %v3848
      %4215 = vmatpush1.msra.mxu0 %v3847
      %4216 = vmatprep.subr.mxu0 %v3852
      %4217 = vmatpush1.msra.mxu0 %v3851
      %4218 = vmatprep.subr.mxu0 %v3856
      %4219 = vmatpush1.msra.mxu0 %v3855
      %4220 = vmatprep.subr.mxu0 %v3860
      %4221 = vmatpush1.msra.mxu0 %v3859
      %4222 = vmatprep.subr.mxu0 %v3864
      %4223 = vmatpush1.msra.mxu0 %v3863
      %4224 = vmatprep.subr.mxu0 %v3868
      %4225 = vmatpush1.msra.mxu0 %v3867
      %4226 = vmatprep.subr.mxu0 %v3872
      %4227 = vmatpush1.msra.mxu0 %v3871
      %4228 = vmatprep.subr.mxu0 %v3876
      %4229 = vmatpush1.msra.mxu0 %v3875
      %4230 = vmatprep.subr.mxu0 %v3880
      %4231 = vmatpush1.msra.mxu0 %v3879
      %4232 = vmatprep.subr.mxu0 %v3884
      %4233 = vmatpush1.msra.mxu0 %v3883
      %4234 = vmatprep.subr.mxu0 %v3888
      %4235 = vmatpush1.msra.mxu0 %v3887
      %4236 = vmatprep.subr.mxu0 %v3892
      %4237 = vmatpush1.msra.mxu0 %v3891
      %4238 = vmatprep.subr.mxu0 %v3896
      %4239 = vmatpush1.msra.mxu0 %v3895
      %4240 = vmatprep.subr.mxu0 %v3900
      %4241 = vmatpush1.msra.mxu0 %v3899
      %4242 = vmatprep.subr.mxu0 %v3904
      %4243 = vmatpush1.msra.mxu0 %v3903
      %4244 = vmatprep.subr.mxu0 %v3908
      %4245 = vmatpush1.msra.mxu0 %v3907
      %4246 = vmatprep.subr.mxu0 %v3912
      %4247 = vmatpush1.msra.mxu0 %v3911
      %4248 = vmatprep.subr.mxu0 %v3916
      %4249 = vmatpush1.msra.mxu0 %v3915
      %4250 = vmatprep.subr.mxu0 %v3920
      %4251 = vmatpush1.msra.mxu0 %v3919
      %4252 = vmatprep.subr.mxu0 %v3924
      %4253 = vmatpush1.msra.mxu0 %v3923
      %4254 = vmatprep.subr.mxu0 %v3928
      %4255 = vmatpush1.msra.mxu0 %v3927
      %4256 = vmatprep.subr.mxu0 %v3932
      %4257 = vmatpush1.msra.mxu0 %v3931
      %4258 = vmatprep.subr.mxu0 %v3936
      %4259 = vmatpush1.msra.mxu0 %v3935
      %4260 = vmatprep.subr.mxu0 %v3940
      %4261 = vmatpush1.msra.mxu0 %v3939
      %4262 = vmatprep.mubr.f32.mxu0 %v2338
      %4263 = vmatmul.mubr.f32.gmra.mrb[0].mxu0 %v2335
      %v4264 = vpop.f32.mrb[0].mxu0
      %v4265 = vadd.f32 0.0, %v4264
      %v4266 = vpop.f32.mrb[0].mxu0
      %v4267 = vadd.f32 0.0, %v4266
      %4268 = vmatprep.mubr.f32.mxu0 %v2342
      %4269 = vmatmul.mubr.f32.gmra.mrb[0].mxu0 %v2340
      %v4270 = vpop.f32.mrb[0].mxu0
      %v4271 = vadd.f32 0.0, %v4270
      %v4272 = vpop.f32.mrb[0].mxu0
      %v4273 = vadd.f32 0.0, %v4272
      %4274 = vmatprep.mubr.f32.mxu0 %v2346
      %4275 = vmatmul.mubr.f32.gmra.mrb[0].mxu0 %v2344
      %v4276 = vpop.f32.mrb[0].mxu0
      %v4277 = vadd.f32 0.0, %v4276
      %v4278 = vpop.f32.mrb[0].mxu0
      %v4279 = vadd.f32 0.0, %v4278
      %4280 = vmatprep.mubr.f32.mxu0 %v2350
      %4281 = vmatmul.mubr.f32.gmra.mrb[0].mxu0 %v2348
      %v4282 = vpop.f32.mrb[0].mxu0
      %v4283 = vadd.f32 0.0, %v4282
      %v4284 = vpop.f32.mrb[0].mxu0
      %v4285 = vadd.f32 0.0, %v4284
      %4286 = vmatprep.mubr.f32.mxu0 %v2354
      %4287 = vmatmul.mubr.f32.gmra.mrb[0].mxu0 %v2352
      %v4288 = vpop.f32.mrb[0].mxu0
      %v4289 = vadd.f32 0.0, %v4288
      %v4290 = vpop.f32.mrb[0].mxu0
      %v4291 = vadd.f32 0.0, %v4290
      %4292 = vmatprep.mubr.f32.mxu0 %v2358
      %4293 = vmatmul.mubr.f32.gmra.mrb[0].mxu0 %v2356
      %v4294 = vpop.f32.mrb[0].mxu0
      %v4295 = vadd.f32 0.0, %v4294
      %v4296 = vpop.f32.mrb[0].mxu0
      %v4297 = vadd.f32 0.0, %v4296
      %4298 = vmatprep.mubr.f32.mxu0 %v2362
      %4299 = vmatmul.mubr.f32.gmra.mrb[0].mxu0 %v2360
      %v4300 = vpop.f32.mrb[0].mxu0
      %v4301 = vadd.f32 0.0, %v4300
      %v4302 = vpop.f32.mrb[0].mxu0
      %v4303 = vadd.f32 0.0, %v4302
      %4304 = vmatprep.mubr.f32.mxu0 %v2366
      %4305 = vmatmul.mubr.f32.gmra.mrb[0].mxu0 %v2364
      %v4306 = vpop.f32.mrb[0].mxu0
      %v4307 = vadd.f32 0.0, %v4306
      %v4308 = vpop.f32.mrb[0].mxu0
      %v4309 = vadd.f32 0.0, %v4308
      %4310 = vmatprep.mubr.f32.mxu0 %v2370
      %4311 = vmatmul.mubr.f32.gmra.mrb[0].mxu0 %v2368
      %v4312 = vpop.f32.mrb[0].mxu0
      %v4313 = vadd.f32 0.0, %v4312
      %v4314 = vpop.f32.mrb[0].mxu0
      %v4315 = vadd.f32 0.0, %v4314
      %4316 = vmatprep.mubr.f32.mxu0 %v2374
      %4317 = vmatmul.mubr.f32.gmra.mrb[0].mxu0 %v2372
      %v4318 = vpop.f32.mrb[0].mxu0
      %v4319 = vadd.f32 0.0, %v4318
      %v4320 = vpop.f32.mrb[0].mxu0
      %v4321 = vadd.f32 0.0, %v4320
      %4322 = vmatprep.mubr.f32.mxu0 %v2378
      %4323 = vmatmul.mubr.f32.gmra.mrb[0].mxu0 %v2376
      %v4324 = vpop.f32.mrb[0].mxu0
      %v4325 = vadd.f32 0.0, %v4324
      %v4326 = vpop.f32.mrb[0].mxu0
      %v4327 = vadd.f32 0.0, %v4326
      %4328 = vmatprep.mubr.f32.mxu0 %v2382
      %4329 = vmatmul.mubr.f32.gmra.mrb[0].mxu0 %v2380
      %v4330 = vpop.f32.mrb[0].mxu0
      %v4331 = vadd.f32 0.0, %v4330
      %v4332 = vpop.f32.mrb[0].mxu0
      %v4333 = vadd.f32 0.0, %v4332
      %4334 = vmatprep.mubr.f32.mxu0 %v2386
      %4335 = vmatmul.mubr.f32.gmra.mrb[0].mxu0 %v2384
      %v4336 = vpop.f32.mrb[0].mxu0
      %v4337 = vadd.f32 0.0, %v4336
      %v4338 = vpop.f32.mrb[0].mxu0
      %v4339 = vadd.f32 0.0, %v4338
      %4340 = vmatprep.mubr.f32.mxu0 %v2390
      %4341 = vmatmul.mubr.f32.gmra.mrb[0].mxu0 %v2388
      %v4342 = vpop.f32.mrb[0].mxu0
      %v4343 = vadd.f32 0.0, %v4342
      %v4344 = vpop.f32.mrb[0].mxu0
      %v4345 = vadd.f32 0.0, %v4344
      %4346 = vmatprep.mubr.f32.mxu0 %v2394
      %4347 = vmatmul.mubr.f32.gmra.mrb[0].mxu0 %v2392
      %v4348 = vpop.f32.mrb[0].mxu0
      %v4349 = vadd.f32 0.0, %v4348
      %v4350 = vpop.f32.mrb[0].mxu0
      %v4351 = vadd.f32 0.0, %v4350
      %4352 = vmatprep.mubr.f32.mxu0 %v2398
      %4353 = vmatmul.mubr.f32.gmra.mrb[0].mxu0 %v2396
      %v4354 = vpop.f32.mrb[0].mxu0
      %v4355 = vadd.f32 0.0, %v4354
      %v4356 = vpop.f32.mrb[0].mxu0
      %v4357 = vadd.f32 0.0, %v4356
      %4358 = vmatprep.mubr.f32.mxu0 %v2402
      %4359 = vmatmul.mubr.f32.gmra.mrb[0].mxu0 %v2400
      %v4360 = vpop.f32.mrb[0].mxu0
      %v4361 = vadd.f32 0.0, %v4360
      %v4362 = vpop.f32.mrb[0].mxu0
      %v4363 = vadd.f32 0.0, %v4362
      %4364 = vmatprep.mubr.f32.mxu0 %v2406
      %4365 = vmatmul.mubr.f32.gmra.mrb[0].mxu0 %v2404
      %v4366 = vpop.f32.mrb[0].mxu0
      %v4367 = vadd.f32 0.0, %v4366
      %v4368 = vpop.f32.mrb[0].mxu0
      %v4369 = vadd.f32 0.0, %v4368
      %4370 = vmatprep.mubr.f32.mxu0 %v2410
      %4371 = vmatmul.mubr.f32.gmra.mrb[0].mxu0 %v2408
      %v4372 = vpop.f32.mrb[0].mxu0
      %v4373 = vadd.f32 0.0, %v4372
      %v4374 = vpop.f32.mrb[0].mxu0
      %v4375 = vadd.f32 0.0, %v4374
      %4376 = vmatprep.mubr.f32.mxu0 %v2414
      %4377 = vmatmul.mubr.f32.gmra.mrb[0].mxu0 %v2412
      %v4378 = vpop.f32.mrb[0].mxu0
      %v4379 = vadd.f32 0.0, %v4378
      %v4380 = vpop.f32.mrb[0].mxu0
      %v4381 = vadd.f32 0.0, %v4380
      %4382 = vmatprep.mubr.f32.mxu0 %v2418
      %4383 = vmatmul.mubr.f32.gmra.mrb[0].mxu0 %v2416
      %v4384 = vpop.f32.mrb[0].mxu0
      %v4385 = vadd.f32 0.0, %v4384
      %v4386 = vpop.f32.mrb[0].mxu0
      %v4387 = vadd.f32 0.0, %v4386
      %4388 = vmatprep.mubr.f32.mxu0 %v2422
      %4389 = vmatmul.mubr.f32.gmra.mrb[0].mxu0 %v2420
      %v4390 = vpop.f32.mrb[0].mxu0
      %v4391 = vadd.f32 0.0, %v4390
      %v4392 = vpop.f32.mrb[0].mxu0
      %v4393 = vadd.f32 0.0, %v4392
      %4394 = vmatprep.mubr.f32.mxu0 %v2426
      %4395 = vmatmul.mubr.f32.gmra.mrb[0].mxu0 %v2424
      %v4396 = vpop.f32.mrb[0].mxu0
      %v4397 = vadd.f32 0.0, %v4396
      %v4398 = vpop.f32.mrb[0].mxu0
      %v4399 = vadd.f32 0.0, %v4398
      %4400 = vmatprep.mubr.f32.mxu0 %v2430
      %4401 = vmatmul.mubr.f32.gmra.mrb[0].mxu0 %v2428
      %v4402 = vpop.f32.mrb[0].mxu0
      %v4403 = vadd.f32 0.0, %v4402
      %v4404 = vpop.f32.mrb[0].mxu0
      %v4405 = vadd.f32 0.0, %v4404
      %4406 = vmatprep.mubr.f32.mxu0 %v2434
      %4407 = vmatmul.mubr.f32.gmra.mrb[0].mxu0 %v2432
      %v4408 = vpop.f32.mrb[0].mxu0
      %v4409 = vadd.f32 0.0, %v4408
      %v4410 = vpop.f32.mrb[0].mxu0
      %v4411 = vadd.f32 0.0, %v4410
      %4412 = vmatprep.mubr.f32.mxu0 %v2438
      %4413 = vmatmul.mubr.f32.gmra.mrb[0].mxu0 %v2436
      %v4414 = vpop.f32.mrb[0].mxu0
      %v4415 = vadd.f32 0.0, %v4414
      %v4416 = vpop.f32.mrb[0].mxu0
      %v4417 = vadd.f32 0.0, %v4416
      %4418 = vmatprep.mubr.f32.mxu0 %v2442
      %4419 = vmatmul.mubr.f32.gmra.mrb[0].mxu0 %v2440
      %v4420 = vpop.f32.mrb[0].mxu0
      %v4421 = vadd.f32 0.0, %v4420
      %v4422 = vpop.f32.mrb[0].mxu0
      %v4423 = vadd.f32 0.0, %v4422
      %4424 = vmatprep.mubr.f32.mxu0 %v2446
      %4425 = vmatmul.mubr.f32.gmra.mrb[0].mxu0 %v2444
      %v4426 = vpop.f32.mrb[0].mxu0
      %v4427 = vadd.f32 0.0, %v4426
      %v4428 = vpop.f32.mrb[0].mxu0
      %v4429 = vadd.f32 0.0, %v4428
      %4430 = vmatprep.mubr.f32.mxu0 %v2450
      %4431 = vmatmul.mubr.f32.gmra.mrb[0].mxu0 %v2448
      %v4432 = vpop.f32.mrb[0].mxu0
      %v4433 = vadd.f32 0.0, %v4432
      %v4434 = vpop.f32.mrb[0].mxu0
      %v4435 = vadd.f32 0.0, %v4434
      %4436 = vmatprep.mubr.f32.mxu0 %v2454
      %4437 = vmatmul.mubr.f32.gmra.mrb[0].mxu0 %v2452
      %v4438 = vpop.f32.mrb[0].mxu0
      %v4439 = vadd.f32 0.0, %v4438
      %v4440 = vpop.f32.mrb[0].mxu0
      %v4441 = vadd.f32 0.0, %v4440
      %4442 = vmatprep.mubr.f32.mxu0 %v2458
      %4443 = vmatmul.mubr.f32.gmra.mrb[0].mxu0 %v2456
      %v4444 = vpop.f32.mrb[0].mxu0
      %v4445 = vadd.f32 0.0, %v4444
      %v4446 = vpop.f32.mrb[0].mxu0
      %v4447 = vadd.f32 0.0, %v4446
      %4448 = vmatprep.mubr.f32.mxu0 %v2526
      %4449 = vmatmul.mubr.f32.gmra.mrb[0].mxu0 %v2525
      %v4450 = vpop.f32.mrb[0].mxu0
      %v4451 = vadd.f32 0.0, %v4450
      %v4452 = vpop.f32.mrb[0].mxu0
      %v4453 = vadd.f32 0.0, %v4452
      %4454 = vdwg.mxu0
      %v4455 = vadd.f32 %v3365, %v4008
      %v4456 = vadd.f32 %v3367, %v4010
      %v4457 = vadd.f32 %v3622, %v4265
      %v4458 = vadd.f32 %v3624, %v4267
      %v4459 = vadd.f32 %v3371, %v4014
      %v4460 = vadd.f32 %v3373, %v4016
      %v4461 = vadd.f32 %v3628, %v4271
      %v4462 = vadd.f32 %v3630, %v4273
      %v4463 = vadd.f32 %v3377, %v4020
      %v4464 = vadd.f32 %v3379, %v4022
      %v4465 = vadd.f32 %v3634, %v4277
      %v4466 = vadd.f32 %v3636, %v4279
      %v4467 = vadd.f32 %v3383, %v4026
      %v4468 = vadd.f32 %v3385, %v4028
      %v4469 = vadd.f32 %v3640, %v4283
      %v4470 = vadd.f32 %v3642, %v4285
      %v4471 = vadd.f32 %v3389, %v4032
      %v4472 = vadd.f32 %v3391, %v4034
      %v4473 = vadd.f32 %v3646, %v4289
      %v4474 = vadd.f32 %v3648, %v4291
      %v4475 = vadd.f32 %v3395, %v4038
      %v4476 = vadd.f32 %v3397, %v4040
      %v4477 = vadd.f32 %v3652, %v4295
      %v4478 = vadd.f32 %v3654, %v4297
      %v4479 = vadd.f32 %v3401, %v4044
      %v4480 = vadd.f32 %v3403, %v4046
      %v4481 = vadd.f32 %v3658, %v4301
      %v4482 = vadd.f32 %v3660, %v4303
      %v4483 = vadd.f32 %v3407, %v4050
      %v4484 = vadd.f32 %v3409, %v4052
      %v4485 = vadd.f32 %v3664, %v4307
      %v4486 = vadd.f32 %v3666, %v4309
      %v4487 = vadd.f32 %v3413, %v4056
      %v4488 = vadd.f32 %v3415, %v4058
      %v4489 = vadd.f32 %v3670, %v4313
      %v4490 = vadd.f32 %v3672, %v4315
      %v4491 = vadd.f32 %v3419, %v4062
      %v4492 = vadd.f32 %v3421, %v4064
      %v4493 = vadd.f32 %v3676, %v4319
      %v4494 = vadd.f32 %v3678, %v4321
      %v4495 = vadd.f32 %v3425, %v4068
      %v4496 = vadd.f32 %v3427, %v4070
      %v4497 = vadd.f32 %v3682, %v4325
      %v4498 = vadd.f32 %v3684, %v4327
      %v4499 = vadd.f32 %v3431, %v4074
      %v4500 = vadd.f32 %v3433, %v4076
      %v4501 = vadd.f32 %v3688, %v4331
      %v4502 = vadd.f32 %v3690, %v4333
      %v4503 = vadd.f32 %v3437, %v4080
      %v4504 = vadd.f32 %v3439, %v4082
      %v4505 = vadd.f32 %v3694, %v4337
      %v4506 = vadd.f32 %v3696, %v4339
      %v4507 = vadd.f32 %v3443, %v4086
      %v4508 = vadd.f32 %v3445, %v4088
      %v4509 = vadd.f32 %v3700, %v4343
      %v4510 = vadd.f32 %v3702, %v4345
      %v4511 = vadd.f32 %v3449, %v4092
      %v4512 = vadd.f32 %v3451, %v4094
      %v4513 = vadd.f32 %v3706, %v4349
      %v4514 = vadd.f32 %v3708, %v4351
      %v4515 = vadd.f32 %v3455, %v4098
      %v4516 = vadd.f32 %v3457, %v4100
      %v4517 = vadd.f32 %v3712, %v4355
      %v4518 = vadd.f32 %v3714, %v4357
      %v4519 = vadd.f32 %v3461, %v4104
      %v4520 = vadd.f32 %v3463, %v4106
      %v4521 = vadd.f32 %v3718, %v4361
      %v4522 = vadd.f32 %v3720, %v4363
      %v4523 = vadd.f32 %v3467, %v4110
      %v4524 = vadd.f32 %v3469, %v4112
      %v4525 = vadd.f32 %v3724, %v4367
      %v4526 = vadd.f32 %v3726, %v4369
      %v4527 = vadd.f32 %v3473, %v4116
      %v4528 = vadd.f32 %v3475, %v4118
      %v4529 = vadd.f32 %v3730, %v4373
      %v4530 = vadd.f32 %v3732, %v4375
      %v4531 = vadd.f32 %v3479, %v4122
      %v4532 = vadd.f32 %v3481, %v4124
      %v4533 = vadd.f32 %v3736, %v4379
      %v4534 = vadd.f32 %v3738, %v4381
      %v4535 = vadd.f32 %v3485, %v4128
      %v4536 = vadd.f32 %v3487, %v4130
      %v4537 = vadd.f32 %v3742, %v4385
      %v4538 = vadd.f32 %v3744, %v4387
      %v4539 = vadd.f32 %v3491, %v4134
      %v4540 = vadd.f32 %v3493, %v4136
      %v4541 = vadd.f32 %v3748, %v4391
      %v4542 = vadd.f32 %v3750, %v4393
      %v4543 = vadd.f32 %v3497, %v4140
      %v4544 = vadd.f32 %v3499, %v4142
      %v4545 = vadd.f32 %v3754, %v4397
      %v4546 = vadd.f32 %v3756, %v4399
      %v4547 = vadd.f32 %v3503, %v4146
      %v4548 = vadd.f32 %v3505, %v4148
      %v4549 = vadd.f32 %v3760, %v4403
      %v4550 = vadd.f32 %v3762, %v4405
      %v4551 = vadd.f32 %v3509, %v4152
      %v4552 = vadd.f32 %v3511, %v4154
      %v4553 = vadd.f32 %v3766, %v4409
      %v4554 = vadd.f32 %v3768, %v4411
      %v4555 = vadd.f32 %v3515, %v4158
      %v4556 = vadd.f32 %v3517, %v4160
      %v4557 = vadd.f32 %v3772, %v4415
      %v4558 = vadd.f32 %v3774, %v4417
      %v4559 = vadd.f32 %v3521, %v4164
      %v4560 = vadd.f32 %v3523, %v4166
      %v4561 = vadd.f32 %v3778, %v4421
      %v4562 = vadd.f32 %v3780, %v4423
      %v4563 = vadd.f32 %v3527, %v4170
      %v4564 = vadd.f32 %v3529, %v4172
      %v4565 = vadd.f32 %v3784, %v4427
      %v4566 = vadd.f32 %v3786, %v4429
      %v4567 = vadd.f32 %v3533, %v4176
      %v4568 = vadd.f32 %v3535, %v4178
      %v4569 = vadd.f32 %v3790, %v4433
      %v4570 = vadd.f32 %v3792, %v4435
      %v4571 = vadd.f32 %v3539, %v4182
      %v4572 = vadd.f32 %v3541, %v4184
      %v4573 = vadd.f32 %v3796, %v4439
      %v4574 = vadd.f32 %v3798, %v4441
      %v4575 = vadd.f32 %v3545, %v4188
      %v4576 = vadd.f32 %v3547, %v4190
      %v4577 = vadd.f32 %v3802, %v4445
      %v4578 = vadd.f32 %v3804, %v4447
      %v4579 = vadd.f32 %v3551, %v4194
      %v4580 = vadd.f32 %v3553, %v4196
      %v4581 = vadd.f32 %v3808, %v4451
      %v4582 = vadd.f32 %v3810, %v4453
      %v4583 = vmax.f32 %v4455, %v4457
      %v4584 = vmax.f32 %v4456, %v4458
      %v4585 = vmax.f32 %v4459, %v4461
      %v4586 = vmax.f32 %v4460, %v4462
      %v4587 = vmax.f32 %v4463, %v4465
      %v4588 = vmax.f32 %v4464, %v4466
      %v4589 = vmax.f32 %v4467, %v4469
      %v4590 = vmax.f32 %v4468, %v4470
      %v4591 = vmax.f32 %v4471, %v4473
      %v4592 = vmax.f32 %v4472, %v4474
      %v4593 = vmax.f32 %v4475, %v4477
      %v4594 = vmax.f32 %v4476, %v4478
      %v4595 = vmax.f32 %v4479, %v4481
      %v4596 = vmax.f32 %v4480, %v4482
      %v4597 = vmax.f32 %v4483, %v4485
      %v4598 = vmax.f32 %v4484, %v4486
      %v4599 = vmax.f32 %v4487, %v4489
      %v4600 = vmax.f32 %v4488, %v4490
      %v4601 = vmax.f32 %v4491, %v4493
      %v4602 = vmax.f32 %v4492, %v4494
      %v4603 = vmax.f32 %v4495, %v4497
      %v4604 = vmax.f32 %v4496, %v4498
      %v4605 = vmax.f32 %v4499, %v4501
      %v4606 = vmax.f32 %v4500, %v4502
      %v4607 = vmax.f32 %v4503, %v4505
      %v4608 = vmax.f32 %v4504, %v4506
      %v4609 = vmax.f32 %v4507, %v4509
      %v4610 = vmax.f32 %v4508, %v4510
      %v4611 = vmax.f32 %v4511, %v4513
      %v4612 = vmax.f32 %v4512, %v4514
      %v4613 = vmax.f32 %v4515, %v4517
      %v4614 = vmax.f32 %v4516, %v4518
      %v4615 = vmax.f32 %v4519, %v4521
      %v4616 = vmax.f32 %v4520, %v4522
      %v4617 = vmax.f32 %v4523, %v4525
      %v4618 = vmax.f32 %v4524, %v4526
      %v4619 = vmax.f32 %v4527, %v4529
      %v4620 = vmax.f32 %v4528, %v4530
      %v4621 = vmax.f32 %v4531, %v4533
      %v4622 = vmax.f32 %v4532, %v4534
      %v4623 = vmax.f32 %v4535, %v4537
      %v4624 = vmax.f32 %v4536, %v4538
      %v4625 = vmax.f32 %v4539, %v4541
      %v4626 = vmax.f32 %v4540, %v4542
      %v4627 = vmax.f32 %v4543, %v4545
      %v4628 = vmax.f32 %v4544, %v4546
      %v4629 = vmax.f32 %v4547, %v4549
      %v4630 = vmax.f32 %v4548, %v4550
      %v4631 = vmax.f32 %v4551, %v4553
      %v4632 = vmax.f32 %v4552, %v4554
      %v4633 = vmax.f32 %v4555, %v4557
      %v4634 = vmax.f32 %v4556, %v4558
      %v4635 = vmax.f32 %v4559, %v4561
      %v4636 = vmax.f32 %v4560, %v4562
      %v4637 = vmax.f32 %v4563, %v4565
      %v4638 = vmax.f32 %v4564, %v4566
      %v4639 = vmax.f32 %v4567, %v4569
      %v4640 = vmax.f32 %v4568, %v4570
      %v4641 = vmax.f32 %v4571, %v4573
      %v4642 = vmax.f32 %v4572, %v4574
      %v4643 = vmax.f32 %v4575, %v4577
      %v4644 = vmax.f32 %v4576, %v4578
      %v4645 = vmax.f32 %v4579, %v4581
      %v4646 = vmax.f32 %v4580, %v4582
      %v4647 = vmax.f32 %v4583, %v4584
      %v4648 = vmax.f32 %v4585, %v4586
      %v4649 = vmax.f32 %v4587, %v4588
      %v4650 = vmax.f32 %v4589, %v4590
      %v4651 = vmax.f32 %v4591, %v4592
      %v4652 = vmax.f32 %v4593, %v4594
      %v4653 = vmax.f32 %v4595, %v4596
      %v4654 = vmax.f32 %v4597, %v4598
      %v4655 = vmax.f32 %v4599, %v4600
      %v4656 = vmax.f32 %v4601, %v4602
      %v4657 = vmax.f32 %v4603, %v4604
      %v4658 = vmax.f32 %v4605, %v4606
      %v4659 = vmax.f32 %v4607, %v4608
      %v4660 = vmax.f32 %v4609, %v4610
      %v4661 = vmax.f32 %v4611, %v4612
      %v4662 = vmax.f32 %v4613, %v4614
      %v4663 = vmax.f32 %v4615, %v4616
      %v4664 = vmax.f32 %v4617, %v4618
      %v4665 = vmax.f32 %v4619, %v4620
      %v4666 = vmax.f32 %v4621, %v4622
      %v4667 = vmax.f32 %v4623, %v4624
      %v4668 = vmax.f32 %v4625, %v4626
      %v4669 = vmax.f32 %v4627, %v4628
      %v4670 = vmax.f32 %v4629, %v4630
      %v4671 = vmax.f32 %v4631, %v4632
      %v4672 = vmax.f32 %v4633, %v4634
      %v4673 = vmax.f32 %v4635, %v4636
      %v4674 = vmax.f32 %v4637, %v4638
      %v4675 = vmax.f32 %v4639, %v4640
      %v4676 = vmax.f32 %v4641, %v4642
      %v4677 = vmax.f32 %v4643, %v4644
      %v4678 = vmax.f32 %v4645, %v4646
      %v4679 = vld [vmem:[%s4] sm:$0x1]
      %v4681 = vlaneseq
      %v4682 = vshrl.u32 %v4681, 7
      %v4683 = vsub.s32 0, %v4682
      %v4684 = vrot.slane %v4679, %v4683
      %v4686 = vadd.f32 %v4647, %v4684
      %v4687 = vadd.f32 %v4648, %v4684
      %v4688 = vadd.f32 %v4649, %v4684
      %v4689 = vadd.f32 %v4650, %v4684
      %v4690 = vadd.f32 %v4651, %v4684
      %v4691 = vadd.f32 %v4652, %v4684
      %v4692 = vadd.f32 %v4653, %v4684
      %v4693 = vadd.f32 %v4654, %v4684
      %v4694 = vadd.f32 %v4655, %v4684
      %v4695 = vadd.f32 %v4656, %v4684
      %v4696 = vadd.f32 %v4657, %v4684
      %v4697 = vadd.f32 %v4658, %v4684
      %v4698 = vadd.f32 %v4659, %v4684
      %v4699 = vadd.f32 %v4660, %v4684
      %v4700 = vadd.f32 %v4661, %v4684
      %v4701 = vadd.f32 %v4662, %v4684
      %v4702 = vadd.f32 %v4663, %v4684
      %v4703 = vadd.f32 %v4664, %v4684
      %v4704 = vadd.f32 %v4665, %v4684
      %v4705 = vadd.f32 %v4666, %v4684
      %v4706 = vadd.f32 %v4667, %v4684
      %v4707 = vadd.f32 %v4668, %v4684
      %v4708 = vadd.f32 %v4669, %v4684
      %v4709 = vadd.f32 %v4670, %v4684
      %v4710 = vadd.f32 %v4671, %v4684
      %v4711 = vadd.f32 %v4672, %v4684
      %v4712 = vadd.f32 %v4673, %v4684
      %v4713 = vadd.f32 %v4674, %v4684
      %v4714 = vadd.f32 %v4675, %v4684
      %v4715 = vadd.f32 %v4676, %v4684
      %v4716 = vadd.f32 %v4677, %v4684
      %v4717 = vadd.f32 %v4678, %v4684
      %v4718 = vmax.f32 %v4686, 0.0
      %v4719 = vmax.f32 %v4687, 0.0
      %v4720 = vmax.f32 %v4688, 0.0
      %v4721 = vmax.f32 %v4689, 0.0
      %v4722 = vmax.f32 %v4690, 0.0
      %v4723 = vmax.f32 %v4691, 0.0
      %v4724 = vmax.f32 %v4692, 0.0
      %v4725 = vmax.f32 %v4693, 0.0
      %v4726 = vmax.f32 %v4694, 0.0
      %v4727 = vmax.f32 %v4695, 0.0
      %v4728 = vmax.f32 %v4696, 0.0
      %v4729 = vmax.f32 %v4697, 0.0
      %v4730 = vmax.f32 %v4698, 0.0
      %v4731 = vmax.f32 %v4699, 0.0
      %v4732 = vmax.f32 %v4700, 0.0
      %v4733 = vmax.f32 %v4701, 0.0
      %v4734 = vmax.f32 %v4702, 0.0
      %v4735 = vmax.f32 %v4703, 0.0
      %v4736 = vmax.f32 %v4704, 0.0
      %v4737 = vmax.f32 %v4705, 0.0
      %v4738 = vmax.f32 %v4706, 0.0
      %v4739 = vmax.f32 %v4707, 0.0
      %v4740 = vmax.f32 %v4708, 0.0
      %v4741 = vmax.f32 %v4709, 0.0
      %v4742 = vmax.f32 %v4710, 0.0
      %v4743 = vmax.f32 %v4711, 0.0
      %v4744 = vmax.f32 %v4712, 0.0
      %v4745 = vmax.f32 %v4713, 0.0
      %v4746 = vmax.f32 %v4714, 0.0
      %v4747 = vmax.f32 %v4715, 0.0
      %v4748 = vmax.f32 %v4716, 0.0
      %v4749 = vmax.f32 %v4717, 0.0
      %v4750 = vld [vmem:[%s5] sm:$0xff]
      %v4751 = vld [vmem:[%s5 + $0x8] sm:$0xff]
      %v4752 = vld [vmem:[%s5 + $0x10] sm:$0xff]
      %v4753 = vld [vmem:[%s5 + $0x18] sm:$0xff]
      %v4754 = vld [vmem:[%s5 + $0x20] sm:$0xff]
      %v4755 = vld [vmem:[%s5 + $0x28] sm:$0xff]
      %v4756 = vld [vmem:[%s5 + $0x30] sm:$0xff]
      %v4757 = vld [vmem:[%s5 + $0x38] sm:$0xff]
      %v4758 = vld [vmem:[%s5 + $0x40] sm:$0xff]
      %v4759 = vld [vmem:[%s5 + $0x48] sm:$0xff]
      %v4760 = vld [vmem:[%s5 + $0x50] sm:$0xff]
      %v4761 = vld [vmem:[%s5 + $0x58] sm:$0xff]
      %v4762 = vld [vmem:[%s5 + $0x60] sm:$0xff]
      %v4763 = vld [vmem:[%s5 + $0x68] sm:$0xff]
      %v4764 = vld [vmem:[%s5 + $0x70] sm:$0xff]
      %v4765 = vld [vmem:[%s5 + $0x78] sm:$0xff]
      %s4766 = scalar_lea.vmem %s5, 128
      %v4767 = vld [vmem:[%s4766] sm:$0xff]
      %v4768 = vld [vmem:[%s4766 + $0x8] sm:$0xff]
      %v4769 = vld [vmem:[%s4766 + $0x10] sm:$0xff]
      %v4770 = vld [vmem:[%s4766 + $0x18] sm:$0xff]
      %v4771 = vld [vmem:[%s4766 + $0x20] sm:$0xff]
      %v4772 = vld [vmem:[%s4766 + $0x28] sm:$0xff]
      %v4773 = vld [vmem:[%s4766 + $0x30] sm:$0xff]
      %v4774 = vld [vmem:[%s4766 + $0x38] sm:$0xff]
      %v4775 = vld [vmem:[%s4766 + $0x40] sm:$0xff]
      %v4776 = vld [vmem:[%s4766 + $0x48] sm:$0xff]
      %v4777 = vld [vmem:[%s4766 + $0x50] sm:$0xff]
      %v4778 = vld [vmem:[%s4766 + $0x58] sm:$0xff]
      %v4779 = vld [vmem:[%s4766 + $0x60] sm:$0xff]
      %v4780 = vld [vmem:[%s4766 + $0x68] sm:$0xff]
      %v4781 = vld [vmem:[%s4766 + $0x70] sm:$0xff]
      %v4782 = vld [vmem:[%s4766 + $0x78] sm:$0xff]
      %v4815 = vrot.slane %v4718, 1
      %vm4816 = vcmask 1041409
      %v4817 = vsel %vm4816, %v4719, %v4815
      %v4818 = vrot.slane %v4720, 7
      %vm4819 = vcmask 1042434
      %v4820 = vsel %vm4819, %v4818, %v4817
      %v4821 = vrot.slane %v4721, 6
      %vm4822 = vcmask 1043459
      %v4823 = vsel %vm4822, %v4821, %v4820
      %v4824 = vrot.slane %v4722, 5
      %vm4825 = vcmask 1044484
      %v4826 = vsel %vm4825, %v4824, %v4823
      %v4827 = vrot.slane %v4723, 4
      %vm4828 = vcmask 1045509
      %v4829 = vsel %vm4828, %v4827, %v4826
      %v4830 = vrot.slane %v4724, 3
      %vm4831 = vcmask 1046534
      %v4832 = vsel %vm4831, %v4830, %v4829
      %v4833 = vrot.slane %v4725, 2
      %vm4834 = vcmask 1047559
      %v4835 = vsel %vm4834, %v4833, %v4832
      %v4836 = vrot.slane %v4726, 1
      %v4837 = vsel %vm4816, %v4727, %v4836
      %v4838 = vrot.slane %v4728, 7
      %v4839 = vsel %vm4819, %v4838, %v4837
      %v4840 = vrot.slane %v4729, 6
      %v4841 = vsel %vm4822, %v4840, %v4839
      %v4842 = vrot.slane %v4730, 5
      %v4843 = vsel %vm4825, %v4842, %v4841
      %v4844 = vrot.slane %v4731, 4
      %v4845 = vsel %vm4828, %v4844, %v4843
      %v4846 = vrot.slane %v4732, 3
      %v4847 = vsel %vm4831, %v4846, %v4845
      %v4848 = vrot.slane %v4733, 2
      %v4849 = vsel %vm4834, %v4848, %v4847
      %v4850 = vrot.slane %v4734, 1
      %v4851 = vsel %vm4816, %v4735, %v4850
      %v4852 = vrot.slane %v4736, 7
      %v4853 = vsel %vm4819, %v4852, %v4851
      %v4854 = vrot.slane %v4737, 6
      %v4855 = vsel %vm4822, %v4854, %v4853
      %v4856 = vrot.slane %v4738, 5
      %v4857 = vsel %vm4825, %v4856, %v4855
      %v4858 = vrot.slane %v4739, 4
      %v4859 = vsel %vm4828, %v4858, %v4857
      %v4860 = vrot.slane %v4740, 3
      %v4861 = vsel %vm4831, %v4860, %v4859
      %v4862 = vrot.slane %v4741, 2
      %v4863 = vsel %vm4834, %v4862, %v4861
      %v4864 = vrot.slane %v4742, 1
      %v4865 = vsel %vm4816, %v4743, %v4864
      %v4866 = vrot.slane %v4744, 7
      %v4867 = vsel %vm4819, %v4866, %v4865
      %v4868 = vrot.slane %v4745, 6
      %v4869 = vsel %vm4822, %v4868, %v4867
      %v4870 = vrot.slane %v4746, 5
      %v4871 = vsel %vm4825, %v4870, %v4869
      %v4872 = vrot.slane %v4747, 4
      %v4873 = vsel %vm4828, %v4872, %v4871
      %v4874 = vrot.slane %v4748, 3
      %v4875 = vsel %vm4831, %v4874, %v4873
      %v4876 = vrot.slane %v4749, 2
      %v4877 = vsel %vm4834, %v4876, %v4875
      %4882 = vmatprep.subr.mxu0 0.0
      %4883 = vmatpush1.msra.mxu0 %v4767
      %4884 = vmatprep.subr.mxu0 0.0
      %4885 = vmatpush1.msra.mxu0 %v4768
      %4886 = vmatprep.subr.mxu0 0.0
      %4887 = vmatpush1.msra.mxu0 %v4769
      %4888 = vmatprep.subr.mxu0 0.0
      %4889 = vmatpush1.msra.mxu0 %v4770
      %4890 = vmatprep.subr.mxu0 0.0
      %4891 = vmatpush1.msra.mxu0 %v4771
      %4892 = vmatprep.subr.mxu0 0.0
      %4893 = vmatpush1.msra.mxu0 %v4772
      %4894 = vmatprep.subr.mxu0 0.0
      %4895 = vmatpush1.msra.mxu0 %v4773
      %4896 = vmatprep.subr.mxu0 0.0
      %4897 = vmatpush1.msra.mxu0 %v4774
      %4898 = vmatprep.subr.mxu0 0.0
      %4899 = vmatpush1.msra.mxu0 %v4775
      %4900 = vmatprep.subr.mxu0 0.0
      %4901 = vmatpush1.msra.mxu0 %v4776
      %4902 = vmatprep.subr.mxu0 0.0
      %4903 = vmatpush1.msra.mxu0 %v4777
      %4904 = vmatprep.subr.mxu0 0.0
      %4905 = vmatpush1.msra.mxu0 %v4778
      %4906 = vmatprep.subr.mxu0 0.0
      %4907 = vmatpush1.msra.mxu0 %v4779
      %4908 = vmatprep.subr.mxu0 0.0
      %4909 = vmatpush1.msra.mxu0 %v4780
      %4910 = vmatprep.subr.mxu0 0.0
      %4911 = vmatpush1.msra.mxu0 %v4781
      %4912 = vmatprep.subr.mxu0 0.0
      %4913 = vmatpush1.msra.mxu0 %v4782
      %4914 = vmatprep.subr.mxu0 0.0
      %4915 = vmatpush1.msra.mxu0 0.0
      %4916 = vmatprep.subr.mxu0 0.0
      %4917 = vmatpush1.msra.mxu0 0.0
      %4918 = vmatprep.subr.mxu0 0.0
      %4919 = vmatpush1.msra.mxu0 0.0
      %4920 = vmatprep.subr.mxu0 0.0
      %4921 = vmatpush1.msra.mxu0 0.0
      %4922 = vmatprep.subr.mxu0 0.0
      %4923 = vmatpush1.msra.mxu0 0.0
      %4924 = vmatprep.subr.mxu0 0.0
      %4925 = vmatpush1.msra.mxu0 0.0
      %4926 = vmatprep.subr.mxu0 0.0
      %4927 = vmatpush1.msra.mxu0 0.0
      %4928 = vmatprep.subr.mxu0 0.0
      %4929 = vmatpush1.msra.mxu0 0.0
      %4930 = vmatprep.subr.mxu0 0.0
      %4931 = vmatpush1.msra.mxu0 0.0
      %4932 = vmatprep.subr.mxu0 0.0
      %4933 = vmatpush1.msra.mxu0 0.0
      %4934 = vmatprep.subr.mxu0 0.0
      %4935 = vmatpush1.msra.mxu0 0.0
      %4936 = vmatprep.subr.mxu0 0.0
      %4937 = vmatpush1.msra.mxu0 0.0
      %4938 = vmatprep.subr.mxu0 0.0
      %4939 = vmatpush1.msra.mxu0 0.0
      %4940 = vmatprep.subr.mxu0 0.0
      %4941 = vmatpush1.msra.mxu0 0.0
      %4942 = vmatprep.subr.mxu0 0.0
      %4943 = vmatpush1.msra.mxu0 0.0
      %4944 = vmatprep.subr.mxu0 0.0
      %4945 = vmatpush1.msra.mxu0 0.0
      %4946 = vmatprep.mubr.f32.mxu0 0.0
      %4947 = vmatmul.mubr.f32.gmra.mrb[0].mxu0 %v4835
      %v4948 = vpop.f32.mrb[0].mxu0
      %v4949 = vadd.f32 0.0, %v4948
      %v4950 = vpop.f32.mrb[0].mxu0
      %4951 = vmatprep.mubr.f32.mxu0 0.0
      %4952 = vmatmul.mubr.f32.gmra.mrb[0].mxu0 %v4849
      %v4953 = vpop.f32.mrb[0].mxu0
      %v4954 = vadd.f32 0.0, %v4953
      %v4955 = vpop.f32.mrb[0].mxu0
      %4956 = vmatprep.mubr.f32.mxu0 0.0
      %4957 = vmatmul.mubr.f32.gmra.mrb[0].mxu0 %v4863
      %v4958 = vpop.f32.mrb[0].mxu0
      %v4959 = vadd.f32 0.0, %v4958
      %v4960 = vpop.f32.mrb[0].mxu0
      %4961 = vmatprep.mubr.f32.mxu0 0.0
      %4962 = vmatmul.mubr.f32.gmra.mrb[0].mxu0 %v4877
      %v4963 = vpop.f32.mrb[0].mxu0
      %v4964 = vadd.f32 0.0, %v4963
      %v4965 = vpop.f32.mrb[0].mxu0
      %4966 = vdwg.mxu0
      %v4967 = vrot.slane %v4719, 7
      %v4968 = vsel %vm4816, %v4967, %v4718
      %v4969 = vrot.slane %v4720, 6
      %v4970 = vsel %vm4819, %v4969, %v4968
      %v4971 = vrot.slane %v4721, 5
      %v4972 = vsel %vm4822, %v4971, %v4970
      %v4973 = vrot.slane %v4722, 4
      %v4974 = vsel %vm4825, %v4973, %v4972
      %v4975 = vrot.slane %v4723, 3
      %v4976 = vsel %vm4828, %v4975, %v4974
      %v4977 = vrot.slane %v4724, 2
      %v4978 = vsel %vm4831, %v4977, %v4976
      %v4979 = vrot.slane %v4725, 1
      %v4980 = vsel %vm4834, %v4979, %v4978
      %v4981 = vrot.slane %v4727, 7
      %v4982 = vsel %vm4816, %v4981, %v4726
      %v4983 = vrot.slane %v4728, 6
      %v4984 = vsel %vm4819, %v4983, %v4982
      %v4985 = vrot.slane %v4729, 5
      %v4986 = vsel %vm4822, %v4985, %v4984
      %v4987 = vrot.slane %v4730, 4
      %v4988 = vsel %vm4825, %v4987, %v4986
      %v4989 = vrot.slane %v4731, 3
      %v4990 = vsel %vm4828, %v4989, %v4988
      %v4991 = vrot.slane %v4732, 2
      %v4992 = vsel %vm4831, %v4991, %v4990
      %v4993 = vrot.slane %v4733, 1
      %v4994 = vsel %vm4834, %v4993, %v4992
      %v4995 = vrot.slane %v4735, 7
      %v4996 = vsel %vm4816, %v4995, %v4734
      %v4997 = vrot.slane %v4736, 6
      %v4998 = vsel %vm4819, %v4997, %v4996
      %v4999 = vrot.slane %v4737, 5
      %v5000 = vsel %vm4822, %v4999, %v4998
      %v5001 = vrot.slane %v4738, 4
      %v5002 = vsel %vm4825, %v5001, %v5000
      %v5003 = vrot.slane %v4739, 3
      %v5004 = vsel %vm4828, %v5003, %v5002
      %v5005 = vrot.slane %v4740, 2
      %v5006 = vsel %vm4831, %v5005, %v5004
      %v5007 = vrot.slane %v4741, 1
      %v5008 = vsel %vm4834, %v5007, %v5006
      %v5009 = vrot.slane %v4743, 7
      %v5010 = vsel %vm4816, %v5009, %v4742
      %v5011 = vrot.slane %v4744, 6
      %v5012 = vsel %vm4819, %v5011, %v5010
      %v5013 = vrot.slane %v4745, 5
      %v5014 = vsel %vm4822, %v5013, %v5012
      %v5015 = vrot.slane %v4746, 4
      %v5016 = vsel %vm4825, %v5015, %v5014
      %v5017 = vrot.slane %v4747, 3
      %v5018 = vsel %vm4828, %v5017, %v5016
      %v5019 = vrot.slane %v4748, 2
      %v5020 = vsel %vm4831, %v5019, %v5018
      %v5021 = vrot.slane %v4749, 1
      %v5022 = vsel %vm4834, %v5021, %v5020
      %5027 = vmatprep.subr.mxu0 0.0
      %5028 = vmatpush1.msra.mxu0 %v4750
      %5029 = vmatprep.subr.mxu0 0.0
      %5030 = vmatpush1.msra.mxu0 %v4751
      %5031 = vmatprep.subr.mxu0 0.0
      %5032 = vmatpush1.msra.mxu0 %v4752
      %5033 = vmatprep.subr.mxu0 0.0
      %5034 = vmatpush1.msra.mxu0 %v4753
      %5035 = vmatprep.subr.mxu0 0.0
      %5036 = vmatpush1.msra.mxu0 %v4754
      %5037 = vmatprep.subr.mxu0 0.0
      %5038 = vmatpush1.msra.mxu0 %v4755
      %5039 = vmatprep.subr.mxu0 0.0
      %5040 = vmatpush1.msra.mxu0 %v4756
      %5041 = vmatprep.subr.mxu0 0.0
      %5042 = vmatpush1.msra.mxu0 %v4757
      %5043 = vmatprep.subr.mxu0 0.0
      %5044 = vmatpush1.msra.mxu0 %v4758
      %5045 = vmatprep.subr.mxu0 0.0
      %5046 = vmatpush1.msra.mxu0 %v4759
      %5047 = vmatprep.subr.mxu0 0.0
      %5048 = vmatpush1.msra.mxu0 %v4760
      %5049 = vmatprep.subr.mxu0 0.0
      %5050 = vmatpush1.msra.mxu0 %v4761
      %5051 = vmatprep.subr.mxu0 0.0
      %5052 = vmatpush1.msra.mxu0 %v4762
      %5053 = vmatprep.subr.mxu0 0.0
      %5054 = vmatpush1.msra.mxu0 %v4763
      %5055 = vmatprep.subr.mxu0 0.0
      %5056 = vmatpush1.msra.mxu0 %v4764
      %5057 = vmatprep.subr.mxu0 0.0
      %5058 = vmatpush1.msra.mxu0 %v4765
      %5059 = vmatprep.subr.mxu0 0.0
      %5060 = vmatpush1.msra.mxu0 0.0
      %5061 = vmatprep.subr.mxu0 0.0
      %5062 = vmatpush1.msra.mxu0 0.0
      %5063 = vmatprep.subr.mxu0 0.0
      %5064 = vmatpush1.msra.mxu0 0.0
      %5065 = vmatprep.subr.mxu0 0.0
      %5066 = vmatpush1.msra.mxu0 0.0
      %5067 = vmatprep.subr.mxu0 0.0
      %5068 = vmatpush1.msra.mxu0 0.0
      %5069 = vmatprep.subr.mxu0 0.0
      %5070 = vmatpush1.msra.mxu0 0.0
      %5071 = vmatprep.subr.mxu0 0.0
      %5072 = vmatpush1.msra.mxu0 0.0
      %5073 = vmatprep.subr.mxu0 0.0
      %5074 = vmatpush1.msra.mxu0 0.0
      %5075 = vmatprep.subr.mxu0 0.0
      %5076 = vmatpush1.msra.mxu0 0.0
      %5077 = vmatprep.subr.mxu0 0.0
      %5078 = vmatpush1.msra.mxu0 0.0
      %5079 = vmatprep.subr.mxu0 0.0
      %5080 = vmatpush1.msra.mxu0 0.0
      %5081 = vmatprep.subr.mxu0 0.0
      %5082 = vmatpush1.msra.mxu0 0.0
      %5083 = vmatprep.subr.mxu0 0.0
      %5084 = vmatpush1.msra.mxu0 0.0
      %5085 = vmatprep.subr.mxu0 0.0
      %5086 = vmatpush1.msra.mxu0 0.0
      %5087 = vmatprep.subr.mxu0 0.0
      %5088 = vmatpush1.msra.mxu0 0.0
      %5089 = vmatprep.subr.mxu0 0.0
      %5090 = vmatpush1.msra.mxu0 0.0
      %5091 = vmatprep.mubr.f32.mxu0 0.0
      %5092 = vmatmul.mubr.f32.gmra.mrb[0].mxu0 %v4980
      %v5093 = vpop.f32.mrb[0].mxu0
      %v5094 = vadd.f32 %v4949, %v5093
      %v5095 = vpop.f32.mrb[0].mxu0
      %5096 = vmatprep.mubr.f32.mxu0 0.0
      %5097 = vmatmul.mubr.f32.gmra.mrb[0].mxu0 %v4994
      %v5098 = vpop.f32.mrb[0].mxu0
      %v5099 = vadd.f32 %v4954, %v5098
      %v5100 = vpop.f32.mrb[0].mxu0
      %5101 = vmatprep.mubr.f32.mxu0 0.0
      %5102 = vmatmul.mubr.f32.gmra.mrb[0].mxu0 %v5008
      %v5103 = vpop.f32.mrb[0].mxu0
      %v5104 = vadd.f32 %v4959, %v5103
      %v5105 = vpop.f32.mrb[0].mxu0
      %5106 = vmatprep.mubr.f32.mxu0 0.0
      %5107 = vmatmul.mubr.f32.gmra.mrb[0].mxu0 %v5022
      %v5108 = vpop.f32.mrb[0].mxu0
      %v5109 = vadd.f32 %v4964, %v5108
      %v5110 = vpop.f32.mrb[0].mxu0
      %5111 = vdwg.mxu0
      %s5112 = scalar_lea.vmem %s5, 256
      %v5113 = vld [vmem:[%s5112] sm:$0xff]
      %v5114 = vld [vmem:[%s5112 + $0x8] sm:$0xff]
      %v5115 = vld [vmem:[%s5112 + $0x10] sm:$0xff]
      %v5116 = vld [vmem:[%s5112 + $0x18] sm:$0xff]
      %v5117 = vld [vmem:[%s5112 + $0x20] sm:$0xff]
      %v5118 = vld [vmem:[%s5112 + $0x28] sm:$0xff]
      %v5119 = vld [vmem:[%s5112 + $0x30] sm:$0xff]
      %v5120 = vld [vmem:[%s5112 + $0x38] sm:$0xff]
      %v5121 = vld [vmem:[%s5112 + $0x40] sm:$0xff]
      %v5122 = vld [vmem:[%s5112 + $0x48] sm:$0xff]
      %v5123 = vld [vmem:[%s5112 + $0x50] sm:$0xff]
      %v5124 = vld [vmem:[%s5112 + $0x58] sm:$0xff]
      %v5125 = vld [vmem:[%s5112 + $0x60] sm:$0xff]
      %v5126 = vld [vmem:[%s5112 + $0x68] sm:$0xff]
      %v5127 = vld [vmem:[%s5112 + $0x70] sm:$0xff]
      %v5128 = vld [vmem:[%s5112 + $0x78] sm:$0xff]
      %v5129 = vrot.slane %v4718, 2
      %v5130 = vrot.slane %v4719, 1
      %v5131 = vsel %vm4816, %v5130, %v5129
      %v5132 = vsel %vm4819, %v4720, %v5131
      %v5133 = vrot.slane %v4721, 7
      %v5134 = vsel %vm4822, %v5133, %v5132
      %v5135 = vrot.slane %v4722, 6
      %v5136 = vsel %vm4825, %v5135, %v5134
      %v5137 = vrot.slane %v4723, 5
      %v5138 = vsel %vm4828, %v5137, %v5136
      %v5139 = vrot.slane %v4724, 4
      %v5140 = vsel %vm4831, %v5139, %v5138
      %v5141 = vrot.slane %v4725, 3
      %v5142 = vsel %vm4834, %v5141, %v5140
      %v5143 = vrot.slane %v4726, 2
      %v5144 = vrot.slane %v4727, 1
      %v5145 = vsel %vm4816, %v5144, %v5143
      %v5146 = vsel %vm4819, %v4728, %v5145
      %v5147 = vrot.slane %v4729, 7
      %v5148 = vsel %vm4822, %v5147, %v5146
      %v5149 = vrot.slane %v4730, 6
      %v5150 = vsel %vm4825, %v5149, %v5148
      %v5151 = vrot.slane %v4731, 5
      %v5152 = vsel %vm4828, %v5151, %v5150
      %v5153 = vrot.slane %v4732, 4
      %v5154 = vsel %vm4831, %v5153, %v5152
      %v5155 = vrot.slane %v4733, 3
      %v5156 = vsel %vm4834, %v5155, %v5154
      %v5157 = vrot.slane %v4734, 2
      %v5158 = vrot.slane %v4735, 1
      %v5159 = vsel %vm4816, %v5158, %v5157
      %v5160 = vsel %vm4819, %v4736, %v5159
      %v5161 = vrot.slane %v4737, 7
      %v5162 = vsel %vm4822, %v5161, %v5160
      %v5163 = vrot.slane %v4738, 6
      %v5164 = vsel %vm4825, %v5163, %v5162
      %v5165 = vrot.slane %v4739, 5
      %v5166 = vsel %vm4828, %v5165, %v5164
      %v5167 = vrot.slane %v4740, 4
      %v5168 = vsel %vm4831, %v5167, %v5166
      %v5169 = vrot.slane %v4741, 3
      %v5170 = vsel %vm4834, %v5169, %v5168
      %v5171 = vrot.slane %v4742, 2
      %v5172 = vrot.slane %v4743, 1
      %v5173 = vsel %vm4816, %v5172, %v5171
      %v5174 = vsel %vm4819, %v4744, %v5173
      %v5175 = vrot.slane %v4745, 7
      %v5176 = vsel %vm4822, %v5175, %v5174
      %v5177 = vrot.slane %v4746, 6
      %v5178 = vsel %vm4825, %v5177, %v5176
      %v5179 = vrot.slane %v4747, 5
      %v5180 = vsel %vm4828, %v5179, %v5178
      %v5181 = vrot.slane %v4748, 4
      %v5182 = vsel %vm4831, %v5181, %v5180
      %v5183 = vrot.slane %v4749, 3
      %v5184 = vsel %vm4834, %v5183, %v5182
      %5189 = vmatprep.subr.mxu0 0.0
      %5190 = vmatpush1.msra.mxu0 %v5113
      %5191 = vmatprep.subr.mxu0 0.0
      %5192 = vmatpush1.msra.mxu0 %v5114
      %5193 = vmatprep.subr.mxu0 0.0
      %5194 = vmatpush1.msra.mxu0 %v5115
      %5195 = vmatprep.subr.mxu0 0.0
      %5196 = vmatpush1.msra.mxu0 %v5116
      %5197 = vmatprep.subr.mxu0 0.0
      %5198 = vmatpush1.msra.mxu0 %v5117
      %5199 = vmatprep.subr.mxu0 0.0
      %5200 = vmatpush1.msra.mxu0 %v5118
      %5201 = vmatprep.subr.mxu0 0.0
      %5202 = vmatpush1.msra.mxu0 %v5119
      %5203 = vmatprep.subr.mxu0 0.0
      %5204 = vmatpush1.msra.mxu0 %v5120
      %5205 = vmatprep.subr.mxu0 0.0
      %5206 = vmatpush1.msra.mxu0 %v5121
      %5207 = vmatprep.subr.mxu0 0.0
      %5208 = vmatpush1.msra.mxu0 %v5122
      %5209 = vmatprep.subr.mxu0 0.0
      %5210 = vmatpush1.msra.mxu0 %v5123
      %5211 = vmatprep.subr.mxu0 0.0
      %5212 = vmatpush1.msra.mxu0 %v5124
      %5213 = vmatprep.subr.mxu0 0.0
      %5214 = vmatpush1.msra.mxu0 %v5125
      %5215 = vmatprep.subr.mxu0 0.0
      %5216 = vmatpush1.msra.mxu0 %v5126
      %5217 = vmatprep.subr.mxu0 0.0
      %5218 = vmatpush1.msra.mxu0 %v5127
      %5219 = vmatprep.subr.mxu0 0.0
      %5220 = vmatpush1.msra.mxu0 %v5128
      %5221 = vmatprep.subr.mxu0 0.0
      %5222 = vmatpush1.msra.mxu0 0.0
      %5223 = vmatprep.subr.mxu0 0.0
      %5224 = vmatpush1.msra.mxu0 0.0
      %5225 = vmatprep.subr.mxu0 0.0
      %5226 = vmatpush1.msra.mxu0 0.0
      %5227 = vmatprep.subr.mxu0 0.0
      %5228 = vmatpush1.msra.mxu0 0.0
      %5229 = vmatprep.subr.mxu0 0.0
      %5230 = vmatpush1.msra.mxu0 0.0
      %5231 = vmatprep.subr.mxu0 0.0
      %5232 = vmatpush1.msra.mxu0 0.0
      %5233 = vmatprep.subr.mxu0 0.0
      %5234 = vmatpush1.msra.mxu0 0.0
      %5235 = vmatprep.subr.mxu0 0.0
      %5236 = vmatpush1.msra.mxu0 0.0
      %5237 = vmatprep.subr.mxu0 0.0
      %5238 = vmatpush1.msra.mxu0 0.0
      %5239 = vmatprep.subr.mxu0 0.0
      %5240 = vmatpush1.msra.mxu0 0.0
      %5241 = vmatprep.subr.mxu0 0.0
      %5242 = vmatpush1.msra.mxu0 0.0
      %5243 = vmatprep.subr.mxu0 0.0
      %5244 = vmatpush1.msra.mxu0 0.0
      %5245 = vmatprep.subr.mxu0 0.0
      %5246 = vmatpush1.msra.mxu0 0.0
      %5247 = vmatprep.subr.mxu0 0.0
      %5248 = vmatpush1.msra.mxu0 0.0
      %5249 = vmatprep.subr.mxu0 0.0
      %5250 = vmatpush1.msra.mxu0 0.0
      %5251 = vmatprep.subr.mxu0 0.0
      %5252 = vmatpush1.msra.mxu0 0.0
      %5253 = vmatprep.mubr.f32.mxu0 0.0
      %5254 = vmatmul.mubr.f32.gmra.mrb[0].mxu0 %v5142
      %v5255 = vpop.f32.mrb[0].mxu0
      %v5256 = vadd.f32 0.0, %v5255
      %v5257 = vpop.f32.mrb[0].mxu0
      %5258 = vmatprep.mubr.f32.mxu0 0.0
      %5259 = vmatmul.mubr.f32.gmra.mrb[0].mxu0 %v5156
      %v5260 = vpop.f32.mrb[0].mxu0
      %v5261 = vadd.f32 0.0, %v5260
      %v5262 = vpop.f32.mrb[0].mxu0
      %5263 = vmatprep.mubr.f32.mxu0 0.0
      %5264 = vmatmul.mubr.f32.gmra.mrb[0].mxu0 %v5170
      %v5265 = vpop.f32.mrb[0].mxu0
      %v5266 = vadd.f32 0.0, %v5265
      %v5267 = vpop.f32.mrb[0].mxu0
      %5268 = vmatprep.mubr.f32.mxu0 0.0
      %5269 = vmatmul.mubr.f32.gmra.mrb[0].mxu0 %v5184
      %v5270 = vpop.f32.mrb[0].mxu0
      %v5271 = vadd.f32 0.0, %v5270
      %v5272 = vpop.f32.mrb[0].mxu0
      %5273 = vdwg.mxu0
      %v5274 = vadd.f32 %v5094, %v5256
      %v5275 = vadd.f32 %v5099, %v5261
      %v5276 = vadd.f32 %v5104, %v5266
      %v5277 = vadd.f32 %v5109, %v5271
      %s5278 = scalar_lea.vmem %s5, 384
      %v5279 = vld [vmem:[%s5278] sm:$0xff]
      %v5280 = vld [vmem:[%s5278 + $0x8] sm:$0xff]
      %v5281 = vld [vmem:[%s5278 + $0x10] sm:$0xff]
      %v5282 = vld [vmem:[%s5278 + $0x18] sm:$0xff]
      %v5283 = vld [vmem:[%s5278 + $0x20] sm:$0xff]
      %v5284 = vld [vmem:[%s5278 + $0x28] sm:$0xff]
      %v5285 = vld [vmem:[%s5278 + $0x30] sm:$0xff]
      %v5286 = vld [vmem:[%s5278 + $0x38] sm:$0xff]
      %v5287 = vld [vmem:[%s5278 + $0x40] sm:$0xff]
      %v5288 = vld [vmem:[%s5278 + $0x48] sm:$0xff]
      %v5289 = vld [vmem:[%s5278 + $0x50] sm:$0xff]
      %v5290 = vld [vmem:[%s5278 + $0x58] sm:$0xff]
      %v5291 = vld [vmem:[%s5278 + $0x60] sm:$0xff]
      %v5292 = vld [vmem:[%s5278 + $0x68] sm:$0xff]
      %v5293 = vld [vmem:[%s5278 + $0x70] sm:$0xff]
      %v5294 = vld [vmem:[%s5278 + $0x78] sm:$0xff]
      %v5295 = vrot.slane %v4718, 3
      %v5296 = vrot.slane %v4719, 2
      %v5297 = vsel %vm4816, %v5296, %v5295
      %v5298 = vrot.slane %v4720, 1
      %v5299 = vsel %vm4819, %v5298, %v5297
      %v5300 = vsel %vm4822, %v4721, %v5299
      %v5301 = vrot.slane %v4722, 7
      %v5302 = vsel %vm4825, %v5301, %v5300
      %v5303 = vrot.slane %v4723, 6
      %v5304 = vsel %vm4828, %v5303, %v5302
      %v5305 = vrot.slane %v4724, 5
      %v5306 = vsel %vm4831, %v5305, %v5304
      %v5307 = vrot.slane %v4725, 4
      %v5308 = vsel %vm4834, %v5307, %v5306
      %v5309 = vrot.slane %v4726, 3
      %v5310 = vrot.slane %v4727, 2
      %v5311 = vsel %vm4816, %v5310, %v5309
      %v5312 = vrot.slane %v4728, 1
      %v5313 = vsel %vm4819, %v5312, %v5311
      %v5314 = vsel %vm4822, %v4729, %v5313
      %v5315 = vrot.slane %v4730, 7
      %v5316 = vsel %vm4825, %v5315, %v5314
      %v5317 = vrot.slane %v4731, 6
      %v5318 = vsel %vm4828, %v5317, %v5316
      %v5319 = vrot.slane %v4732, 5
      %v5320 = vsel %vm4831, %v5319, %v5318
      %v5321 = vrot.slane %v4733, 4
      %v5322 = vsel %vm4834, %v5321, %v5320
      %v5323 = vrot.slane %v4734, 3
      %v5324 = vrot.slane %v4735, 2
      %v5325 = vsel %vm4816, %v5324, %v5323
      %v5326 = vrot.slane %v4736, 1
      %v5327 = vsel %vm4819, %v5326, %v5325
      %v5328 = vsel %vm4822, %v4737, %v5327
      %v5329 = vrot.slane %v4738, 7
      %v5330 = vsel %vm4825, %v5329, %v5328
      %v5331 = vrot.slane %v4739, 6
      %v5332 = vsel %vm4828, %v5331, %v5330
      %v5333 = vrot.slane %v4740, 5
      %v5334 = vsel %vm4831, %v5333, %v5332
      %v5335 = vrot.slane %v4741, 4
      %v5336 = vsel %vm4834, %v5335, %v5334
      %v5337 = vrot.slane %v4742, 3
      %v5338 = vrot.slane %v4743, 2
      %v5339 = vsel %vm4816, %v5338, %v5337
      %v5340 = vrot.slane %v4744, 1
      %v5341 = vsel %vm4819, %v5340, %v5339
      %v5342 = vsel %vm4822, %v4745, %v5341
      %v5343 = vrot.slane %v4746, 7
      %v5344 = vsel %vm4825, %v5343, %v5342
      %v5345 = vrot.slane %v4747, 6
      %v5346 = vsel %vm4828, %v5345, %v5344
      %v5347 = vrot.slane %v4748, 5
      %v5348 = vsel %vm4831, %v5347, %v5346
      %v5349 = vrot.slane %v4749, 4
      %v5350 = vsel %vm4834, %v5349, %v5348
      %5355 = vmatprep.subr.mxu0 0.0
      %5356 = vmatpush1.msra.mxu0 %v5279
      %5357 = vmatprep.subr.mxu0 0.0
      %5358 = vmatpush1.msra.mxu0 %v5280
      %5359 = vmatprep.subr.mxu0 0.0
      %5360 = vmatpush1.msra.mxu0 %v5281
      %5361 = vmatprep.subr.mxu0 0.0
      %5362 = vmatpush1.msra.mxu0 %v5282
      %5363 = vmatprep.subr.mxu0 0.0
      %5364 = vmatpush1.msra.mxu0 %v5283
      %5365 = vmatprep.subr.mxu0 0.0
      %5366 = vmatpush1.msra.mxu0 %v5284
      %5367 = vmatprep.subr.mxu0 0.0
      %5368 = vmatpush1.msra.mxu0 %v5285
      %5369 = vmatprep.subr.mxu0 0.0
      %5370 = vmatpush1.msra.mxu0 %v5286
      %5371 = vmatprep.subr.mxu0 0.0
      %5372 = vmatpush1.msra.mxu0 %v5287
      %5373 = vmatprep.subr.mxu0 0.0
      %5374 = vmatpush1.msra.mxu0 %v5288
      %5375 = vmatprep.subr.mxu0 0.0
      %5376 = vmatpush1.msra.mxu0 %v5289
      %5377 = vmatprep.subr.mxu0 0.0
      %5378 = vmatpush1.msra.mxu0 %v5290
      %5379 = vmatprep.subr.mxu0 0.0
      %5380 = vmatpush1.msra.mxu0 %v5291
      %5381 = vmatprep.subr.mxu0 0.0
      %5382 = vmatpush1.msra.mxu0 %v5292
      %5383 = vmatprep.subr.mxu0 0.0
      %5384 = vmatpush1.msra.mxu0 %v5293
      %5385 = vmatprep.subr.mxu0 0.0
      %5386 = vmatpush1.msra.mxu0 %v5294
      %5387 = vmatprep.subr.mxu0 0.0
      %5388 = vmatpush1.msra.mxu0 0.0
      %5389 = vmatprep.subr.mxu0 0.0
      %5390 = vmatpush1.msra.mxu0 0.0
      %5391 = vmatprep.subr.mxu0 0.0
      %5392 = vmatpush1.msra.mxu0 0.0
      %5393 = vmatprep.subr.mxu0 0.0
      %5394 = vmatpush1.msra.mxu0 0.0
      %5395 = vmatprep.subr.mxu0 0.0
      %5396 = vmatpush1.msra.mxu0 0.0
      %5397 = vmatprep.subr.mxu0 0.0
      %5398 = vmatpush1.msra.mxu0 0.0
      %5399 = vmatprep.subr.mxu0 0.0
      %5400 = vmatpush1.msra.mxu0 0.0
      %5401 = vmatprep.subr.mxu0 0.0
      %5402 = vmatpush1.msra.mxu0 0.0
      %5403 = vmatprep.subr.mxu0 0.0
      %5404 = vmatpush1.msra.mxu0 0.0
      %5405 = vmatprep.subr.mxu0 0.0
      %5406 = vmatpush1.msra.mxu0 0.0
      %5407 = vmatprep.subr.mxu0 0.0
      %5408 = vmatpush1.msra.mxu0 0.0
      %5409 = vmatprep.subr.mxu0 0.0
      %5410 = vmatpush1.msra.mxu0 0.0
      %5411 = vmatprep.subr.mxu0 0.0
      %5412 = vmatpush1.msra.mxu0 0.0
      %5413 = vmatprep.subr.mxu0 0.0
      %5414 = vmatpush1.msra.mxu0 0.0
      %5415 = vmatprep.subr.mxu0 0.0
      %5416 = vmatpush1.msra.mxu0 0.0
      %5417 = vmatprep.subr.mxu0 0.0
      %5418 = vmatpush1.msra.mxu0 0.0
      %5419 = vmatprep.mubr.f32.mxu0 0.0
      %5420 = vmatmul.mubr.f32.gmra.mrb[0].mxu0 %v5308
      %v5421 = vpop.f32.mrb[0].mxu0
      %v5422 = vadd.f32 0.0, %v5421
      %v5423 = vpop.f32.mrb[0].mxu0
      %5424 = vmatprep.mubr.f32.mxu0 0.0
      %5425 = vmatmul.mubr.f32.gmra.mrb[0].mxu0 %v5322
      %v5426 = vpop.f32.mrb[0].mxu0
      %v5427 = vadd.f32 0.0, %v5426
      %v5428 = vpop.f32.mrb[0].mxu0
      %5429 = vmatprep.mubr.f32.mxu0 0.0
      %5430 = vmatmul.mubr.f32.gmra.mrb[0].mxu0 %v5336
      %v5431 = vpop.f32.mrb[0].mxu0
      %v5432 = vadd.f32 0.0, %v5431
      %v5433 = vpop.f32.mrb[0].mxu0
      %5434 = vmatprep.mubr.f32.mxu0 0.0
      %5435 = vmatmul.mubr.f32.gmra.mrb[0].mxu0 %v5350
      %v5436 = vpop.f32.mrb[0].mxu0
      %v5437 = vadd.f32 0.0, %v5436
      %v5438 = vpop.f32.mrb[0].mxu0
      %5439 = vdwg.mxu0
      %v5440 = vadd.f32 %v5274, %v5422
      %v5441 = vadd.f32 %v5275, %v5427
      %v5442 = vadd.f32 %v5276, %v5432
      %v5443 = vadd.f32 %v5277, %v5437
      %s5444 = scalar_lea.vmem %s5, 512
      %v5445 = vld [vmem:[%s5444] sm:$0xff]
      %v5446 = vld [vmem:[%s5444 + $0x8] sm:$0xff]
      %v5447 = vld [vmem:[%s5444 + $0x10] sm:$0xff]
      %v5448 = vld [vmem:[%s5444 + $0x18] sm:$0xff]
      %v5449 = vld [vmem:[%s5444 + $0x20] sm:$0xff]
      %v5450 = vld [vmem:[%s5444 + $0x28] sm:$0xff]
      %v5451 = vld [vmem:[%s5444 + $0x30] sm:$0xff]
      %v5452 = vld [vmem:[%s5444 + $0x38] sm:$0xff]
      %v5453 = vld [vmem:[%s5444 + $0x40] sm:$0xff]
      %v5454 = vld [vmem:[%s5444 + $0x48] sm:$0xff]
      %v5455 = vld [vmem:[%s5444 + $0x50] sm:$0xff]
      %v5456 = vld [vmem:[%s5444 + $0x58] sm:$0xff]
      %v5457 = vld [vmem:[%s5444 + $0x60] sm:$0xff]
      %v5458 = vld [vmem:[%s5444 + $0x68] sm:$0xff]
      %v5459 = vld [vmem:[%s5444 + $0x70] sm:$0xff]
      %v5460 = vld [vmem:[%s5444 + $0x78] sm:$0xff]
      %v5461 = vrot.slane %v4718, 4
      %v5462 = vrot.slane %v4719, 3
      %v5463 = vsel %vm4816, %v5462, %v5461
      %v5464 = vrot.slane %v4720, 2
      %v5465 = vsel %vm4819, %v5464, %v5463
      %v5466 = vrot.slane %v4721, 1
      %v5467 = vsel %vm4822, %v5466, %v5465
      %v5468 = vsel %vm4825, %v4722, %v5467
      %v5469 = vrot.slane %v4723, 7
      %v5470 = vsel %vm4828, %v5469, %v5468
      %v5471 = vrot.slane %v4724, 6
      %v5472 = vsel %vm4831, %v5471, %v5470
      %v5473 = vrot.slane %v4725, 5
      %v5474 = vsel %vm4834, %v5473, %v5472
      %v5475 = vrot.slane %v4726, 4
      %v5476 = vrot.slane %v4727, 3
      %v5477 = vsel %vm4816, %v5476, %v5475
      %v5478 = vrot.slane %v4728, 2
      %v5479 = vsel %vm4819, %v5478, %v5477
      %v5480 = vrot.slane %v4729, 1
      %v5481 = vsel %vm4822, %v5480, %v5479
      %v5482 = vsel %vm4825, %v4730, %v5481
      %v5483 = vrot.slane %v4731, 7
      %v5484 = vsel %vm4828, %v5483, %v5482
      %v5485 = vrot.slane %v4732, 6
      %v5486 = vsel %vm4831, %v5485, %v5484
      %v5487 = vrot.slane %v4733, 5
      %v5488 = vsel %vm4834, %v5487, %v5486
      %v5489 = vrot.slane %v4734, 4
      %v5490 = vrot.slane %v4735, 3
      %v5491 = vsel %vm4816, %v5490, %v5489
      %v5492 = vrot.slane %v4736, 2
      %v5493 = vsel %vm4819, %v5492, %v5491
      %v5494 = vrot.slane %v4737, 1
      %v5495 = vsel %vm4822, %v5494, %v5493
      %v5496 = vsel %vm4825, %v4738, %v5495
      %v5497 = vrot.slane %v4739, 7
      %v5498 = vsel %vm4828, %v5497, %v5496
      %v5499 = vrot.slane %v4740, 6
      %v5500 = vsel %vm4831, %v5499, %v5498
      %v5501 = vrot.slane %v4741, 5
      %v5502 = vsel %vm4834, %v5501, %v5500
      %v5503 = vrot.slane %v4742, 4
      %v5504 = vrot.slane %v4743, 3
      %v5505 = vsel %vm4816, %v5504, %v5503
      %v5506 = vrot.slane %v4744, 2
      %v5507 = vsel %vm4819, %v5506, %v5505
      %v5508 = vrot.slane %v4745, 1
      %v5509 = vsel %vm4822, %v5508, %v5507
      %v5510 = vsel %vm4825, %v4746, %v5509
      %v5511 = vrot.slane %v4747, 7
      %v5512 = vsel %vm4828, %v5511, %v5510
      %v5513 = vrot.slane %v4748, 6
      %v5514 = vsel %vm4831, %v5513, %v5512
      %v5515 = vrot.slane %v4749, 5
      %v5516 = vsel %vm4834, %v5515, %v5514
      %5521 = vmatprep.subr.mxu0 0.0
      %5522 = vmatpush1.msra.mxu0 %v5445
      %5523 = vmatprep.subr.mxu0 0.0
      %5524 = vmatpush1.msra.mxu0 %v5446
      %5525 = vmatprep.subr.mxu0 0.0
      %5526 = vmatpush1.msra.mxu0 %v5447
      %5527 = vmatprep.subr.mxu0 0.0
      %5528 = vmatpush1.msra.mxu0 %v5448
      %5529 = vmatprep.subr.mxu0 0.0
      %5530 = vmatpush1.msra.mxu0 %v5449
      %5531 = vmatprep.subr.mxu0 0.0
      %5532 = vmatpush1.msra.mxu0 %v5450
      %5533 = vmatprep.subr.mxu0 0.0
      %5534 = vmatpush1.msra.mxu0 %v5451
      %5535 = vmatprep.subr.mxu0 0.0
      %5536 = vmatpush1.msra.mxu0 %v5452
      %5537 = vmatprep.subr.mxu0 0.0
      %5538 = vmatpush1.msra.mxu0 %v5453
      %5539 = vmatprep.subr.mxu0 0.0
      %5540 = vmatpush1.msra.mxu0 %v5454
      %5541 = vmatprep.subr.mxu0 0.0
      %5542 = vmatpush1.msra.mxu0 %v5455
      %5543 = vmatprep.subr.mxu0 0.0
      %5544 = vmatpush1.msra.mxu0 %v5456
      %5545 = vmatprep.subr.mxu0 0.0
      %5546 = vmatpush1.msra.mxu0 %v5457
      %5547 = vmatprep.subr.mxu0 0.0
      %5548 = vmatpush1.msra.mxu0 %v5458
      %5549 = vmatprep.subr.mxu0 0.0
      %5550 = vmatpush1.msra.mxu0 %v5459
      %5551 = vmatprep.subr.mxu0 0.0
      %5552 = vmatpush1.msra.mxu0 %v5460
      %5553 = vmatprep.subr.mxu0 0.0
      %5554 = vmatpush1.msra.mxu0 0.0
      %5555 = vmatprep.subr.mxu0 0.0
      %5556 = vmatpush1.msra.mxu0 0.0
      %5557 = vmatprep.subr.mxu0 0.0
      %5558 = vmatpush1.msra.mxu0 0.0
      %5559 = vmatprep.subr.mxu0 0.0
      %5560 = vmatpush1.msra.mxu0 0.0
      %5561 = vmatprep.subr.mxu0 0.0
      %5562 = vmatpush1.msra.mxu0 0.0
      %5563 = vmatprep.subr.mxu0 0.0
      %5564 = vmatpush1.msra.mxu0 0.0
      %5565 = vmatprep.subr.mxu0 0.0
      %5566 = vmatpush1.msra.mxu0 0.0
      %5567 = vmatprep.subr.mxu0 0.0
      %5568 = vmatpush1.msra.mxu0 0.0
      %5569 = vmatprep.subr.mxu0 0.0
      %5570 = vmatpush1.msra.mxu0 0.0
      %5571 = vmatprep.subr.mxu0 0.0
      %5572 = vmatpush1.msra.mxu0 0.0
      %5573 = vmatprep.subr.mxu0 0.0
      %5574 = vmatpush1.msra.mxu0 0.0
      %5575 = vmatprep.subr.mxu0 0.0
      %5576 = vmatpush1.msra.mxu0 0.0
      %5577 = vmatprep.subr.mxu0 0.0
      %5578 = vmatpush1.msra.mxu0 0.0
      %5579 = vmatprep.subr.mxu0 0.0
      %5580 = vmatpush1.msra.mxu0 0.0
      %5581 = vmatprep.subr.mxu0 0.0
      %5582 = vmatpush1.msra.mxu0 0.0
      %5583 = vmatprep.subr.mxu0 0.0
      %5584 = vmatpush1.msra.mxu0 0.0
      %5585 = vmatprep.mubr.f32.mxu0 0.0
      %5586 = vmatmul.mubr.f32.gmra.mrb[0].mxu0 %v5474
      %v5587 = vpop.f32.mrb[0].mxu0
      %v5588 = vadd.f32 0.0, %v5587
      %v5589 = vpop.f32.mrb[0].mxu0
      %5590 = vmatprep.mubr.f32.mxu0 0.0
      %5591 = vmatmul.mubr.f32.gmra.mrb[0].mxu0 %v5488
      %v5592 = vpop.f32.mrb[0].mxu0
      %v5593 = vadd.f32 0.0, %v5592
      %v5594 = vpop.f32.mrb[0].mxu0
      %5595 = vmatprep.mubr.f32.mxu0 0.0
      %5596 = vmatmul.mubr.f32.gmra.mrb[0].mxu0 %v5502
      %v5597 = vpop.f32.mrb[0].mxu0
      %v5598 = vadd.f32 0.0, %v5597
      %v5599 = vpop.f32.mrb[0].mxu0
      %5600 = vmatprep.mubr.f32.mxu0 0.0
      %5601 = vmatmul.mubr.f32.gmra.mrb[0].mxu0 %v5516
      %v5602 = vpop.f32.mrb[0].mxu0
      %v5603 = vadd.f32 0.0, %v5602
      %v5604 = vpop.f32.mrb[0].mxu0
      %5605 = vdwg.mxu0
      %v5606 = vadd.f32 %v5440, %v5588
      %v5607 = vadd.f32 %v5441, %v5593
      %v5608 = vadd.f32 %v5442, %v5598
      %v5609 = vadd.f32 %v5443, %v5603
      %v5610 = vld [vmem:[%s6] sm:$0x1]
      %v5612 = vlaneseq
      %v5613 = vshrl.u32 %v5612, 7
      %v5614 = vsub.s32 0, %v5613
      %v5615 = vrot.slane %v5610, %v5614
      %v5617 = vadd.f32 %v5606, %v5615
      %v5618 = vadd.f32 %v5607, %v5615
      %v5619 = vadd.f32 %v5608, %v5615
      %v5620 = vadd.f32 %v5609, %v5615
      %v5621 = vmax.f32 %v5617, 0.0
      %v5622 = vmax.f32 %v5618, 0.0
      %v5623 = vmax.f32 %v5619, 0.0
      %v5624 = vmax.f32 %v5620, 0.0
      %v5625 = vld [vmem:[%s7] sm:$0xff]
      %v5626 = vld [vmem:[%s7 + $0x8] sm:$0xff]
      %v5627 = vld [vmem:[%s7 + $0x10] sm:$0xff]
      %v5628 = vld [vmem:[%s7 + $0x18] sm:$0xff]
      %v5629 = vld [vmem:[%s7 + $0x20] sm:$0xff]
      %v5630 = vld [vmem:[%s7 + $0x28] sm:$0xff]
      %v5631 = vld [vmem:[%s7 + $0x30] sm:$0xff]
      %v5632 = vld [vmem:[%s7 + $0x38] sm:$0xff]
      %v5633 = vld [vmem:[%s7 + $0x40] sm:$0xff]
      %v5634 = vld [vmem:[%s7 + $0x48] sm:$0xff]
      %v5635 = vld [vmem:[%s7 + $0x50] sm:$0xff]
      %v5636 = vld [vmem:[%s7 + $0x58] sm:$0xff]
      %v5637 = vld [vmem:[%s7 + $0x60] sm:$0xff]
      %v5638 = vld [vmem:[%s7 + $0x68] sm:$0xff]
      %v5639 = vld [vmem:[%s7 + $0x70] sm:$0xff]
      %v5640 = vld [vmem:[%s7 + $0x78] sm:$0xff]
      %v5641 = vld [vmem:[%s8] sm:$0x1]
      %v5643 = vlaneseq
      %v5644 = vshrl.u32 %v5643, 7
      %v5645 = vsub.s32 0, %v5644
      %v5646 = vrot.slane %v5641, %v5645
      %5648 = vmatprep.subr.mxu0 0.0
      %5649 = vmatpush1.msra.mxu0 %v5625
      %5650 = vmatprep.subr.mxu0 0.0
      %5651 = vmatpush1.msra.mxu0 %v5626
      %5652 = vmatprep.subr.mxu0 0.0
      %5653 = vmatpush1.msra.mxu0 %v5627
      %5654 = vmatprep.subr.mxu0 0.0
      %5655 = vmatpush1.msra.mxu0 %v5628
      %5656 = vmatprep.subr.mxu0 0.0
      %5657 = vmatpush1.msra.mxu0 %v5629
      %5658 = vmatprep.subr.mxu0 0.0
      %5659 = vmatpush1.msra.mxu0 %v5630
      %5660 = vmatprep.subr.mxu0 0.0
      %5661 = vmatpush1.msra.mxu0 %v5631
      %5662 = vmatprep.subr.mxu0 0.0
      %5663 = vmatpush1.msra.mxu0 %v5632
      %5664 = vmatprep.subr.mxu0 0.0
      %5665 = vmatpush1.msra.mxu0 %v5633
      %5666 = vmatprep.subr.mxu0 0.0
      %5667 = vmatpush1.msra.mxu0 %v5634
      %5668 = vmatprep.subr.mxu0 0.0
      %5669 = vmatpush1.msra.mxu0 %v5635
      %5670 = vmatprep.subr.mxu0 0.0
      %5671 = vmatpush1.msra.mxu0 %v5636
      %5672 = vmatprep.subr.mxu0 0.0
      %5673 = vmatpush1.msra.mxu0 %v5637
      %5674 = vmatprep.subr.mxu0 0.0
      %5675 = vmatpush1.msra.mxu0 %v5638
      %5676 = vmatprep.subr.mxu0 0.0
      %5677 = vmatpush1.msra.mxu0 %v5639
      %5678 = vmatprep.subr.mxu0 0.0
      %5679 = vmatpush1.msra.mxu0 %v5640
      %5680 = vmatprep.subr.mxu0 0.0
      %5681 = vmatpush1.msra.mxu0 0.0
      %5682 = vmatprep.subr.mxu0 0.0
      %5683 = vmatpush1.msra.mxu0 0.0
      %5684 = vmatprep.subr.mxu0 0.0
      %5685 = vmatpush1.msra.mxu0 0.0
      %5686 = vmatprep.subr.mxu0 0.0
      %5687 = vmatpush1.msra.mxu0 0.0
      %5688 = vmatprep.subr.mxu0 0.0
      %5689 = vmatpush1.msra.mxu0 0.0
      %5690 = vmatprep.subr.mxu0 0.0
      %5691 = vmatpush1.msra.mxu0 0.0
      %5692 = vmatprep.subr.mxu0 0.0
      %5693 = vmatpush1.msra.mxu0 0.0
      %5694 = vmatprep.subr.mxu0 0.0
      %5695 = vmatpush1.msra.mxu0 0.0
      %5696 = vmatprep.subr.mxu0 0.0
      %5697 = vmatpush1.msra.mxu0 0.0
      %5698 = vmatprep.subr.mxu0 0.0
      %5699 = vmatpush1.msra.mxu0 0.0
      %5700 = vmatprep.subr.mxu0 0.0
      %5701 = vmatpush1.msra.mxu0 0.0
      %5702 = vmatprep.subr.mxu0 0.0
      %5703 = vmatpush1.msra.mxu0 0.0
      %5704 = vmatprep.subr.mxu0 0.0
      %5705 = vmatpush1.msra.mxu0 0.0
      %5706 = vmatprep.subr.mxu0 0.0
      %5707 = vmatpush1.msra.mxu0 0.0
      %5708 = vmatprep.subr.mxu0 0.0
      %5709 = vmatpush1.msra.mxu0 0.0
      %5710 = vmatprep.subr.mxu0 0.0
      %5711 = vmatpush1.msra.mxu0 0.0
      %5712 = vmatprep.mubr.f32.mxu0 0.0
      %5713 = vmatmul.mubr.f32.gmra.mrb[0].mxu0 %v5621
      %v5714 = vpop.f32.mrb[0].mxu0
      %v5715 = vadd.f32 %v5646, %v5714
      %v5716 = vpop.f32.mrb[0].mxu0
      %5717 = vmatprep.mubr.f32.mxu0 0.0
      %5718 = vmatmul.mubr.f32.gmra.mrb[0].mxu0 %v5622
      %v5719 = vpop.f32.mrb[0].mxu0
      %v5720 = vadd.f32 %v5646, %v5719
      %v5721 = vpop.f32.mrb[0].mxu0
      %5722 = vmatprep.mubr.f32.mxu0 0.0
      %5723 = vmatmul.mubr.f32.gmra.mrb[0].mxu0 %v5623
      %v5724 = vpop.f32.mrb[0].mxu0
      %v5725 = vadd.f32 %v5646, %v5724
      %v5726 = vpop.f32.mrb[0].mxu0
      %5727 = vmatprep.mubr.f32.mxu0 0.0
      %5728 = vmatmul.mubr.f32.gmra.mrb[0].mxu0 %v5624
      %v5729 = vpop.f32.mrb[0].mxu0
      %v5730 = vadd.f32 %v5646, %v5729
      %v5731 = vpop.f32.mrb[0].mxu0
      %5732 = vdwg.mxu0
      %v5733 = vmax.f32 %v5715, 0.0
      %v5734 = vmax.f32 %v5720, 0.0
      %v5735 = vmax.f32 %v5725, 0.0
      %v5736 = vmax.f32 %v5730, 0.0
      %v5737 = vld [vmem:[%s9] sm:$0xff]
      %v5738 = vld [vmem:[%s9 + $0x8] sm:$0xff]
      %v5739 = vld [vmem:[%s9 + $0x10] sm:$0xff]
      %v5740 = vld [vmem:[%s9 + $0x18] sm:$0xff]
      %v5741 = vld [vmem:[%s9 + $0x20] sm:$0xff]
      %v5742 = vld [vmem:[%s9 + $0x28] sm:$0xff]
      %v5743 = vld [vmem:[%s9 + $0x30] sm:$0xff]
      %v5744 = vld [vmem:[%s9 + $0x38] sm:$0xff]
      %v5745 = vld [vmem:[%s9 + $0x40] sm:$0xff]
      %v5746 = vld [vmem:[%s9 + $0x48] sm:$0xff]
      %v5747 = vld [vmem:[%s9 + $0x50] sm:$0xff]
      %v5748 = vld [vmem:[%s9 + $0x58] sm:$0xff]
      %v5749 = vld [vmem:[%s9 + $0x60] sm:$0xff]
      %v5750 = vld [vmem:[%s9 + $0x68] sm:$0xff]
      %v5751 = vld [vmem:[%s9 + $0x70] sm:$0xff]
      %v5752 = vld [vmem:[%s9 + $0x78] sm:$0xff]
      %v5753 = vld [vmem:[%s10] sm:$0x1]
      %v5755 = vlaneseq
      %v5756 = vshrl.u32 %v5755, 7
      %v5757 = vsub.s32 0, %v5756
      %v5758 = vrot.slane %v5753, %v5757
      %5760 = vmatprep.subr.mxu0 0.0
      %5761 = vmatpush1.msra.mxu0 %v5737
      %5762 = vmatprep.subr.mxu0 0.0
      %5763 = vmatpush1.msra.mxu0 %v5738
      %5764 = vmatprep.subr.mxu0 0.0
      %5765 = vmatpush1.msra.mxu0 %v5739
      %5766 = vmatprep.subr.mxu0 0.0
      %5767 = vmatpush1.msra.mxu0 %v5740
      %5768 = vmatprep.subr.mxu0 0.0
      %5769 = vmatpush1.msra.mxu0 %v5741
      %5770 = vmatprep.subr.mxu0 0.0
      %5771 = vmatpush1.msra.mxu0 %v5742
      %5772 = vmatprep.subr.mxu0 0.0
      %5773 = vmatpush1.msra.mxu0 %v5743
      %5774 = vmatprep.subr.mxu0 0.0
      %5775 = vmatpush1.msra.mxu0 %v5744
      %5776 = vmatprep.subr.mxu0 0.0
      %5777 = vmatpush1.msra.mxu0 %v5745
      %5778 = vmatprep.subr.mxu0 0.0
      %5779 = vmatpush1.msra.mxu0 %v5746
      %5780 = vmatprep.subr.mxu0 0.0
      %5781 = vmatpush1.msra.mxu0 %v5747
      %5782 = vmatprep.subr.mxu0 0.0
      %5783 = vmatpush1.msra.mxu0 %v5748
      %5784 = vmatprep.subr.mxu0 0.0
      %5785 = vmatpush1.msra.mxu0 %v5749
      %5786 = vmatprep.subr.mxu0 0.0
      %5787 = vmatpush1.msra.mxu0 %v5750
      %5788 = vmatprep.subr.mxu0 0.0
      %5789 = vmatpush1.msra.mxu0 %v5751
      %5790 = vmatprep.subr.mxu0 0.0
      %5791 = vmatpush1.msra.mxu0 %v5752
      %5792 = vmatprep.subr.mxu0 0.0
      %5793 = vmatpush1.msra.mxu0 0.0
      %5794 = vmatprep.subr.mxu0 0.0
      %5795 = vmatpush1.msra.mxu0 0.0
      %5796 = vmatprep.subr.mxu0 0.0
      %5797 = vmatpush1.msra.mxu0 0.0
      %5798 = vmatprep.subr.mxu0 0.0
      %5799 = vmatpush1.msra.mxu0 0.0
      %5800 = vmatprep.subr.mxu0 0.0
      %5801 = vmatpush1.msra.mxu0 0.0
      %5802 = vmatprep.subr.mxu0 0.0
      %5803 = vmatpush1.msra.mxu0 0.0
      %5804 = vmatprep.subr.mxu0 0.0
      %5805 = vmatpush1.msra.mxu0 0.0
      %5806 = vmatprep.subr.mxu0 0.0
      %5807 = vmatpush1.msra.mxu0 0.0
      %5808 = vmatprep.subr.mxu0 0.0
      %5809 = vmatpush1.msra.mxu0 0.0
      %5810 = vmatprep.subr.mxu0 0.0
      %5811 = vmatpush1.msra.mxu0 0.0
      %5812 = vmatprep.subr.mxu0 0.0
      %5813 = vmatpush1.msra.mxu0 0.0
      %5814 = vmatprep.subr.mxu0 0.0
      %5815 = vmatpush1.msra.mxu0 0.0
      %5816 = vmatprep.subr.mxu0 0.0
      %5817 = vmatpush1.msra.mxu0 0.0
      %5818 = vmatprep.subr.mxu0 0.0
      %5819 = vmatpush1.msra.mxu0 0.0
      %5820 = vmatprep.subr.mxu0 0.0
      %5821 = vmatpush1.msra.mxu0 0.0
      %5822 = vmatprep.subr.mxu0 0.0
      %5823 = vmatpush1.msra.mxu0 0.0
      %5824 = vmatprep.mubr.f32.mxu0 0.0
      %5825 = vmatmul.mubr.f32.gmra.mrb[0].mxu0 %v5733
      %v5826 = vpop.f32.mrb[0].mxu0
      %v5827 = vadd.f32 %v5758, %v5826
      %v5828 = vpop.f32.mrb[0].mxu0
      %5829 = vmatprep.mubr.f32.mxu0 0.0
      %5830 = vmatmul.mubr.f32.gmra.mrb[0].mxu0 %v5734
      %v5831 = vpop.f32.mrb[0].mxu0
      %v5832 = vadd.f32 %v5758, %v5831
      %v5833 = vpop.f32.mrb[0].mxu0
      %5834 = vmatprep.mubr.f32.mxu0 0.0
      %5835 = vmatmul.mubr.f32.gmra.mrb[0].mxu0 %v5735
      %v5836 = vpop.f32.mrb[0].mxu0
      %v5837 = vadd.f32 %v5758, %v5836
      %v5838 = vpop.f32.mrb[0].mxu0
      %5839 = vmatprep.mubr.f32.mxu0 0.0
      %5840 = vmatmul.mubr.f32.gmra.mrb[0].mxu0 %v5736
      %v5841 = vpop.f32.mrb[0].mxu0
      %v5842 = vadd.f32 %v5758, %v5841
      %v5843 = vpop.f32.mrb[0].mxu0
      %5844 = vdwg.mxu0
      %5845 = vst [vmem:[%s391] sm:$0xff] %v5827
      %5846 = vst [vmem:[%s391 + $0x8] sm:$0xff] %v5832
      %5847 = vst [vmem:[%s391 + $0x10] sm:$0xff] %v5837
      %5848 = vst [vmem:[%s391 + $0x18] sm:$0xff] %v5842
      %s5849 = smul.u32 4, %s22
      %p5850 = scmp.lt.s32.totalorder %s5849, 7
      %s5851 = scalar_select %p5850, %s5849, 7
      %s5852 = smul.addr %s5851, 8
      %s5853 = scalar_lea.vmem %s11, %s5852
      // Predicated region
      $region65: #{net_forward.1} parent=63 // pred_check
        %p5854 = pneg %p276
      $region66: #{net_forward.1} parent=63 // pred_check_branch
        %5856 = sbr.rel (%p5854) target = $region68
      $region67: #{net_forward.1} parent=63 // pred_region
        %s5857 = smul.u32 4, %s22
      $region68: #{net_forward.1} parent=63 // pred_fallthru
        _
    $region64: #{net_forward.1} parent=5 // pred_fallthru
      _
    %p5858 = scmp.le.s32.totalorder 2, %s17
    // Predicated region
    $region69: #{net_forward.1} parent=5 // pred_check
      %p5859 = pneg %p5858
    $region70: #{net_forward.1} parent=5 // pred_check_branch
      %5861 = sbr.rel (%p5859) target = $region72
    $region71: #{net_forward.1} parent=5 // pred_region
      %s5862 = ssub.s32 %s17, 2
      // Predicated region
      $region73: #{net_forward.1} parent=71 // pred_check
        %p5863 = pneg %p282
      $region74: #{net_forward.1} parent=71 // pred_check_branch
        %5865 = sbr.rel (%p5863) target = $region76
      $region75: #{net_forward.1} parent=71 // pred_region
        %s5866 = smul.u32 4, %s23
        %p5867 = scmp.lt.s32.totalorder %s5866, 7
        %s5868 = scalar_select %p5867, %s5866, 7
        %s5869 = smul.addr %s5868, 8
        %s5870 = scalar_lea.vmem %s11, %s5869
      $region76: #{net_forward.1} parent=71 // pred_fallthru
        _
    $region72: #{net_forward.1} parent=5 // pred_fallthru
      _
  $region6: #{net_forward.1} parent=0 // loop_footer
    %s21 = sadd.s32 1, %s17
  $region7: #{net_forward.1} parent=0 // loop_footer_branch
    %16 = sbr.rel target = $region3
  $region8: #{net_forward.1} parent=0 // loop_exit
    _

</llo_original>
